<compile_context>
chip_gen: v6e
topology: v6e:2x2x1
jax: 0.10.0
libtpu: 0.0.40
codegen_flags: <defaults>
</compile_context>

<pallas_src>
import jax
import jax.numpy as jnp
import numpy as np
from jax import lax
from jax.experimental import pallas as pl
from jax.experimental.pallas import tpu as pltpu

OUTPUT_LEN = 100
LANE = 128
HP = LANE                 # hidden dim zero-padded to one 128-lane tile
PACK = HP // 2            # lane offset where h1 is packed next to h0 (requires H <= 64)
OUT_PAD = ((OUTPUT_LEN + LANE - 1) // LANE) * LANE   # 128


def _pad_to(a, size, axis):
    pad = size - a.shape[axis]
    if pad <= 0:
        return a
    widths = [(0, 0)] * a.ndim
    widths[axis] = (0, pad)
    return jnp.pad(a, widths)


def seq_lstm_kernel(x_ref, wih0_ref, b0_ref, whh0_ref, w1_ref, b1_ref,
                    wfc_ref, bfc_ref, out_ref):
    """Full 2-layer LSTM recurrence over T + FC head in a single kernel invocation.

    x_ref   : (T, B, I)    time-major raw input
    wih0_ref: (I, 4*HP)    layer-0 input weights, gates fused [i|f|o|g]
    b0_ref  : (1, 4*HP)    layer-0 bias (b_ih + b_hh)
    whh0_ref: (HP, 4*HP)   layer-0 recurrent weights
    w1_ref  : (HP, 4*HP)   layer-1 packed weights: rows [0,H)=W_ih1, rows [64,64+H)=W_hh1
    b1_ref  : (1, 4*HP)
    wfc_ref : (HP, OUT_PAD),  bfc_ref: (1, OUT_PAD)
    out_ref : (B, OUT_PAD)
    """
    T, B, I = x_ref.shape
    Hp = whh0_ref.shape[0]
    half = Hp // 2

    def lstm_update(gates, c_prev):
        # gate layout [i | f | o | g]: one sigmoid over 3*Hp lanes, one tanh over Hp.
        ifo = jax.nn.sigmoid(gates[:, :3 * Hp])
        i = ifo[:, 0 * Hp:1 * Hp]
        f = ifo[:, 1 * Hp:2 * Hp]
        o = ifo[:, 2 * Hp:3 * Hp]
        g = jnp.tanh(gates[:, 3 * Hp:4 * Hp])
        c_new = f * c_prev + i * g
        h_new = o * jnp.tanh(c_new)
        return h_new, c_new

    def step(t, carry):
        h0, c0, h1, c1 = carry
        x_t = x_ref[t]                                           # (B, I)
        # Layer-0 input projection in-kernel: with I == 1 this is a VPU broadcast
        # multiply (no MXU dot, no wrapper-side staging buffer).
        if I == 1:
            xg = x_t * wih0_ref[...] + b0_ref[...]
        else:
            xg = jnp.dot(x_t, wih0_ref[...],
                         preferred_element_type=jnp.float32) + b0_ref[...]
        g0 = xg + jnp.dot(h0, whh0_ref[...], preferred_element_type=jnp.float32)
        h0, c0 = lstm_update(g0, c0)

        # Layer-1: pack [h0_new | h1_prev] into one 128-lane vector (padded lanes are
        # exactly 0), so W_ih1/W_hh1 collapse into a single K=128 dot.  roll rides the
        # XLU slot; shift == 64 on a 128-lane tile is direction-agnostic.
        h01 = h0 + pltpu.roll(h1, shift=half, axis=1)
        # TODO(synk): nn.LSTM inter-layer dropout is identity at inference; omitted.
        g1 = jnp.dot(h01, w1_ref[...], preferred_element_type=jnp.float32) + b1_ref[...]
        h1, c1 = lstm_update(g1, c1)
        return h0, c0, h1, c1

    zeros = jnp.zeros((B, Hp), jnp.float32)
    _, _, h1, _ = lax.fori_loop(0, T, step, (zeros, zeros, zeros, zeros),
                                unroll=True)

    # fc on hidden[-1]; self.dropout is identity in eval mode. Runs exactly once.
    out_ref[...] = (jnp.dot(h1, wfc_ref[...], preferred_element_type=jnp.float32)
                    + bfc_ref[...]).astype(out_ref.dtype)


def prepare_fused_params(params):
    """One-time parameter preparation (runs at init, NOT in the per-call hot path).

    * gates reordered [i,f,g,o] -> [i,f,o,g] and fused along the last axis so each
      gate slab is exactly one 128-lane tile,
    * hidden dim zero-padded 50 -> 128 (padded h/c lanes provably stay 0),
    * layer-1 W_ih1 / W_hh1 packed row-wise to match the lane-packed [h0 | h1] vector,
    * fc weight/bias padded to a clean (128, 128) tile.
    """
    H = params["whh0"].shape[-1]
    assert H <= PACK, "lane-packing of (h0, h1) requires hidden_dim <= 64"
    perm = np.array([0, 1, 3, 2])          # [i,f,g,o] -> [i,f,o,g]

    def fuse(w):                            # (4, in, H) -> (in, 4*HP)
        w = jnp.asarray(w)[perm]
        w = _pad_to(w, HP, axis=2)
        return jnp.transpose(w, (1, 0, 2)).reshape(w.shape[1], 4 * HP)

    def fuse_rec(w):                        # (4, H, H) -> (HP, 4*HP)
        return fuse(_pad_to(jnp.asarray(w), HP, axis=1))

    wih0 = fuse(params["wih0"])                               # (I, 4*HP)
    b0 = fuse(params["b0"])                                   # (1, 4*HP)
    whh0 = fuse_rec(params["whh0"])                           # (HP, 4*HP)

    w1 = jnp.zeros((HP, 4 * HP), jnp.float32)
    w1 = w1.at[:H].set(fuse(params["wih1"]))                  # rows [0, H): W_ih1
    w1 = w1.at[PACK:PACK + H].set(fuse(params["whh1"]))       # rows [64, 64+H): W_hh1
    b1 = fuse(params["b1"])                                   # (1, 4*HP)

    wfc = _pad_to(_pad_to(params["wfc"], HP, axis=0), OUT_PAD, axis=1)   # (HP, OUT_PAD)
    bfc = _pad_to(params["bfc"], OUT_PAD, axis=1)                        # (1, OUT_PAD)
    return dict(wih0=wih0, b0=b0, whh0=whh0, w1=w1, b1=b1, wfc=wfc, bfc=bfc)


@jax.jit
def seq_lstm_forward(x, fused):
    """x: (B, T, I) float32 (batch_first, like PyTorch). Returns (B, OUTPUT_LEN, 1)."""
    B, T, I = x.shape
    x_tm = jnp.transpose(x, (1, 0, 2))           # (T, B, I) -- only wrapper-side op
    vmem = pl.BlockSpec(memory_space=pltpu.MemorySpace.VMEM)
    out = pl.pallas_call(
        seq_lstm_kernel,
        out_shape=jax.ShapeDtypeStruct((B, OUT_PAD), jnp.float32),
        in_specs=[vmem] * 8,
        out_specs=vmem,
    )(x_tm, fused["wih0"], fused["b0"], fused["whh0"],
      fused["w1"], fused["b1"], fused["wfc"], fused["bfc"])
    return out[:, :OUTPUT_LEN].reshape(B, OUTPUT_LEN, 1)


def init_params(key, input_dim=1, hidden_dim=50):
    """Deterministic synthetic parameters with PyTorch-style U(-1/sqrt(H), 1/sqrt(H)) init."""
    H, I = hidden_dim, input_dim
    stdv = 1.0 / np.sqrt(H)
    ks = jax.random.split(key, 12)
    u = lambda k, shape: jax.random.uniform(k, shape, jnp.float32, -stdv, stdv)
    params = {
        # gate order along leading axis: [i, f, g, o], weights stored transposed (in, H)
        "wih0": u(ks[0], (4, I, H)),
        "whh0": u(ks[1], (4, H, H)),
        "b0":   u(ks[2], (4, 1, H)) + u(ks[3], (4, 1, H)),   # b_ih + b_hh
        "wih1": u(ks[4], (4, H, H)),
        "whh1": u(ks[5], (4, H, H)),
        "b1":   u(ks[6], (4, 1, H)) + u(ks[7], (4, 1, H)),
        "wfc":  u(ks[8], (H, OUTPUT_LEN)),                   # fc.weight^T
        "bfc":  u(ks[9], (1, OUTPUT_LEN)),
    }
    return params


def seq_lstm_reference(x, params):
    """Pure-JAX reference matching torch semantics (eval mode)."""
    B, T, I = x.shape
    H = params["whh0"].shape[-1]

    def cell(x_in, h, c, wih, whh, b):
        gates = [x_in @ wih[k] + h @ whh[k] + b[k] for k in range(4)]
        i = jax.nn.sigmoid(gates[0]); f = jax.nn.sigmoid(gates[1])
        g = jnp.tanh(gates[2]);       o = jax.nn.sigmoid(gates[3])
        c_new = f * c + i * g
        return o * jnp.tanh(c_new), c_new

    def step(carry, x_t):
        h0, c0, h1, c1 = carry
        h0, c0 = cell(x_t, h0, c0, params["wih0"], params["whh0"], params["b0"])
        h1, c1 = cell(h0, h1, c1, params["wih1"], params["whh1"], params["b1"])
        return (h0, c0, h1, c1), None

    zeros = jnp.zeros((B, H), jnp.float32)
    (h0, c0, h1, c1), _ = lax.scan(step, (zeros, zeros, zeros, zeros),
                                   jnp.transpose(x, (1, 0, 2)))
    out = h1 @ params["wfc"] + params["bfc"]
    return out.reshape(B, OUTPUT_LEN, 1)


if __name__ == "__main__":
    key = jax.random.PRNGKey(0)
    k_param, k_x = jax.random.split(key)

    B, T, I, H = 2, 8, 1, 50   # batch=2, seq=8, input_dim=1, hidden_dim=50 (module defaults)
    params = init_params(k_param, input_dim=I, hidden_dim=H)
    fused = prepare_fused_params(params)        # one-time prep, outside the hot path
    x = jax.random.normal(k_x, (B, T, I), jnp.float32)

    out = jax.block_until_ready(seq_lstm_forward(x, fused))
    assert out.shape == (B, OUTPUT_LEN, 1), out.shape

    ref = jax.block_until_ready(seq_lstm_reference(x, params))
    np.testing.assert_allclose(np.asarray(out), np.asarray(ref), rtol=2e-3, atol=2e-3)

    print("KERNEL_OK")
</pallas_src>

<mosaic_0001>
module attributes {stable_mosaic.version = 11 : i64} {
  func.func @seq_lstm_kernel(%arg0: memref<8x2x1xf32, #tpu.memory_space<vmem>>, %arg1: memref<1x512xf32, #tpu.memory_space<vmem>>, %arg2: memref<1x512xf32, #tpu.memory_space<vmem>>, %arg3: memref<128x512xf32, #tpu.memory_space<vmem>>, %arg4: memref<128x512xf32, #tpu.memory_space<vmem>>, %arg5: memref<1x512xf32, #tpu.memory_space<vmem>>, %arg6: memref<128x128xf32, #tpu.memory_space<vmem>>, %arg7: memref<1x128xf32, #tpu.memory_space<vmem>>, %arg8: memref<2x128xf32, #tpu.memory_space<vmem>>) attributes {dimension_semantics = [], scalar_prefetch = 0 : i64, scratch_operands = 0 : i64, tpu.core_type = #tpu.core_type<tc>} {
    %cst = arith.constant 0.000000e+00 : f32
    %0 = vector.broadcast %cst : f32 to vector<2x128xf32>
    %c0_i32 = arith.constant 0 : i32
    %1 = arith.index_cast %c0_i32 : i32 to index
    %c0 = arith.constant 0 : index
    %c0_0 = arith.constant 0 : index
    %2 = vector.load %arg0[%1, %c0, %c0_0] : memref<8x2x1xf32, #tpu.memory_space<vmem>>, vector<1x2x1xf32>
    %3 = vector.shape_cast %2 : vector<1x2x1xf32> to vector<2x1xf32>
    %c0_1 = arith.constant 0 : index
    %c0_2 = arith.constant 0 : index
    %4 = vector.load %arg1[%c0_1, %c0_2] : memref<1x512xf32, #tpu.memory_space<vmem>>, vector<1x512xf32>
    %5 = vector.broadcast %3 : vector<2x1xf32> to vector<2x512xf32>
    %6 = vector.broadcast %4 : vector<1x512xf32> to vector<2x512xf32>
    %7 = arith.mulf %5, %6 : vector<2x512xf32>
    %c0_3 = arith.constant 0 : index
    %c0_4 = arith.constant 0 : index
    %8 = vector.load %arg2[%c0_3, %c0_4] : memref<1x512xf32, #tpu.memory_space<vmem>>, vector<1x512xf32>
    %9 = vector.broadcast %8 : vector<1x512xf32> to vector<2x512xf32>
    %10 = arith.addf %7, %9 : vector<2x512xf32>
    %c0_5 = arith.constant 0 : index
    %c0_6 = arith.constant 0 : index
    %11 = vector.load %arg3[%c0_5, %c0_6] : memref<128x512xf32, #tpu.memory_space<vmem>>, vector<128x512xf32>
    %cst_7 = arith.constant dense<0.000000e+00> : vector<2x512xf32>
    %12 = tpu.matmul %0, %11, %cst_7 {dimension_numbers = #tpu.dot_dimension_numbers<[1], [0], [0], [1], [0, 0, 1, 1], [], []>} : vector<2x128xf32>, vector<128x512xf32>, vector<2x512xf32> -> vector<2x512xf32>
    %13 = arith.addf %10, %12 : vector<2x512xf32>
    %14 = vector.extract_strided_slice %13 {offsets = [0, 0], sizes = [2, 384], strides = [1, 1]} : vector<2x512xf32> to vector<2x384xf32>
    %15 = arith.negf %14 : vector<2x384xf32>
    %16 = math.exp %15 : vector<2x384xf32>
    %cst_8 = arith.constant 1.000000e+00 : f32
    %17 = vector.broadcast %cst_8 : f32 to vector<2x384xf32>
    %18 = arith.addf %17, %16 : vector<2x384xf32>
    %19 = arith.divf %17, %18 : vector<2x384xf32>
    %20 = vector.extract_strided_slice %19 {offsets = [0, 0], sizes = [2, 128], strides = [1, 1]} : vector<2x384xf32> to vector<2x128xf32>
    %21 = vector.extract_strided_slice %19 {offsets = [0, 128], sizes = [2, 128], strides = [1, 1]} : vector<2x384xf32> to vector<2x128xf32>
    %22 = vector.extract_strided_slice %19 {offsets = [0, 256], sizes = [2, 128], strides = [1, 1]} : vector<2x384xf32> to vector<2x128xf32>
    %23 = vector.extract_strided_slice %13 {offsets = [0, 384], sizes = [2, 128], strides = [1, 1]} : vector<2x512xf32> to vector<2x128xf32>
    %24 = math.tanh %23 : vector<2x128xf32>
    %25 = arith.mulf %21, %0 : vector<2x128xf32>
    %26 = arith.mulf %20, %24 : vector<2x128xf32>
    %27 = arith.addf %25, %26 : vector<2x128xf32>
    %28 = math.tanh %27 : vector<2x128xf32>
    %29 = arith.mulf %22, %28 : vector<2x128xf32>
    %c64_i32 = arith.constant 64 : i32
    %30 = tpu.dynamic_rotate %0 by %c64_i32 dim 1 : vector<2x128xf32>, i32 -> vector<2x128xf32>
    %31 = arith.addf %29, %30 : vector<2x128xf32>
    %c0_9 = arith.constant 0 : index
    %c0_10 = arith.constant 0 : index
    %32 = vector.load %arg4[%c0_9, %c0_10] : memref<128x512xf32, #tpu.memory_space<vmem>>, vector<128x512xf32>
    %cst_11 = arith.constant dense<0.000000e+00> : vector<2x512xf32>
    %33 = tpu.matmul %31, %32, %cst_11 {dimension_numbers = #tpu.dot_dimension_numbers<[1], [0], [0], [1], [0, 0, 1, 1], [], []>} : vector<2x128xf32>, vector<128x512xf32>, vector<2x512xf32> -> vector<2x512xf32>
    %c0_12 = arith.constant 0 : index
    %c0_13 = arith.constant 0 : index
    %34 = vector.load %arg5[%c0_12, %c0_13] : memref<1x512xf32, #tpu.memory_space<vmem>>, vector<1x512xf32>
    %35 = vector.broadcast %34 : vector<1x512xf32> to vector<2x512xf32>
    %36 = arith.addf %33, %35 : vector<2x512xf32>
    %37 = vector.extract_strided_slice %36 {offsets = [0, 0], sizes = [2, 384], strides = [1, 1]} : vector<2x512xf32> to vector<2x384xf32>
    %38 = arith.negf %37 : vector<2x384xf32>
    %39 = math.exp %38 : vector<2x384xf32>
    %cst_14 = arith.constant 1.000000e+00 : f32
    %40 = vector.broadcast %cst_14 : f32 to vector<2x384xf32>
    %41 = arith.addf %40, %39 : vector<2x384xf32>
    %42 = arith.divf %40, %41 : vector<2x384xf32>
    %43 = vector.extract_strided_slice %42 {offsets = [0, 0], sizes = [2, 128], strides = [1, 1]} : vector<2x384xf32> to vector<2x128xf32>
    %44 = vector.extract_strided_slice %42 {offsets = [0, 128], sizes = [2, 128], strides = [1, 1]} : vector<2x384xf32> to vector<2x128xf32>
    %45 = vector.extract_strided_slice %42 {offsets = [0, 256], sizes = [2, 128], strides = [1, 1]} : vector<2x384xf32> to vector<2x128xf32>
    %46 = vector.extract_strided_slice %36 {offsets = [0, 384], sizes = [2, 128], strides = [1, 1]} : vector<2x512xf32> to vector<2x128xf32>
    %47 = math.tanh %46 : vector<2x128xf32>
    %48 = arith.mulf %44, %0 : vector<2x128xf32>
    %49 = arith.mulf %43, %47 : vector<2x128xf32>
    %50 = arith.addf %48, %49 : vector<2x128xf32>
    %51 = math.tanh %50 : vector<2x128xf32>
    %52 = arith.mulf %45, %51 : vector<2x128xf32>
    %c1_i32 = arith.constant 1 : i32
    %53 = arith.index_cast %c1_i32 : i32 to index
    %c0_15 = arith.constant 0 : index
    %c0_16 = arith.constant 0 : index
    %54 = vector.load %arg0[%53, %c0_15, %c0_16] : memref<8x2x1xf32, #tpu.memory_space<vmem>>, vector<1x2x1xf32>
    %55 = vector.shape_cast %54 : vector<1x2x1xf32> to vector<2x1xf32>
    %c0_17 = arith.constant 0 : index
    %c0_18 = arith.constant 0 : index
    %56 = vector.load %arg1[%c0_17, %c0_18] : memref<1x512xf32, #tpu.memory_space<vmem>>, vector<1x512xf32>
    %57 = vector.broadcast %55 : vector<2x1xf32> to vector<2x512xf32>
    %58 = vector.broadcast %56 : vector<1x512xf32> to vector<2x512xf32>
    %59 = arith.mulf %57, %58 : vector<2x512xf32>
    %c0_19 = arith.constant 0 : index
    %c0_20 = arith.constant 0 : index
    %60 = vector.load %arg2[%c0_19, %c0_20] : memref<1x512xf32, #tpu.memory_space<vmem>>, vector<1x512xf32>
    %61 = vector.broadcast %60 : vector<1x512xf32> to vector<2x512xf32>
    %62 = arith.addf %59, %61 : vector<2x512xf32>
    %c0_21 = arith.constant 0 : index
    %c0_22 = arith.constant 0 : index
    %63 = vector.load %arg3[%c0_21, %c0_22] : memref<128x512xf32, #tpu.memory_space<vmem>>, vector<128x512xf32>
    %cst_23 = arith.constant dense<0.000000e+00> : vector<2x512xf32>
    %64 = tpu.matmul %29, %63, %cst_23 {dimension_numbers = #tpu.dot_dimension_numbers<[1], [0], [0], [1], [0, 0, 1, 1], [], []>} : vector<2x128xf32>, vector<128x512xf32>, vector<2x512xf32> -> vector<2x512xf32>
    %65 = arith.addf %62, %64 : vector<2x512xf32>
    %66 = vector.extract_strided_slice %65 {offsets = [0, 0], sizes = [2, 384], strides = [1, 1]} : vector<2x512xf32> to vector<2x384xf32>
    %67 = arith.negf %66 : vector<2x384xf32>
    %68 = math.exp %67 : vector<2x384xf32>
    %cst_24 = arith.constant 1.000000e+00 : f32
    %69 = vector.broadcast %cst_24 : f32 to vector<2x384xf32>
    %70 = arith.addf %69, %68 : vector<2x384xf32>
    %71 = arith.divf %69, %70 : vector<2x384xf32>
    %72 = vector.extract_strided_slice %71 {offsets = [0, 0], sizes = [2, 128], strides = [1, 1]} : vector<2x384xf32> to vector<2x128xf32>
    %73 = vector.extract_strided_slice %71 {offsets = [0, 128], sizes = [2, 128], strides = [1, 1]} : vector<2x384xf32> to vector<2x128xf32>
    %74 = vector.extract_strided_slice %71 {offsets = [0, 256], sizes = [2, 128], strides = [1, 1]} : vector<2x384xf32> to vector<2x128xf32>
    %75 = vector.extract_strided_slice %65 {offsets = [0, 384], sizes = [2, 128], strides = [1, 1]} : vector<2x512xf32> to vector<2x128xf32>
    %76 = math.tanh %75 : vector<2x128xf32>
    %77 = arith.mulf %73, %27 : vector<2x128xf32>
    %78 = arith.mulf %72, %76 : vector<2x128xf32>
    %79 = arith.addf %77, %78 : vector<2x128xf32>
    %80 = math.tanh %79 : vector<2x128xf32>
    %81 = arith.mulf %74, %80 : vector<2x128xf32>
    %c64_i32_25 = arith.constant 64 : i32
    %82 = tpu.dynamic_rotate %52 by %c64_i32_25 dim 1 : vector<2x128xf32>, i32 -> vector<2x128xf32>
    %83 = arith.addf %81, %82 : vector<2x128xf32>
    %c0_26 = arith.constant 0 : index
    %c0_27 = arith.constant 0 : index
    %84 = vector.load %arg4[%c0_26, %c0_27] : memref<128x512xf32, #tpu.memory_space<vmem>>, vector<128x512xf32>
    %cst_28 = arith.constant dense<0.000000e+00> : vector<2x512xf32>
    %85 = tpu.matmul %83, %84, %cst_28 {dimension_numbers = #tpu.dot_dimension_numbers<[1], [0], [0], [1], [0, 0, 1, 1], [], []>} : vector<2x128xf32>, vector<128x512xf32>, vector<2x512xf32> -> vector<2x512xf32>
    %c0_29 = arith.constant 0 : index
    %c0_30 = arith.constant 0 : index
    %86 = vector.load %arg5[%c0_29, %c0_30] : memref<1x512xf32, #tpu.memory_space<vmem>>, vector<1x512xf32>
    %87 = vector.broadcast %86 : vector<1x512xf32> to vector<2x512xf32>
    %88 = arith.addf %85, %87 : vector<2x512xf32>
    %89 = vector.extract_strided_slice %88 {offsets = [0, 0], sizes = [2, 384], strides = [1, 1]} : vector<2x512xf32> to vector<2x384xf32>
    %90 = arith.negf %89 : vector<2x384xf32>
    %91 = math.exp %90 : vector<2x384xf32>
    %cst_31 = arith.constant 1.000000e+00 : f32
    %92 = vector.broadcast %cst_31 : f32 to vector<2x384xf32>
    %93 = arith.addf %92, %91 : vector<2x384xf32>
    %94 = arith.divf %92, %93 : vector<2x384xf32>
    %95 = vector.extract_strided_slice %94 {offsets = [0, 0], sizes = [2, 128], strides = [1, 1]} : vector<2x384xf32> to vector<2x128xf32>
    %96 = vector.extract_strided_slice %94 {offsets = [0, 128], sizes = [2, 128], strides = [1, 1]} : vector<2x384xf32> to vector<2x128xf32>
    %97 = vector.extract_strided_slice %94 {offsets = [0, 256], sizes = [2, 128], strides = [1, 1]} : vector<2x384xf32> to vector<2x128xf32>
    %98 = vector.extract_strided_slice %88 {offsets = [0, 384], sizes = [2, 128], strides = [1, 1]} : vector<2x512xf32> to vector<2x128xf32>
    %99 = math.tanh %98 : vector<2x128xf32>
    %100 = arith.mulf %96, %50 : vector<2x128xf32>
    %101 = arith.mulf %95, %99 : vector<2x128xf32>
    %102 = arith.addf %100, %101 : vector<2x128xf32>
    %103 = math.tanh %102 : vector<2x128xf32>
    %104 = arith.mulf %97, %103 : vector<2x128xf32>
    %c2_i32 = arith.constant 2 : i32
    %105 = arith.index_cast %c2_i32 : i32 to index
    %c0_32 = arith.constant 0 : index
    %c0_33 = arith.constant 0 : index
    %106 = vector.load %arg0[%105, %c0_32, %c0_33] : memref<8x2x1xf32, #tpu.memory_space<vmem>>, vector<1x2x1xf32>
    %107 = vector.shape_cast %106 : vector<1x2x1xf32> to vector<2x1xf32>
    %c0_34 = arith.constant 0 : index
    %c0_35 = arith.constant 0 : index
    %108 = vector.load %arg1[%c0_34, %c0_35] : memref<1x512xf32, #tpu.memory_space<vmem>>, vector<1x512xf32>
    %109 = vector.broadcast %107 : vector<2x1xf32> to vector<2x512xf32>
    %110 = vector.broadcast %108 : vector<1x512xf32> to vector<2x512xf32>
    %111 = arith.mulf %109, %110 : vector<2x512xf32>
    %c0_36 = arith.constant 0 : index
    %c0_37 = arith.constant 0 : index
    %112 = vector.load %arg2[%c0_36, %c0_37] : memref<1x512xf32, #tpu.memory_space<vmem>>, vector<1x512xf32>
    %113 = vector.broadcast %112 : vector<1x512xf32> to vector<2x512xf32>
    %114 = arith.addf %111, %113 : vector<2x512xf32>
    %c0_38 = arith.constant 0 : index
    %c0_39 = arith.constant 0 : index
    %115 = vector.load %arg3[%c0_38, %c0_39] : memref<128x512xf32, #tpu.memory_space<vmem>>, vector<128x512xf32>
    %cst_40 = arith.constant dense<0.000000e+00> : vector<2x512xf32>
    %116 = tpu.matmul %81, %115, %cst_40 {dimension_numbers = #tpu.dot_dimension_numbers<[1], [0], [0], [1], [0, 0, 1, 1], [], []>} : vector<2x128xf32>, vector<128x512xf32>, vector<2x512xf32> -> vector<2x512xf32>
    %117 = arith.addf %114, %116 : vector<2x512xf32>
    %118 = vector.extract_strided_slice %117 {offsets = [0, 0], sizes = [2, 384], strides = [1, 1]} : vector<2x512xf32> to vector<2x384xf32>
    %119 = arith.negf %118 : vector<2x384xf32>
    %120 = math.exp %119 : vector<2x384xf32>
    %cst_41 = arith.constant 1.000000e+00 : f32
    %121 = vector.broadcast %cst_41 : f32 to vector<2x384xf32>
    %122 = arith.addf %121, %120 : vector<2x384xf32>
    %123 = arith.divf %121, %122 : vector<2x384xf32>
    %124 = vector.extract_strided_slice %123 {offsets = [0, 0], sizes = [2, 128], strides = [1, 1]} : vector<2x384xf32> to vector<2x128xf32>
    %125 = vector.extract_strided_slice %123 {offsets = [0, 128], sizes = [2, 128], strides = [1, 1]} : vector<2x384xf32> to vector<2x128xf32>
    %126 = vector.extract_strided_slice %123 {offsets = [0, 256], sizes = [2, 128], strides = [1, 1]} : vector<2x384xf32> to vector<2x128xf32>
    %127 = vector.extract_strided_slice %117 {offsets = [0, 384], sizes = [2, 128], strides = [1, 1]} : vector<2x512xf32> to vector<2x128xf32>
    %128 = math.tanh %127 : vector<2x128xf32>
    %129 = arith.mulf %125, %79 : vector<2x128xf32>
    %130 = arith.mulf %124, %128 : vector<2x128xf32>
    %131 = arith.addf %129, %130 : vector<2x128xf32>
    %132 = math.tanh %131 : vector<2x128xf32>
    %133 = arith.mulf %126, %132 : vector<2x128xf32>
    %c64_i32_42 = arith.constant 64 : i32
    %134 = tpu.dynamic_rotate %104 by %c64_i32_42 dim 1 : vector<2x128xf32>, i32 -> vector<2x128xf32>
    %135 = arith.addf %133, %134 : vector<2x128xf32>
    %c0_43 = arith.constant 0 : index
    %c0_44 = arith.constant 0 : index
    %136 = vector.load %arg4[%c0_43, %c0_44] : memref<128x512xf32, #tpu.memory_space<vmem>>, vector<128x512xf32>
    %cst_45 = arith.constant dense<0.000000e+00> : vector<2x512xf32>
    %137 = tpu.matmul %135, %136, %cst_45 {dimension_numbers = #tpu.dot_dimension_numbers<[1], [0], [0], [1], [0, 0, 1, 1], [], []>} : vector<2x128xf32>, vector<128x512xf32>, vector<2x512xf32> -> vector<2x512xf32>
    %c0_46 = arith.constant 0 : index
    %c0_47 = arith.constant 0 : index
    %138 = vector.load %arg5[%c0_46, %c0_47] : memref<1x512xf32, #tpu.memory_space<vmem>>, vector<1x512xf32>
    %139 = vector.broadcast %138 : vector<1x512xf32> to vector<2x512xf32>
    %140 = arith.addf %137, %139 : vector<2x512xf32>
    %141 = vector.extract_strided_slice %140 {offsets = [0, 0], sizes = [2, 384], strides = [1, 1]} : vector<2x512xf32> to vector<2x384xf32>
    %142 = arith.negf %141 : vector<2x384xf32>
    %143 = math.exp %142 : vector<2x384xf32>
    %cst_48 = arith.constant 1.000000e+00 : f32
    %144 = vector.broadcast %cst_48 : f32 to vector<2x384xf32>
    %145 = arith.addf %144, %143 : vector<2x384xf32>
    %146 = arith.divf %144, %145 : vector<2x384xf32>
    %147 = vector.extract_strided_slice %146 {offsets = [0, 0], sizes = [2, 128], strides = [1, 1]} : vector<2x384xf32> to vector<2x128xf32>
    %148 = vector.extract_strided_slice %146 {offsets = [0, 128], sizes = [2, 128], strides = [1, 1]} : vector<2x384xf32> to vector<2x128xf32>
    %149 = vector.extract_strided_slice %146 {offsets = [0, 256], sizes = [2, 128], strides = [1, 1]} : vector<2x384xf32> to vector<2x128xf32>
    %150 = vector.extract_strided_slice %140 {offsets = [0, 384], sizes = [2, 128], strides = [1, 1]} : vector<2x512xf32> to vector<2x128xf32>
    %151 = math.tanh %150 : vector<2x128xf32>
    %152 = arith.mulf %148, %102 : vector<2x128xf32>
    %153 = arith.mulf %147, %151 : vector<2x128xf32>
    %154 = arith.addf %152, %153 : vector<2x128xf32>
    %155 = math.tanh %154 : vector<2x128xf32>
    %156 = arith.mulf %149, %155 : vector<2x128xf32>
    %c3_i32 = arith.constant 3 : i32
    %157 = arith.index_cast %c3_i32 : i32 to index
    %c0_49 = arith.constant 0 : index
    %c0_50 = arith.constant 0 : index
    %158 = vector.load %arg0[%157, %c0_49, %c0_50] : memref<8x2x1xf32, #tpu.memory_space<vmem>>, vector<1x2x1xf32>
    %159 = vector.shape_cast %158 : vector<1x2x1xf32> to vector<2x1xf32>
    %c0_51 = arith.constant 0 : index
    %c0_52 = arith.constant 0 : index
    %160 = vector.load %arg1[%c0_51, %c0_52] : memref<1x512xf32, #tpu.memory_space<vmem>>, vector<1x512xf32>
    %161 = vector.broadcast %159 : vector<2x1xf32> to vector<2x512xf32>
    %162 = vector.broadcast %160 : vector<1x512xf32> to vector<2x512xf32>
    %163 = arith.mulf %161, %162 : vector<2x512xf32>
    %c0_53 = arith.constant 0 : index
    %c0_54 = arith.constant 0 : index
    %164 = vector.load %arg2[%c0_53, %c0_54] : memref<1x512xf32, #tpu.memory_space<vmem>>, vector<1x512xf32>
    %165 = vector.broadcast %164 : vector<1x512xf32> to vector<2x512xf32>
    %166 = arith.addf %163, %165 : vector<2x512xf32>
    %c0_55 = arith.constant 0 : index
    %c0_56 = arith.constant 0 : index
    %167 = vector.load %arg3[%c0_55, %c0_56] : memref<128x512xf32, #tpu.memory_space<vmem>>, vector<128x512xf32>
    %cst_57 = arith.constant dense<0.000000e+00> : vector<2x512xf32>
    %168 = tpu.matmul %133, %167, %cst_57 {dimension_numbers = #tpu.dot_dimension_numbers<[1], [0], [0], [1], [0, 0, 1, 1], [], []>} : vector<2x128xf32>, vector<128x512xf32>, vector<2x512xf32> -> vector<2x512xf32>
    %169 = arith.addf %166, %168 : vector<2x512xf32>
    %170 = vector.extract_strided_slice %169 {offsets = [0, 0], sizes = [2, 384], strides = [1, 1]} : vector<2x512xf32> to vector<2x384xf32>
    %171 = arith.negf %170 : vector<2x384xf32>
    %172 = math.exp %171 : vector<2x384xf32>
    %cst_58 = arith.constant 1.000000e+00 : f32
    %173 = vector.broadcast %cst_58 : f32 to vector<2x384xf32>
    %174 = arith.addf %173, %172 : vector<2x384xf32>
    %175 = arith.divf %173, %174 : vector<2x384xf32>
    %176 = vector.extract_strided_slice %175 {offsets = [0, 0], sizes = [2, 128], strides = [1, 1]} : vector<2x384xf32> to vector<2x128xf32>
    %177 = vector.extract_strided_slice %175 {offsets = [0, 128], sizes = [2, 128], strides = [1, 1]} : vector<2x384xf32> to vector<2x128xf32>
    %178 = vector.extract_strided_slice %175 {offsets = [0, 256], sizes = [2, 128], strides = [1, 1]} : vector<2x384xf32> to vector<2x128xf32>
    %179 = vector.extract_strided_slice %169 {offsets = [0, 384], sizes = [2, 128], strides = [1, 1]} : vector<2x512xf32> to vector<2x128xf32>
    %180 = math.tanh %179 : vector<2x128xf32>
    %181 = arith.mulf %177, %131 : vector<2x128xf32>
    %182 = arith.mulf %176, %180 : vector<2x128xf32>
    %183 = arith.addf %181, %182 : vector<2x128xf32>
    %184 = math.tanh %183 : vector<2x128xf32>
    %185 = arith.mulf %178, %184 : vector<2x128xf32>
    %c64_i32_59 = arith.constant 64 : i32
    %186 = tpu.dynamic_rotate %156 by %c64_i32_59 dim 1 : vector<2x128xf32>, i32 -> vector<2x128xf32>
    %187 = arith.addf %185, %186 : vector<2x128xf32>
    %c0_60 = arith.constant 0 : index
    %c0_61 = arith.constant 0 : index
    %188 = vector.load %arg4[%c0_60, %c0_61] : memref<128x512xf32, #tpu.memory_space<vmem>>, vector<128x512xf32>
    %cst_62 = arith.constant dense<0.000000e+00> : vector<2x512xf32>
    %189 = tpu.matmul %187, %188, %cst_62 {dimension_numbers = #tpu.dot_dimension_numbers<[1], [0], [0], [1], [0, 0, 1, 1], [], []>} : vector<2x128xf32>, vector<128x512xf32>, vector<2x512xf32> -> vector<2x512xf32>
    %c0_63 = arith.constant 0 : index
    %c0_64 = arith.constant 0 : index
    %190 = vector.load %arg5[%c0_63, %c0_64] : memref<1x512xf32, #tpu.memory_space<vmem>>, vector<1x512xf32>
    %191 = vector.broadcast %190 : vector<1x512xf32> to vector<2x512xf32>
    %192 = arith.addf %189, %191 : vector<2x512xf32>
    %193 = vector.extract_strided_slice %192 {offsets = [0, 0], sizes = [2, 384], strides = [1, 1]} : vector<2x512xf32> to vector<2x384xf32>
    %194 = arith.negf %193 : vector<2x384xf32>
    %195 = math.exp %194 : vector<2x384xf32>
    %cst_65 = arith.constant 1.000000e+00 : f32
    %196 = vector.broadcast %cst_65 : f32 to vector<2x384xf32>
    %197 = arith.addf %196, %195 : vector<2x384xf32>
    %198 = arith.divf %196, %197 : vector<2x384xf32>
    %199 = vector.extract_strided_slice %198 {offsets = [0, 0], sizes = [2, 128], strides = [1, 1]} : vector<2x384xf32> to vector<2x128xf32>
    %200 = vector.extract_strided_slice %198 {offsets = [0, 128], sizes = [2, 128], strides = [1, 1]} : vector<2x384xf32> to vector<2x128xf32>
    %201 = vector.extract_strided_slice %198 {offsets = [0, 256], sizes = [2, 128], strides = [1, 1]} : vector<2x384xf32> to vector<2x128xf32>
    %202 = vector.extract_strided_slice %192 {offsets = [0, 384], sizes = [2, 128], strides = [1, 1]} : vector<2x512xf32> to vector<2x128xf32>
    %203 = math.tanh %202 : vector<2x128xf32>
    %204 = arith.mulf %200, %154 : vector<2x128xf32>
    %205 = arith.mulf %199, %203 : vector<2x128xf32>
    %206 = arith.addf %204, %205 : vector<2x128xf32>
    %207 = math.tanh %206 : vector<2x128xf32>
    %208 = arith.mulf %201, %207 : vector<2x128xf32>
    %c4_i32 = arith.constant 4 : i32
    %209 = arith.index_cast %c4_i32 : i32 to index
    %c0_66 = arith.constant 0 : index
    %c0_67 = arith.constant 0 : index
    %210 = vector.load %arg0[%209, %c0_66, %c0_67] : memref<8x2x1xf32, #tpu.memory_space<vmem>>, vector<1x2x1xf32>
    %211 = vector.shape_cast %210 : vector<1x2x1xf32> to vector<2x1xf32>
    %c0_68 = arith.constant 0 : index
    %c0_69 = arith.constant 0 : index
    %212 = vector.load %arg1[%c0_68, %c0_69] : memref<1x512xf32, #tpu.memory_space<vmem>>, vector<1x512xf32>
    %213 = vector.broadcast %211 : vector<2x1xf32> to vector<2x512xf32>
    %214 = vector.broadcast %212 : vector<1x512xf32> to vector<2x512xf32>
    %215 = arith.mulf %213, %214 : vector<2x512xf32>
    %c0_70 = arith.constant 0 : index
    %c0_71 = arith.constant 0 : index
    %216 = vector.load %arg2[%c0_70, %c0_71] : memref<1x512xf32, #tpu.memory_space<vmem>>, vector<1x512xf32>
    %217 = vector.broadcast %216 : vector<1x512xf32> to vector<2x512xf32>
    %218 = arith.addf %215, %217 : vector<2x512xf32>
    %c0_72 = arith.constant 0 : index
    %c0_73 = arith.constant 0 : index
    %219 = vector.load %arg3[%c0_72, %c0_73] : memref<128x512xf32, #tpu.memory_space<vmem>>, vector<128x512xf32>
    %cst_74 = arith.constant dense<0.000000e+00> : vector<2x512xf32>
    %220 = tpu.matmul %185, %219, %cst_74 {dimension_numbers = #tpu.dot_dimension_numbers<[1], [0], [0], [1], [0, 0, 1, 1], [], []>} : vector<2x128xf32>, vector<128x512xf32>, vector<2x512xf32> -> vector<2x512xf32>
    %221 = arith.addf %218, %220 : vector<2x512xf32>
    %222 = vector.extract_strided_slice %221 {offsets = [0, 0], sizes = [2, 384], strides = [1, 1]} : vector<2x512xf32> to vector<2x384xf32>
    %223 = arith.negf %222 : vector<2x384xf32>
    %224 = math.exp %223 : vector<2x384xf32>
    %cst_75 = arith.constant 1.000000e+00 : f32
    %225 = vector.broadcast %cst_75 : f32 to vector<2x384xf32>
    %226 = arith.addf %225, %224 : vector<2x384xf32>
    %227 = arith.divf %225, %226 : vector<2x384xf32>
    %228 = vector.extract_strided_slice %227 {offsets = [0, 0], sizes = [2, 128], strides = [1, 1]} : vector<2x384xf32> to vector<2x128xf32>
    %229 = vector.extract_strided_slice %227 {offsets = [0, 128], sizes = [2, 128], strides = [1, 1]} : vector<2x384xf32> to vector<2x128xf32>
    %230 = vector.extract_strided_slice %227 {offsets = [0, 256], sizes = [2, 128], strides = [1, 1]} : vector<2x384xf32> to vector<2x128xf32>
    %231 = vector.extract_strided_slice %221 {offsets = [0, 384], sizes = [2, 128], strides = [1, 1]} : vector<2x512xf32> to vector<2x128xf32>
    %232 = math.tanh %231 : vector<2x128xf32>
    %233 = arith.mulf %229, %183 : vector<2x128xf32>
    %234 = arith.mulf %228, %232 : vector<2x128xf32>
    %235 = arith.addf %233, %234 : vector<2x128xf32>
    %236 = math.tanh %235 : vector<2x128xf32>
    %237 = arith.mulf %230, %236 : vector<2x128xf32>
    %c64_i32_76 = arith.constant 64 : i32
    %238 = tpu.dynamic_rotate %208 by %c64_i32_76 dim 1 : vector<2x128xf32>, i32 -> vector<2x128xf32>
    %239 = arith.addf %237, %238 : vector<2x128xf32>
    %c0_77 = arith.constant 0 : index
    %c0_78 = arith.constant 0 : index
    %240 = vector.load %arg4[%c0_77, %c0_78] : memref<128x512xf32, #tpu.memory_space<vmem>>, vector<128x512xf32>
    %cst_79 = arith.constant dense<0.000000e+00> : vector<2x512xf32>
    %241 = tpu.matmul %239, %240, %cst_79 {dimension_numbers = #tpu.dot_dimension_numbers<[1], [0], [0], [1], [0, 0, 1, 1], [], []>} : vector<2x128xf32>, vector<128x512xf32>, vector<2x512xf32> -> vector<2x512xf32>
    %c0_80 = arith.constant 0 : index
    %c0_81 = arith.constant 0 : index
    %242 = vector.load %arg5[%c0_80, %c0_81] : memref<1x512xf32, #tpu.memory_space<vmem>>, vector<1x512xf32>
    %243 = vector.broadcast %242 : vector<1x512xf32> to vector<2x512xf32>
    %244 = arith.addf %241, %243 : vector<2x512xf32>
    %245 = vector.extract_strided_slice %244 {offsets = [0, 0], sizes = [2, 384], strides = [1, 1]} : vector<2x512xf32> to vector<2x384xf32>
    %246 = arith.negf %245 : vector<2x384xf32>
    %247 = math.exp %246 : vector<2x384xf32>
    %cst_82 = arith.constant 1.000000e+00 : f32
    %248 = vector.broadcast %cst_82 : f32 to vector<2x384xf32>
    %249 = arith.addf %248, %247 : vector<2x384xf32>
    %250 = arith.divf %248, %249 : vector<2x384xf32>
    %251 = vector.extract_strided_slice %250 {offsets = [0, 0], sizes = [2, 128], strides = [1, 1]} : vector<2x384xf32> to vector<2x128xf32>
    %252 = vector.extract_strided_slice %250 {offsets = [0, 128], sizes = [2, 128], strides = [1, 1]} : vector<2x384xf32> to vector<2x128xf32>
    %253 = vector.extract_strided_slice %250 {offsets = [0, 256], sizes = [2, 128], strides = [1, 1]} : vector<2x384xf32> to vector<2x128xf32>
    %254 = vector.extract_strided_slice %244 {offsets = [0, 384], sizes = [2, 128], strides = [1, 1]} : vector<2x512xf32> to vector<2x128xf32>
    %255 = math.tanh %254 : vector<2x128xf32>
    %256 = arith.mulf %252, %206 : vector<2x128xf32>
    %257 = arith.mulf %251, %255 : vector<2x128xf32>
    %258 = arith.addf %256, %257 : vector<2x128xf32>
    %259 = math.tanh %258 : vector<2x128xf32>
    %260 = arith.mulf %253, %259 : vector<2x128xf32>
    %c5_i32 = arith.constant 5 : i32
    %261 = arith.index_cast %c5_i32 : i32 to index
    %c0_83 = arith.constant 0 : index
    %c0_84 = arith.constant 0 : index
    %262 = vector.load %arg0[%261, %c0_83, %c0_84] : memref<8x2x1xf32, #tpu.memory_space<vmem>>, vector<1x2x1xf32>
    %263 = vector.shape_cast %262 : vector<1x2x1xf32> to vector<2x1xf32>
    %c0_85 = arith.constant 0 : index
    %c0_86 = arith.constant 0 : index
    %264 = vector.load %arg1[%c0_85, %c0_86] : memref<1x512xf32, #tpu.memory_space<vmem>>, vector<1x512xf32>
    %265 = vector.broadcast %263 : vector<2x1xf32> to vector<2x512xf32>
    %266 = vector.broadcast %264 : vector<1x512xf32> to vector<2x512xf32>
    %267 = arith.mulf %265, %266 : vector<2x512xf32>
    %c0_87 = arith.constant 0 : index
    %c0_88 = arith.constant 0 : index
    %268 = vector.load %arg2[%c0_87, %c0_88] : memref<1x512xf32, #tpu.memory_space<vmem>>, vector<1x512xf32>
    %269 = vector.broadcast %268 : vector<1x512xf32> to vector<2x512xf32>
    %270 = arith.addf %267, %269 : vector<2x512xf32>
    %c0_89 = arith.constant 0 : index
    %c0_90 = arith.constant 0 : index
    %271 = vector.load %arg3[%c0_89, %c0_90] : memref<128x512xf32, #tpu.memory_space<vmem>>, vector<128x512xf32>
    %cst_91 = arith.constant dense<0.000000e+00> : vector<2x512xf32>
    %272 = tpu.matmul %237, %271, %cst_91 {dimension_numbers = #tpu.dot_dimension_numbers<[1], [0], [0], [1], [0, 0, 1, 1], [], []>} : vector<2x128xf32>, vector<128x512xf32>, vector<2x512xf32> -> vector<2x512xf32>
    %273 = arith.addf %270, %272 : vector<2x512xf32>
    %274 = vector.extract_strided_slice %273 {offsets = [0, 0], sizes = [2, 384], strides = [1, 1]} : vector<2x512xf32> to vector<2x384xf32>
    %275 = arith.negf %274 : vector<2x384xf32>
    %276 = math.exp %275 : vector<2x384xf32>
    %cst_92 = arith.constant 1.000000e+00 : f32
    %277 = vector.broadcast %cst_92 : f32 to vector<2x384xf32>
    %278 = arith.addf %277, %276 : vector<2x384xf32>
    %279 = arith.divf %277, %278 : vector<2x384xf32>
    %280 = vector.extract_strided_slice %279 {offsets = [0, 0], sizes = [2, 128], strides = [1, 1]} : vector<2x384xf32> to vector<2x128xf32>
    %281 = vector.extract_strided_slice %279 {offsets = [0, 128], sizes = [2, 128], strides = [1, 1]} : vector<2x384xf32> to vector<2x128xf32>
    %282 = vector.extract_strided_slice %279 {offsets = [0, 256], sizes = [2, 128], strides = [1, 1]} : vector<2x384xf32> to vector<2x128xf32>
    %283 = vector.extract_strided_slice %273 {offsets = [0, 384], sizes = [2, 128], strides = [1, 1]} : vector<2x512xf32> to vector<2x128xf32>
    %284 = math.tanh %283 : vector<2x128xf32>
    %285 = arith.mulf %281, %235 : vector<2x128xf32>
    %286 = arith.mulf %280, %284 : vector<2x128xf32>
    %287 = arith.addf %285, %286 : vector<2x128xf32>
    %288 = math.tanh %287 : vector<2x128xf32>
    %289 = arith.mulf %282, %288 : vector<2x128xf32>
    %c64_i32_93 = arith.constant 64 : i32
    %290 = tpu.dynamic_rotate %260 by %c64_i32_93 dim 1 : vector<2x128xf32>, i32 -> vector<2x128xf32>
    %291 = arith.addf %289, %290 : vector<2x128xf32>
    %c0_94 = arith.constant 0 : index
    %c0_95 = arith.constant 0 : index
    %292 = vector.load %arg4[%c0_94, %c0_95] : memref<128x512xf32, #tpu.memory_space<vmem>>, vector<128x512xf32>
    %cst_96 = arith.constant dense<0.000000e+00> : vector<2x512xf32>
    %293 = tpu.matmul %291, %292, %cst_96 {dimension_numbers = #tpu.dot_dimension_numbers<[1], [0], [0], [1], [0, 0, 1, 1], [], []>} : vector<2x128xf32>, vector<128x512xf32>, vector<2x512xf32> -> vector<2x512xf32>
    %c0_97 = arith.constant 0 : index
    %c0_98 = arith.constant 0 : index
    %294 = vector.load %arg5[%c0_97, %c0_98] : memref<1x512xf32, #tpu.memory_space<vmem>>, vector<1x512xf32>
    %295 = vector.broadcast %294 : vector<1x512xf32> to vector<2x512xf32>
    %296 = arith.addf %293, %295 : vector<2x512xf32>
    %297 = vector.extract_strided_slice %296 {offsets = [0, 0], sizes = [2, 384], strides = [1, 1]} : vector<2x512xf32> to vector<2x384xf32>
    %298 = arith.negf %297 : vector<2x384xf32>
    %299 = math.exp %298 : vector<2x384xf32>
    %cst_99 = arith.constant 1.000000e+00 : f32
    %300 = vector.broadcast %cst_99 : f32 to vector<2x384xf32>
    %301 = arith.addf %300, %299 : vector<2x384xf32>
    %302 = arith.divf %300, %301 : vector<2x384xf32>
    %303 = vector.extract_strided_slice %302 {offsets = [0, 0], sizes = [2, 128], strides = [1, 1]} : vector<2x384xf32> to vector<2x128xf32>
    %304 = vector.extract_strided_slice %302 {offsets = [0, 128], sizes = [2, 128], strides = [1, 1]} : vector<2x384xf32> to vector<2x128xf32>
    %305 = vector.extract_strided_slice %302 {offsets = [0, 256], sizes = [2, 128], strides = [1, 1]} : vector<2x384xf32> to vector<2x128xf32>
    %306 = vector.extract_strided_slice %296 {offsets = [0, 384], sizes = [2, 128], strides = [1, 1]} : vector<2x512xf32> to vector<2x128xf32>
    %307 = math.tanh %306 : vector<2x128xf32>
    %308 = arith.mulf %304, %258 : vector<2x128xf32>
    %309 = arith.mulf %303, %307 : vector<2x128xf32>
    %310 = arith.addf %308, %309 : vector<2x128xf32>
    %311 = math.tanh %310 : vector<2x128xf32>
    %312 = arith.mulf %305, %311 : vector<2x128xf32>
    %c6_i32 = arith.constant 6 : i32
    %313 = arith.index_cast %c6_i32 : i32 to index
    %c0_100 = arith.constant 0 : index
    %c0_101 = arith.constant 0 : index
    %314 = vector.load %arg0[%313, %c0_100, %c0_101] : memref<8x2x1xf32, #tpu.memory_space<vmem>>, vector<1x2x1xf32>
    %315 = vector.shape_cast %314 : vector<1x2x1xf32> to vector<2x1xf32>
    %c0_102 = arith.constant 0 : index
    %c0_103 = arith.constant 0 : index
    %316 = vector.load %arg1[%c0_102, %c0_103] : memref<1x512xf32, #tpu.memory_space<vmem>>, vector<1x512xf32>
    %317 = vector.broadcast %315 : vector<2x1xf32> to vector<2x512xf32>
    %318 = vector.broadcast %316 : vector<1x512xf32> to vector<2x512xf32>
    %319 = arith.mulf %317, %318 : vector<2x512xf32>
    %c0_104 = arith.constant 0 : index
    %c0_105 = arith.constant 0 : index
    %320 = vector.load %arg2[%c0_104, %c0_105] : memref<1x512xf32, #tpu.memory_space<vmem>>, vector<1x512xf32>
    %321 = vector.broadcast %320 : vector<1x512xf32> to vector<2x512xf32>
    %322 = arith.addf %319, %321 : vector<2x512xf32>
    %c0_106 = arith.constant 0 : index
    %c0_107 = arith.constant 0 : index
    %323 = vector.load %arg3[%c0_106, %c0_107] : memref<128x512xf32, #tpu.memory_space<vmem>>, vector<128x512xf32>
    %cst_108 = arith.constant dense<0.000000e+00> : vector<2x512xf32>
    %324 = tpu.matmul %289, %323, %cst_108 {dimension_numbers = #tpu.dot_dimension_numbers<[1], [0], [0], [1], [0, 0, 1, 1], [], []>} : vector<2x128xf32>, vector<128x512xf32>, vector<2x512xf32> -> vector<2x512xf32>
    %325 = arith.addf %322, %324 : vector<2x512xf32>
    %326 = vector.extract_strided_slice %325 {offsets = [0, 0], sizes = [2, 384], strides = [1, 1]} : vector<2x512xf32> to vector<2x384xf32>
    %327 = arith.negf %326 : vector<2x384xf32>
    %328 = math.exp %327 : vector<2x384xf32>
    %cst_109 = arith.constant 1.000000e+00 : f32
    %329 = vector.broadcast %cst_109 : f32 to vector<2x384xf32>
    %330 = arith.addf %329, %328 : vector<2x384xf32>
    %331 = arith.divf %329, %330 : vector<2x384xf32>
    %332 = vector.extract_strided_slice %331 {offsets = [0, 0], sizes = [2, 128], strides = [1, 1]} : vector<2x384xf32> to vector<2x128xf32>
    %333 = vector.extract_strided_slice %331 {offsets = [0, 128], sizes = [2, 128], strides = [1, 1]} : vector<2x384xf32> to vector<2x128xf32>
    %334 = vector.extract_strided_slice %331 {offsets = [0, 256], sizes = [2, 128], strides = [1, 1]} : vector<2x384xf32> to vector<2x128xf32>
    %335 = vector.extract_strided_slice %325 {offsets = [0, 384], sizes = [2, 128], strides = [1, 1]} : vector<2x512xf32> to vector<2x128xf32>
    %336 = math.tanh %335 : vector<2x128xf32>
    %337 = arith.mulf %333, %287 : vector<2x128xf32>
    %338 = arith.mulf %332, %336 : vector<2x128xf32>
    %339 = arith.addf %337, %338 : vector<2x128xf32>
    %340 = math.tanh %339 : vector<2x128xf32>
    %341 = arith.mulf %334, %340 : vector<2x128xf32>
    %c64_i32_110 = arith.constant 64 : i32
    %342 = tpu.dynamic_rotate %312 by %c64_i32_110 dim 1 : vector<2x128xf32>, i32 -> vector<2x128xf32>
    %343 = arith.addf %341, %342 : vector<2x128xf32>
    %c0_111 = arith.constant 0 : index
    %c0_112 = arith.constant 0 : index
    %344 = vector.load %arg4[%c0_111, %c0_112] : memref<128x512xf32, #tpu.memory_space<vmem>>, vector<128x512xf32>
    %cst_113 = arith.constant dense<0.000000e+00> : vector<2x512xf32>
    %345 = tpu.matmul %343, %344, %cst_113 {dimension_numbers = #tpu.dot_dimension_numbers<[1], [0], [0], [1], [0, 0, 1, 1], [], []>} : vector<2x128xf32>, vector<128x512xf32>, vector<2x512xf32> -> vector<2x512xf32>
    %c0_114 = arith.constant 0 : index
    %c0_115 = arith.constant 0 : index
    %346 = vector.load %arg5[%c0_114, %c0_115] : memref<1x512xf32, #tpu.memory_space<vmem>>, vector<1x512xf32>
    %347 = vector.broadcast %346 : vector<1x512xf32> to vector<2x512xf32>
    %348 = arith.addf %345, %347 : vector<2x512xf32>
    %349 = vector.extract_strided_slice %348 {offsets = [0, 0], sizes = [2, 384], strides = [1, 1]} : vector<2x512xf32> to vector<2x384xf32>
    %350 = arith.negf %349 : vector<2x384xf32>
    %351 = math.exp %350 : vector<2x384xf32>
    %cst_116 = arith.constant 1.000000e+00 : f32
    %352 = vector.broadcast %cst_116 : f32 to vector<2x384xf32>
    %353 = arith.addf %352, %351 : vector<2x384xf32>
    %354 = arith.divf %352, %353 : vector<2x384xf32>
    %355 = vector.extract_strided_slice %354 {offsets = [0, 0], sizes = [2, 128], strides = [1, 1]} : vector<2x384xf32> to vector<2x128xf32>
    %356 = vector.extract_strided_slice %354 {offsets = [0, 128], sizes = [2, 128], strides = [1, 1]} : vector<2x384xf32> to vector<2x128xf32>
    %357 = vector.extract_strided_slice %354 {offsets = [0, 256], sizes = [2, 128], strides = [1, 1]} : vector<2x384xf32> to vector<2x128xf32>
    %358 = vector.extract_strided_slice %348 {offsets = [0, 384], sizes = [2, 128], strides = [1, 1]} : vector<2x512xf32> to vector<2x128xf32>
    %359 = math.tanh %358 : vector<2x128xf32>
    %360 = arith.mulf %356, %310 : vector<2x128xf32>
    %361 = arith.mulf %355, %359 : vector<2x128xf32>
    %362 = arith.addf %360, %361 : vector<2x128xf32>
    %363 = math.tanh %362 : vector<2x128xf32>
    %364 = arith.mulf %357, %363 : vector<2x128xf32>
    %c7_i32 = arith.constant 7 : i32
    %365 = arith.index_cast %c7_i32 : i32 to index
    %c0_117 = arith.constant 0 : index
    %c0_118 = arith.constant 0 : index
    %366 = vector.load %arg0[%365, %c0_117, %c0_118] : memref<8x2x1xf32, #tpu.memory_space<vmem>>, vector<1x2x1xf32>
    %367 = vector.shape_cast %366 : vector<1x2x1xf32> to vector<2x1xf32>
    %c0_119 = arith.constant 0 : index
    %c0_120 = arith.constant 0 : index
    %368 = vector.load %arg1[%c0_119, %c0_120] : memref<1x512xf32, #tpu.memory_space<vmem>>, vector<1x512xf32>
    %369 = vector.broadcast %367 : vector<2x1xf32> to vector<2x512xf32>
    %370 = vector.broadcast %368 : vector<1x512xf32> to vector<2x512xf32>
    %371 = arith.mulf %369, %370 : vector<2x512xf32>
    %c0_121 = arith.constant 0 : index
    %c0_122 = arith.constant 0 : index
    %372 = vector.load %arg2[%c0_121, %c0_122] : memref<1x512xf32, #tpu.memory_space<vmem>>, vector<1x512xf32>
    %373 = vector.broadcast %372 : vector<1x512xf32> to vector<2x512xf32>
    %374 = arith.addf %371, %373 : vector<2x512xf32>
    %c0_123 = arith.constant 0 : index
    %c0_124 = arith.constant 0 : index
    %375 = vector.load %arg3[%c0_123, %c0_124] : memref<128x512xf32, #tpu.memory_space<vmem>>, vector<128x512xf32>
    %cst_125 = arith.constant dense<0.000000e+00> : vector<2x512xf32>
    %376 = tpu.matmul %341, %375, %cst_125 {dimension_numbers = #tpu.dot_dimension_numbers<[1], [0], [0], [1], [0, 0, 1, 1], [], []>} : vector<2x128xf32>, vector<128x512xf32>, vector<2x512xf32> -> vector<2x512xf32>
    %377 = arith.addf %374, %376 : vector<2x512xf32>
    %378 = vector.extract_strided_slice %377 {offsets = [0, 0], sizes = [2, 384], strides = [1, 1]} : vector<2x512xf32> to vector<2x384xf32>
    %379 = arith.negf %378 : vector<2x384xf32>
    %380 = math.exp %379 : vector<2x384xf32>
    %cst_126 = arith.constant 1.000000e+00 : f32
    %381 = vector.broadcast %cst_126 : f32 to vector<2x384xf32>
    %382 = arith.addf %381, %380 : vector<2x384xf32>
    %383 = arith.divf %381, %382 : vector<2x384xf32>
    %384 = vector.extract_strided_slice %383 {offsets = [0, 0], sizes = [2, 128], strides = [1, 1]} : vector<2x384xf32> to vector<2x128xf32>
    %385 = vector.extract_strided_slice %383 {offsets = [0, 128], sizes = [2, 128], strides = [1, 1]} : vector<2x384xf32> to vector<2x128xf32>
    %386 = vector.extract_strided_slice %383 {offsets = [0, 256], sizes = [2, 128], strides = [1, 1]} : vector<2x384xf32> to vector<2x128xf32>
    %387 = vector.extract_strided_slice %377 {offsets = [0, 384], sizes = [2, 128], strides = [1, 1]} : vector<2x512xf32> to vector<2x128xf32>
    %388 = math.tanh %387 : vector<2x128xf32>
    %389 = arith.mulf %385, %339 : vector<2x128xf32>
    %390 = arith.mulf %384, %388 : vector<2x128xf32>
    %391 = arith.addf %389, %390 : vector<2x128xf32>
    %392 = math.tanh %391 : vector<2x128xf32>
    %393 = arith.mulf %386, %392 : vector<2x128xf32>
    %c64_i32_127 = arith.constant 64 : i32
    %394 = tpu.dynamic_rotate %364 by %c64_i32_127 dim 1 : vector<2x128xf32>, i32 -> vector<2x128xf32>
    %395 = arith.addf %393, %394 : vector<2x128xf32>
    %c0_128 = arith.constant 0 : index
    %c0_129 = arith.constant 0 : index
    %396 = vector.load %arg4[%c0_128, %c0_129] : memref<128x512xf32, #tpu.memory_space<vmem>>, vector<128x512xf32>
    %cst_130 = arith.constant dense<0.000000e+00> : vector<2x512xf32>
    %397 = tpu.matmul %395, %396, %cst_130 {dimension_numbers = #tpu.dot_dimension_numbers<[1], [0], [0], [1], [0, 0, 1, 1], [], []>} : vector<2x128xf32>, vector<128x512xf32>, vector<2x512xf32> -> vector<2x512xf32>
    %c0_131 = arith.constant 0 : index
    %c0_132 = arith.constant 0 : index
    %398 = vector.load %arg5[%c0_131, %c0_132] : memref<1x512xf32, #tpu.memory_space<vmem>>, vector<1x512xf32>
    %399 = vector.broadcast %398 : vector<1x512xf32> to vector<2x512xf32>
    %400 = arith.addf %397, %399 : vector<2x512xf32>
    %401 = vector.extract_strided_slice %400 {offsets = [0, 0], sizes = [2, 384], strides = [1, 1]} : vector<2x512xf32> to vector<2x384xf32>
    %402 = arith.negf %401 : vector<2x384xf32>
    %403 = math.exp %402 : vector<2x384xf32>
    %cst_133 = arith.constant 1.000000e+00 : f32
    %404 = vector.broadcast %cst_133 : f32 to vector<2x384xf32>
    %405 = arith.addf %404, %403 : vector<2x384xf32>
    %406 = arith.divf %404, %405 : vector<2x384xf32>
    %407 = vector.extract_strided_slice %406 {offsets = [0, 0], sizes = [2, 128], strides = [1, 1]} : vector<2x384xf32> to vector<2x128xf32>
    %408 = vector.extract_strided_slice %406 {offsets = [0, 128], sizes = [2, 128], strides = [1, 1]} : vector<2x384xf32> to vector<2x128xf32>
    %409 = vector.extract_strided_slice %406 {offsets = [0, 256], sizes = [2, 128], strides = [1, 1]} : vector<2x384xf32> to vector<2x128xf32>
    %410 = vector.extract_strided_slice %400 {offsets = [0, 384], sizes = [2, 128], strides = [1, 1]} : vector<2x512xf32> to vector<2x128xf32>
    %411 = math.tanh %410 : vector<2x128xf32>
    %412 = arith.mulf %408, %362 : vector<2x128xf32>
    %413 = arith.mulf %407, %411 : vector<2x128xf32>
    %414 = arith.addf %412, %413 : vector<2x128xf32>
    %415 = math.tanh %414 : vector<2x128xf32>
    %416 = arith.mulf %409, %415 : vector<2x128xf32>
    %c8_i32 = arith.constant 8 : i32
    %c0_134 = arith.constant 0 : index
    %c0_135 = arith.constant 0 : index
    %417 = vector.load %arg6[%c0_134, %c0_135] : memref<128x128xf32, #tpu.memory_space<vmem>>, vector<128x128xf32>
    %cst_136 = arith.constant dense<0.000000e+00> : vector<2x128xf32>
    %418 = tpu.matmul %416, %417, %cst_136 {dimension_numbers = #tpu.dot_dimension_numbers<[1], [0], [0], [1], [0, 0, 1, 1], [], []>} : vector<2x128xf32>, vector<128x128xf32>, vector<2x128xf32> -> vector<2x128xf32>
    %c0_137 = arith.constant 0 : index
    %c0_138 = arith.constant 0 : index
    %419 = vector.load %arg7[%c0_137, %c0_138] : memref<1x128xf32, #tpu.memory_space<vmem>>, vector<1x128xf32>
    %420 = vector.broadcast %419 : vector<1x128xf32> to vector<2x128xf32>
    %421 = arith.addf %418, %420 : vector<2x128xf32>
    %c0_139 = arith.constant 0 : index
    %c0_140 = arith.constant 0 : index
    %422 = vector.load %arg8[%c0_139, %c0_140] : memref<2x128xf32, #tpu.memory_space<vmem>>, vector<2x128xf32>
    tpu.vector_store %arg8[%c0_139, %c0_140], %421 {strides = array<i32>} : memref<2x128xf32, #tpu.memory_space<vmem>>, vector<2x128xf32>,
    return
  }
}

</mosaic_0001>

<llo_original>
// kernel: seq_lstm_forward.1
$region0: #{seq_lstm_forward.1}
  #allocation0 [shape = 'u32[]', space=smem, size = 0x4, offset = 0x4, fixed_abs, tag = 'smem constant byte address 0x4 - core index']
  #allocation1 [shape = 'u32[144,128]{1,0:T(1,128)}', space=vmem, size = 0x12000, scoped, tag = 'internal scratch']
  %s0 = inlined_call_operand.vmem [shape: f32[8,2,1], index: 0, kind: input, shape index: {}]
  %s1 = inlined_call_operand.vmem [shape: f32[1,512], index: 1, kind: input, shape index: {}]
  %s2 = inlined_call_operand.vmem [shape: f32[1,512], index: 2, kind: input, shape index: {}]
  %s3 = inlined_call_operand.hbm [shape: f32[128,512], index: 3, kind: input, shape index: {}]
  %s4 = inlined_call_operand.hbm [shape: f32[128,512], index: 4, kind: input, shape index: {}]
  %s5 = inlined_call_operand.vmem [shape: f32[1,512], index: 5, kind: input, shape index: {}]
  %s6 = inlined_call_operand.hbm [shape: f32[128,128], index: 6, kind: input, shape index: {}]
  %s7 = inlined_call_operand.vmem [shape: f32[1,128], index: 7, kind: input, shape index: {}]
  %s8 = inlined_call_operand.hbm [shape: f32[2,128], index: 8, kind: output, shape index: {}]
  %s9 = sld [smem:[#allocation0]]
  $region54: #{seq_lstm_forward.1} parent=0
    _
  %s11 = ssub.s32 1, %s9
  %s12 = scalar_select 0, %s11, %s9
  $region1: #{seq_lstm_forward.1} parent=0
    #allocation2 [shape = 'u8[262144]{0}', space=vmem, size = 0x40000, scoped, tag = 'input window, operand 3, single buffered']
    #allocation3 [shape = 's32[1]{0}', space=sflag, size = 0x4, scoped, tag = 'scoped memory for seq_lstm_forward.1']
    #allocation4 [shape = 's32[1]{0}', space=sflag, size = 0x4, scoped, tag = 'scoped memory for seq_lstm_forward.1']
    #allocation5 [shape = 'u8[262144]{0}', space=vmem, size = 0x40000, scoped, tag = 'input window, operand 4, single buffered']
    #allocation6 [shape = 's32[1]{0}', space=sflag, size = 0x4, scoped, tag = 'scoped memory for seq_lstm_forward.1']
    #allocation7 [shape = 'u8[65536]{0}', space=vmem, size = 0x10000, scoped, tag = 'input window, operand 6, single buffered']
    #allocation8 [shape = 'u8[1024]{0}', space=vmem, size = 0x400, scoped, tag = 'output window, operand 0, single buffered']
    %13 = vsyncpa [#allocation3], 0
    %14 = vsyncpa [#allocation6], 0
    %15 = vsyncpa [#allocation4], 0
    // Predicated region
    $region2: #{seq_lstm_forward.1} parent=1 // pred_check
      _
    $region3: #{seq_lstm_forward.1} parent=1 // pred_check_branch
      %17 = sbr.rel (0) target = $region5
    $region4: #{seq_lstm_forward.1} parent=1 // pred_region
      _
    $region5: #{seq_lstm_forward.1} parent=1 // pred_fallthru
      _
    // Predicated region
    $region6: #{seq_lstm_forward.1} parent=1 // pred_check
      _
    $region7: #{seq_lstm_forward.1} parent=1 // pred_check_branch
      %19 = sbr.rel (0) target = $region9
    $region8: #{seq_lstm_forward.1} parent=1 // pred_region
      _
    $region9: #{seq_lstm_forward.1} parent=1 // pred_fallthru
      _
    // Predicated region
    $region10: #{seq_lstm_forward.1} parent=1 // pred_check
      _
    $region11: #{seq_lstm_forward.1} parent=1 // pred_check_branch
      %21 = sbr.rel (0) target = $region13
    $region12: #{seq_lstm_forward.1} parent=1 // pred_region
      _
    $region13: #{seq_lstm_forward.1} parent=1 // pred_fallthru
      _
    // Predicated region
    $region14: #{seq_lstm_forward.1} parent=1 // pred_check
      _
    $region15: #{seq_lstm_forward.1} parent=1 // pred_check_branch
      %23 = sbr.rel (0) target = $region17
    $region16: #{seq_lstm_forward.1} parent=1 // pred_region
      %s25 = ssub.s32 8192, 8192
      %26 = vsyncadd [#allocation3], %s25
      %s27 = sshll.u32 [#allocation2], 4
      %s28 = int_to_ptr.vmem [resolvable:$true] %s27
      %33 = dma.hbm_to_vmem [thread:$0]  %s3, 8192, %s28, [#allocation3], 512, 512, 32
    $region17: #{seq_lstm_forward.1} parent=1 // pred_fallthru
      _
    // Predicated region
    $region18: #{seq_lstm_forward.1} parent=1 // pred_check
      _
    $region19: #{seq_lstm_forward.1} parent=1 // pred_check_branch
      %35 = sbr.rel (0) target = $region21
    $region20: #{seq_lstm_forward.1} parent=1 // pred_region
      %s37 = ssub.s32 8192, 8192
      %38 = vsyncadd [#allocation6], %s37
      %s39 = sshll.u32 [#allocation5], 4
      %s40 = int_to_ptr.vmem [resolvable:$true] %s39
      %45 = dma.hbm_to_vmem [thread:$0]  %s4, 8192, %s40, [#allocation6], 512, 512, 32
    $region21: #{seq_lstm_forward.1} parent=1 // pred_fallthru
      _
    // Predicated region
    $region22: #{seq_lstm_forward.1} parent=1 // pred_check
      _
    $region23: #{seq_lstm_forward.1} parent=1 // pred_check_branch
      %47 = sbr.rel (0) target = $region25
    $region24: #{seq_lstm_forward.1} parent=1 // pred_region
      _
    $region25: #{seq_lstm_forward.1} parent=1 // pred_fallthru
      _
    // Predicated region
    $region26: #{seq_lstm_forward.1} parent=1 // pred_check
      _
    $region27: #{seq_lstm_forward.1} parent=1 // pred_check_branch
      %49 = sbr.rel (0) target = $region29
    $region28: #{seq_lstm_forward.1} parent=1 // pred_region
      %s51 = ssub.s32 2048, 2048
      %52 = vsyncadd [#allocation6], %s51
      %s53 = sshll.u32 [#allocation7], 4
      %s54 = int_to_ptr.vmem [resolvable:$true] %s53
      %59 = dma.hbm_to_vmem [thread:$0]  %s6, 2048, %s54, [#allocation6], 128, 128, 8
    $region29: #{seq_lstm_forward.1} parent=1 // pred_fallthru
      _
    // Predicated region
    $region30: #{seq_lstm_forward.1} parent=1 // pred_check
      _
    $region31: #{seq_lstm_forward.1} parent=1 // pred_check_branch
      %61 = sbr.rel (0) target = $region33
    $region32: #{seq_lstm_forward.1} parent=1 // pred_region
      _
    $region33: #{seq_lstm_forward.1} parent=1 // pred_fallthru
      _
    // Predicated region
    $region34: #{seq_lstm_forward.1} parent=1 // pred_check
      _
    $region35: #{seq_lstm_forward.1} parent=1 // pred_check_branch
      %63 = sbr.rel (0) target = $region37
    $region36: #{seq_lstm_forward.1} parent=1 // pred_region
      %64 = dma.done [#allocation3], 8192
    $region37: #{seq_lstm_forward.1} parent=1 // pred_fallthru
      _
    // Predicated region
    $region38: #{seq_lstm_forward.1} parent=1 // pred_check
      _
    $region39: #{seq_lstm_forward.1} parent=1 // pred_check_branch
      %66 = sbr.rel (0) target = $region41
    $region40: #{seq_lstm_forward.1} parent=1 // pred_region
      %67 = dma.done [#allocation6], 8192
    $region41: #{seq_lstm_forward.1} parent=1 // pred_fallthru
      _
    // Predicated region
    $region42: #{seq_lstm_forward.1} parent=1 // pred_check
      _
    $region43: #{seq_lstm_forward.1} parent=1 // pred_check_branch
      %69 = sbr.rel (0) target = $region45
    $region44: #{seq_lstm_forward.1} parent=1 // pred_region
      %70 = dma.done [#allocation6], 2048
    $region45: #{seq_lstm_forward.1} parent=1 // pred_fallthru
      _
    %v71 = vld [vmem:[%s0] sm:$0x3]
    %v72 = vld [vmem:[%s1] sm:$0xf]
    %74 = vset.pattern.permute.xlu0 0
    %75 = vperm.xlu0 %74, %v71
    %v76 = vpop.permute.xlu0 %75
    %v79 = vlaneseq
    %v80 = vshrl.u32 %v79, 7
    %v81 = vsub.s32 0, %v80
    %v82 = vrot.slane %v72, %v81
    %v83 = vlaneseq
    %v84 = vshrl.u32 %v83, 7
    %v85 = vsub.s32 1, %v84
    %v86 = vrot.slane %v72, %v85
    %v87 = vlaneseq
    %v88 = vshrl.u32 %v87, 7
    %v89 = vsub.s32 2, %v88
    %v90 = vrot.slane %v72, %v89
    %v91 = vlaneseq
    %v92 = vshrl.u32 %v91, 7
    %v93 = vsub.s32 3, %v92
    %v94 = vrot.slane %v72, %v93
    %v99 = vmul.f32 %v76, %v82
    %v100 = vmul.f32 %v76, %v86
    %v101 = vmul.f32 %v76, %v90
    %v102 = vmul.f32 %v76, %v94
    %v103 = vld [vmem:[%s2] sm:$0xf]
    %v105 = vlaneseq
    %v106 = vshrl.u32 %v105, 7
    %v107 = vsub.s32 0, %v106
    %v108 = vrot.slane %v103, %v107
    %v109 = vlaneseq
    %v110 = vshrl.u32 %v109, 7
    %v111 = vsub.s32 1, %v110
    %v112 = vrot.slane %v103, %v111
    %v113 = vlaneseq
    %v114 = vshrl.u32 %v113, 7
    %v115 = vsub.s32 2, %v114
    %v116 = vrot.slane %v103, %v115
    %v117 = vlaneseq
    %v118 = vshrl.u32 %v117, 7
    %v119 = vsub.s32 3, %v118
    %v120 = vrot.slane %v103, %v119
    %v125 = vadd.f32 %v99, %v108
    %v126 = vadd.f32 %v100, %v112
    %v127 = vadd.f32 %v101, %v116
    %v128 = vadd.f32 %v102, %v120
    %v129 = vld [vmem:[#allocation2] sm:$0xff]
    %v130 = vld [vmem:[#allocation2 + $0x8] sm:$0xff]
    %v131 = vld [vmem:[#allocation2 + $0x10] sm:$0xff]
    %v132 = vld [vmem:[#allocation2 + $0x18] sm:$0xff]
    %v133 = vld [vmem:[#allocation2 + $0x20] sm:$0xff]
    %v134 = vld [vmem:[#allocation2 + $0x28] sm:$0xff]
    %v135 = vld [vmem:[#allocation2 + $0x30] sm:$0xff]
    %v136 = vld [vmem:[#allocation2 + $0x38] sm:$0xff]
    %v137 = vld [vmem:[#allocation2 + $0x40] sm:$0xff]
    %v138 = vld [vmem:[#allocation2 + $0x48] sm:$0xff]
    %v139 = vld [vmem:[#allocation2 + $0x50] sm:$0xff]
    %v140 = vld [vmem:[#allocation2 + $0x58] sm:$0xff]
    %v141 = vld [vmem:[#allocation2 + $0x60] sm:$0xff]
    %v142 = vld [vmem:[#allocation2 + $0x68] sm:$0xff]
    %v143 = vld [vmem:[#allocation2 + $0x70] sm:$0xff]
    %v144 = vld [vmem:[#allocation2 + $0x78] sm:$0xff]
    %v145 = vld [vmem:[#allocation2 + $0x80] sm:$0xff]
    %v146 = vld [vmem:[#allocation2 + $0x88] sm:$0xff]
    %v147 = vld [vmem:[#allocation2 + $0x90] sm:$0xff]
    %v148 = vld [vmem:[#allocation2 + $0x98] sm:$0xff]
    %v149 = vld [vmem:[#allocation2 + $0xa0] sm:$0xff]
    %v150 = vld [vmem:[#allocation2 + $0xa8] sm:$0xff]
    %v151 = vld [vmem:[#allocation2 + $0xb0] sm:$0xff]
    %v152 = vld [vmem:[#allocation2 + $0xb8] sm:$0xff]
    %v153 = vld [vmem:[#allocation2 + $0xc0] sm:$0xff]
    %v154 = vld [vmem:[#allocation2 + $0xc8] sm:$0xff]
    %v155 = vld [vmem:[#allocation2 + $0xd0] sm:$0xff]
    %v156 = vld [vmem:[#allocation2 + $0xd8] sm:$0xff]
    %v157 = vld [vmem:[#allocation2 + $0xe0] sm:$0xff]
    %v158 = vld [vmem:[#allocation2 + $0xe8] sm:$0xff]
    %v159 = vld [vmem:[#allocation2 + $0xf0] sm:$0xff]
    %v160 = vld [vmem:[#allocation2 + $0xf8] sm:$0xff]
    %v161 = vld [vmem:[#allocation2 + $0x100] sm:$0xff]
    %v162 = vld [vmem:[#allocation2 + $0x108] sm:$0xff]
    %v163 = vld [vmem:[#allocation2 + $0x110] sm:$0xff]
    %v164 = vld [vmem:[#allocation2 + $0x118] sm:$0xff]
    %v165 = vld [vmem:[#allocation2 + $0x120] sm:$0xff]
    %v166 = vld [vmem:[#allocation2 + $0x128] sm:$0xff]
    %v167 = vld [vmem:[#allocation2 + $0x130] sm:$0xff]
    %v168 = vld [vmem:[#allocation2 + $0x138] sm:$0xff]
    %v169 = vld [vmem:[#allocation2 + $0x140] sm:$0xff]
    %v170 = vld [vmem:[#allocation2 + $0x148] sm:$0xff]
    %v171 = vld [vmem:[#allocation2 + $0x150] sm:$0xff]
    %v172 = vld [vmem:[#allocation2 + $0x158] sm:$0xff]
    %v173 = vld [vmem:[#allocation2 + $0x160] sm:$0xff]
    %v174 = vld [vmem:[#allocation2 + $0x168] sm:$0xff]
    %v175 = vld [vmem:[#allocation2 + $0x170] sm:$0xff]
    %v176 = vld [vmem:[#allocation2 + $0x178] sm:$0xff]
    %v177 = vld [vmem:[#allocation2 + $0x180] sm:$0xff]
    %v178 = vld [vmem:[#allocation2 + $0x188] sm:$0xff]
    %v179 = vld [vmem:[#allocation2 + $0x190] sm:$0xff]
    %v180 = vld [vmem:[#allocation2 + $0x198] sm:$0xff]
    %v181 = vld [vmem:[#allocation2 + $0x1a0] sm:$0xff]
    %v182 = vld [vmem:[#allocation2 + $0x1a8] sm:$0xff]
    %v183 = vld [vmem:[#allocation2 + $0x1b0] sm:$0xff]
    %v184 = vld [vmem:[#allocation2 + $0x1b8] sm:$0xff]
    %v185 = vld [vmem:[#allocation2 + $0x1c0] sm:$0xff]
    %v186 = vld [vmem:[#allocation2 + $0x1c8] sm:$0xff]
    %v187 = vld [vmem:[#allocation2 + $0x1d0] sm:$0xff]
    %v188 = vld [vmem:[#allocation2 + $0x1d8] sm:$0xff]
    %v189 = vld [vmem:[#allocation2 + $0x1e0] sm:$0xff]
    %v190 = vld [vmem:[#allocation2 + $0x1e8] sm:$0xff]
    %v191 = vld [vmem:[#allocation2 + $0x1f0] sm:$0xff]
    %v192 = vld [vmem:[#allocation2 + $0x1f8] sm:$0xff]
    %193 = vmatprep.subr.mxu0 %v190
    %194 = vmatpush1.msra.mxu0 %v189
    %195 = vmatprep.subr.mxu0 %v186
    %196 = vmatpush1.msra.mxu0 %v185
    %197 = vmatprep.subr.mxu0 %v182
    %198 = vmatpush1.msra.mxu0 %v181
    %199 = vmatprep.subr.mxu0 %v178
    %200 = vmatpush1.msra.mxu0 %v177
    %201 = vmatprep.subr.mxu0 %v174
    %202 = vmatpush1.msra.mxu0 %v173
    %203 = vmatprep.subr.mxu0 %v170
    %204 = vmatpush1.msra.mxu0 %v169
    %205 = vmatprep.subr.mxu0 %v166
    %206 = vmatpush1.msra.mxu0 %v165
    %207 = vmatprep.subr.mxu0 %v162
    %208 = vmatpush1.msra.mxu0 %v161
    %209 = vmatprep.subr.mxu0 %v158
    %210 = vmatpush1.msra.mxu0 %v157
    %211 = vmatprep.subr.mxu0 %v154
    %212 = vmatpush1.msra.mxu0 %v153
    %213 = vmatprep.subr.mxu0 %v150
    %214 = vmatpush1.msra.mxu0 %v149
    %215 = vmatprep.subr.mxu0 %v146
    %216 = vmatpush1.msra.mxu0 %v145
    %217 = vmatprep.subr.mxu0 %v142
    %218 = vmatpush1.msra.mxu0 %v141
    %219 = vmatprep.subr.mxu0 %v138
    %220 = vmatpush1.msra.mxu0 %v137
    %221 = vmatprep.subr.mxu0 %v134
    %222 = vmatpush1.msra.mxu0 %v133
    %223 = vmatprep.subr.mxu0 %v130
    %224 = vmatpush1.msra.mxu0 %v129
    %225 = vmatprep.subr.mxu0 0.0
    %226 = vmatpush2.msra.mxu0 0.0
    %227 = vmatprep.subr.mxu0 0.0
    %228 = vmatpush2.msra.mxu0 0.0
    %229 = vmatprep.subr.mxu0 0.0
    %230 = vmatpush2.msra.mxu0 0.0
    %231 = vmatprep.subr.mxu0 0.0
    %232 = vmatpush2.msra.mxu0 0.0
    %233 = vmatprep.subr.mxu0 0.0
    %234 = vmatpush2.msra.mxu0 0.0
    %235 = vmatprep.subr.mxu0 0.0
    %236 = vmatpush2.msra.mxu0 0.0
    %237 = vmatprep.subr.mxu0 0.0
    %238 = vmatpush2.msra.mxu0 0.0
    %239 = vmatprep.subr.mxu0 0.0
    %240 = vmatpush2.msra.mxu0 0.0
    %241 = vmatprep.subr.mxu0 0.0
    %242 = vmatpush2.msra.mxu0 0.0
    %243 = vmatprep.subr.mxu0 0.0
    %244 = vmatpush2.msra.mxu0 0.0
    %245 = vmatprep.subr.mxu0 0.0
    %246 = vmatpush2.msra.mxu0 0.0
    %247 = vmatprep.subr.mxu0 0.0
    %248 = vmatpush2.msra.mxu0 0.0
    %249 = vmatprep.subr.mxu0 0.0
    %250 = vmatpush2.msra.mxu0 0.0
    %251 = vmatprep.subr.mxu0 0.0
    %252 = vmatpush2.msra.mxu0 0.0
    %253 = vmatprep.subr.mxu0 0.0
    %254 = vmatpush2.msra.mxu0 0.0
    %255 = vmatprep.subr.mxu0 0.0
    %256 = vmatpush2.msra.mxu0 0.0
    %257 = vmatprep.mubr.f32.mxu0 0.0
    %258 = vmatmul.mubr.f32.gmra.mxu0 0.0
    %v259 = vpop.f32.mrf.mxu0
    %v260 = vadd.f32 0.0, %v259
    %v261 = vpop.f32.mrf.mxu0
    %v262 = vadd.f32 0.0, %v261
    %263 = vdwg.mxu0
    %264 = vmatprep.subr.mxu0 %v192
    %265 = vmatpush1.msra.mxu0 %v191
    %266 = vmatprep.subr.mxu0 %v188
    %267 = vmatpush1.msra.mxu0 %v187
    %268 = vmatprep.subr.mxu0 %v184
    %269 = vmatpush1.msra.mxu0 %v183
    %270 = vmatprep.subr.mxu0 %v180
    %271 = vmatpush1.msra.mxu0 %v179
    %272 = vmatprep.subr.mxu0 %v176
    %273 = vmatpush1.msra.mxu0 %v175
    %274 = vmatprep.subr.mxu0 %v172
    %275 = vmatpush1.msra.mxu0 %v171
    %276 = vmatprep.subr.mxu0 %v168
    %277 = vmatpush1.msra.mxu0 %v167
    %278 = vmatprep.subr.mxu0 %v164
    %279 = vmatpush1.msra.mxu0 %v163
    %280 = vmatprep.subr.mxu0 %v160
    %281 = vmatpush1.msra.mxu0 %v159
    %282 = vmatprep.subr.mxu0 %v156
    %283 = vmatpush1.msra.mxu0 %v155
    %284 = vmatprep.subr.mxu0 %v152
    %285 = vmatpush1.msra.mxu0 %v151
    %286 = vmatprep.subr.mxu0 %v148
    %287 = vmatpush1.msra.mxu0 %v147
    %288 = vmatprep.subr.mxu0 %v144
    %289 = vmatpush1.msra.mxu0 %v143
    %290 = vmatprep.subr.mxu0 %v140
    %291 = vmatpush1.msra.mxu0 %v139
    %292 = vmatprep.subr.mxu0 %v136
    %293 = vmatpush1.msra.mxu0 %v135
    %294 = vmatprep.subr.mxu0 %v132
    %295 = vmatpush1.msra.mxu0 %v131
    %296 = vmatprep.subr.mxu0 0.0
    %297 = vmatpush2.msra.mxu0 0.0
    %298 = vmatprep.subr.mxu0 0.0
    %299 = vmatpush2.msra.mxu0 0.0
    %300 = vmatprep.subr.mxu0 0.0
    %301 = vmatpush2.msra.mxu0 0.0
    %302 = vmatprep.subr.mxu0 0.0
    %303 = vmatpush2.msra.mxu0 0.0
    %304 = vmatprep.subr.mxu0 0.0
    %305 = vmatpush2.msra.mxu0 0.0
    %306 = vmatprep.subr.mxu0 0.0
    %307 = vmatpush2.msra.mxu0 0.0
    %308 = vmatprep.subr.mxu0 0.0
    %309 = vmatpush2.msra.mxu0 0.0
    %310 = vmatprep.subr.mxu0 0.0
    %311 = vmatpush2.msra.mxu0 0.0
    %312 = vmatprep.subr.mxu0 0.0
    %313 = vmatpush2.msra.mxu0 0.0
    %314 = vmatprep.subr.mxu0 0.0
    %315 = vmatpush2.msra.mxu0 0.0
    %316 = vmatprep.subr.mxu0 0.0
    %317 = vmatpush2.msra.mxu0 0.0
    %318 = vmatprep.subr.mxu0 0.0
    %319 = vmatpush2.msra.mxu0 0.0
    %320 = vmatprep.subr.mxu0 0.0
    %321 = vmatpush2.msra.mxu0 0.0
    %322 = vmatprep.subr.mxu0 0.0
    %323 = vmatpush2.msra.mxu0 0.0
    %324 = vmatprep.subr.mxu0 0.0
    %325 = vmatpush2.msra.mxu0 0.0
    %326 = vmatprep.subr.mxu0 0.0
    %327 = vmatpush2.msra.mxu0 0.0
    %328 = vmatprep.mubr.f32.mxu0 0.0
    %329 = vmatmul.mubr.f32.gmra.mxu0 0.0
    %v330 = vpop.f32.mrf.mxu0
    %v331 = vadd.f32 0.0, %v330
    %v332 = vpop.f32.mrf.mxu0
    %v333 = vadd.f32 0.0, %v332
    %334 = vdwg.mxu0
    %v335 = vadd.f32 %v125, %v260
    %v336 = vadd.f32 %v126, %v262
    %v337 = vadd.f32 %v127, %v331
    %v338 = vadd.f32 %v128, %v333
    %v339 = vxor.u32 %v335, 2147483648
    %v340 = vxor.u32 %v336, 2147483648
    %v341 = vxor.u32 %v337, 2147483648
    %v342 = vmul.f32 %v339, 1.442695
    %v343 = vpow.pop %v342
    %v344 = vmul.f32 %v340, 1.442695
    %v345 = vpow.pop %v344
    %v346 = vmul.f32 %v341, 1.442695
    %v347 = vpow.pop %v346
    %v348 = vadd.f32 %v343, 1.0
    %v349 = vadd.f32 %v345, 1.0
    %v350 = vadd.f32 %v347, 1.0
    %v351 = vrcp.pop %v348
    %v352 = vmul.f32 1.0, %v351
    %v353 = vrcp.pop %v349
    %v354 = vmul.f32 1.0, %v353
    %v355 = vrcp.pop %v350
    %v356 = vmul.f32 1.0, %v355
    %v357 = vtanh.pop %v338
    %v358 = vmul.f32 %v354, 0.0
    %v359 = vmul.f32 %v352, %v357
    %v360 = vadd.f32 %v358, %v359
    %v361 = vtanh.pop %v360
    %v362 = vmul.f32 %v356, %v361
    %363 = vrot.lane.b32.xlu0 0.0, 64
    %v364 = vpop.permute.xlu0 %363
    %v365 = vadd.f32 %v362, %v364
    %v366 = vld [vmem:[#allocation5] sm:$0xff]
    %v367 = vld [vmem:[#allocation5 + $0x8] sm:$0xff]
    %v368 = vld [vmem:[#allocation5 + $0x10] sm:$0xff]
    %v369 = vld [vmem:[#allocation5 + $0x18] sm:$0xff]
    %v370 = vld [vmem:[#allocation5 + $0x20] sm:$0xff]
    %v371 = vld [vmem:[#allocation5 + $0x28] sm:$0xff]
    %v372 = vld [vmem:[#allocation5 + $0x30] sm:$0xff]
    %v373 = vld [vmem:[#allocation5 + $0x38] sm:$0xff]
    %v374 = vld [vmem:[#allocation5 + $0x40] sm:$0xff]
    %v375 = vld [vmem:[#allocation5 + $0x48] sm:$0xff]
    %v376 = vld [vmem:[#allocation5 + $0x50] sm:$0xff]
    %v377 = vld [vmem:[#allocation5 + $0x58] sm:$0xff]
    %v378 = vld [vmem:[#allocation5 + $0x60] sm:$0xff]
    %v379 = vld [vmem:[#allocation5 + $0x68] sm:$0xff]
    %v380 = vld [vmem:[#allocation5 + $0x70] sm:$0xff]
    %v381 = vld [vmem:[#allocation5 + $0x78] sm:$0xff]
    %v382 = vld [vmem:[#allocation5 + $0x80] sm:$0xff]
    %v383 = vld [vmem:[#allocation5 + $0x88] sm:$0xff]
    %v384 = vld [vmem:[#allocation5 + $0x90] sm:$0xff]
    %v385 = vld [vmem:[#allocation5 + $0x98] sm:$0xff]
    %v386 = vld [vmem:[#allocation5 + $0xa0] sm:$0xff]
    %v387 = vld [vmem:[#allocation5 + $0xa8] sm:$0xff]
    %v388 = vld [vmem:[#allocation5 + $0xb0] sm:$0xff]
    %v389 = vld [vmem:[#allocation5 + $0xb8] sm:$0xff]
    %v390 = vld [vmem:[#allocation5 + $0xc0] sm:$0xff]
    %v391 = vld [vmem:[#allocation5 + $0xc8] sm:$0xff]
    %v392 = vld [vmem:[#allocation5 + $0xd0] sm:$0xff]
    %v393 = vld [vmem:[#allocation5 + $0xd8] sm:$0xff]
    %v394 = vld [vmem:[#allocation5 + $0xe0] sm:$0xff]
    %v395 = vld [vmem:[#allocation5 + $0xe8] sm:$0xff]
    %v396 = vld [vmem:[#allocation5 + $0xf0] sm:$0xff]
    %v397 = vld [vmem:[#allocation5 + $0xf8] sm:$0xff]
    %v398 = vld [vmem:[#allocation5 + $0x100] sm:$0xff]
    %v399 = vld [vmem:[#allocation5 + $0x108] sm:$0xff]
    %v400 = vld [vmem:[#allocation5 + $0x110] sm:$0xff]
    %v401 = vld [vmem:[#allocation5 + $0x118] sm:$0xff]
    %v402 = vld [vmem:[#allocation5 + $0x120] sm:$0xff]
    %v403 = vld [vmem:[#allocation5 + $0x128] sm:$0xff]
    %v404 = vld [vmem:[#allocation5 + $0x130] sm:$0xff]
    %v405 = vld [vmem:[#allocation5 + $0x138] sm:$0xff]
    %v406 = vld [vmem:[#allocation5 + $0x140] sm:$0xff]
    %v407 = vld [vmem:[#allocation5 + $0x148] sm:$0xff]
    %v408 = vld [vmem:[#allocation5 + $0x150] sm:$0xff]
    %v409 = vld [vmem:[#allocation5 + $0x158] sm:$0xff]
    %v410 = vld [vmem:[#allocation5 + $0x160] sm:$0xff]
    %v411 = vld [vmem:[#allocation5 + $0x168] sm:$0xff]
    %v412 = vld [vmem:[#allocation5 + $0x170] sm:$0xff]
    %v413 = vld [vmem:[#allocation5 + $0x178] sm:$0xff]
    %v414 = vld [vmem:[#allocation5 + $0x180] sm:$0xff]
    %v415 = vld [vmem:[#allocation5 + $0x188] sm:$0xff]
    %v416 = vld [vmem:[#allocation5 + $0x190] sm:$0xff]
    %v417 = vld [vmem:[#allocation5 + $0x198] sm:$0xff]
    %v418 = vld [vmem:[#allocation5 + $0x1a0] sm:$0xff]
    %v419 = vld [vmem:[#allocation5 + $0x1a8] sm:$0xff]
    %v420 = vld [vmem:[#allocation5 + $0x1b0] sm:$0xff]
    %v421 = vld [vmem:[#allocation5 + $0x1b8] sm:$0xff]
    %v422 = vld [vmem:[#allocation5 + $0x1c0] sm:$0xff]
    %v423 = vld [vmem:[#allocation5 + $0x1c8] sm:$0xff]
    %v424 = vld [vmem:[#allocation5 + $0x1d0] sm:$0xff]
    %v425 = vld [vmem:[#allocation5 + $0x1d8] sm:$0xff]
    %v426 = vld [vmem:[#allocation5 + $0x1e0] sm:$0xff]
    %v427 = vld [vmem:[#allocation5 + $0x1e8] sm:$0xff]
    %v428 = vld [vmem:[#allocation5 + $0x1f0] sm:$0xff]
    %v429 = vld [vmem:[#allocation5 + $0x1f8] sm:$0xff]
    %v430 = vld [vmem:[%s5] sm:$0xf]
    %v432 = vlaneseq
    %v433 = vshrl.u32 %v432, 7
    %v434 = vsub.s32 0, %v433
    %v435 = vrot.slane %v430, %v434
    %v436 = vlaneseq
    %v437 = vshrl.u32 %v436, 7
    %v438 = vsub.s32 1, %v437
    %v439 = vrot.slane %v430, %v438
    %v440 = vlaneseq
    %v441 = vshrl.u32 %v440, 7
    %v442 = vsub.s32 2, %v441
    %v443 = vrot.slane %v430, %v442
    %v444 = vlaneseq
    %v445 = vshrl.u32 %v444, 7
    %v446 = vsub.s32 3, %v445
    %v447 = vrot.slane %v430, %v446
    %452 = vmatprep.subr.mxu0 %v427
    %453 = vmatpush1.msra.mxu0 %v426
    %454 = vmatprep.subr.mxu0 %v423
    %455 = vmatpush1.msra.mxu0 %v422
    %456 = vmatprep.subr.mxu0 %v419
    %457 = vmatpush1.msra.mxu0 %v418
    %458 = vmatprep.subr.mxu0 %v415
    %459 = vmatpush1.msra.mxu0 %v414
    %460 = vmatprep.subr.mxu0 %v411
    %461 = vmatpush1.msra.mxu0 %v410
    %462 = vmatprep.subr.mxu0 %v407
    %463 = vmatpush1.msra.mxu0 %v406
    %464 = vmatprep.subr.mxu0 %v403
    %465 = vmatpush1.msra.mxu0 %v402
    %466 = vmatprep.subr.mxu0 %v399
    %467 = vmatpush1.msra.mxu0 %v398
    %468 = vmatprep.subr.mxu0 %v395
    %469 = vmatpush1.msra.mxu0 %v394
    %470 = vmatprep.subr.mxu0 %v391
    %471 = vmatpush1.msra.mxu0 %v390
    %472 = vmatprep.subr.mxu0 %v387
    %473 = vmatpush1.msra.mxu0 %v386
    %474 = vmatprep.subr.mxu0 %v383
    %475 = vmatpush1.msra.mxu0 %v382
    %476 = vmatprep.subr.mxu0 %v379
    %477 = vmatpush1.msra.mxu0 %v378
    %478 = vmatprep.subr.mxu0 %v375
    %479 = vmatpush1.msra.mxu0 %v374
    %480 = vmatprep.subr.mxu0 %v371
    %481 = vmatpush1.msra.mxu0 %v370
    %482 = vmatprep.subr.mxu0 %v367
    %483 = vmatpush1.msra.mxu0 %v366
    %484 = vmatprep.subr.mxu0 0.0
    %485 = vmatpush2.msra.mxu0 0.0
    %486 = vmatprep.subr.mxu0 0.0
    %487 = vmatpush2.msra.mxu0 0.0
    %488 = vmatprep.subr.mxu0 0.0
    %489 = vmatpush2.msra.mxu0 0.0
    %490 = vmatprep.subr.mxu0 0.0
    %491 = vmatpush2.msra.mxu0 0.0
    %492 = vmatprep.subr.mxu0 0.0
    %493 = vmatpush2.msra.mxu0 0.0
    %494 = vmatprep.subr.mxu0 0.0
    %495 = vmatpush2.msra.mxu0 0.0
    %496 = vmatprep.subr.mxu0 0.0
    %497 = vmatpush2.msra.mxu0 0.0
    %498 = vmatprep.subr.mxu0 0.0
    %499 = vmatpush2.msra.mxu0 0.0
    %500 = vmatprep.subr.mxu0 0.0
    %501 = vmatpush2.msra.mxu0 0.0
    %502 = vmatprep.subr.mxu0 0.0
    %503 = vmatpush2.msra.mxu0 0.0
    %504 = vmatprep.subr.mxu0 0.0
    %505 = vmatpush2.msra.mxu0 0.0
    %506 = vmatprep.subr.mxu0 0.0
    %507 = vmatpush2.msra.mxu0 0.0
    %508 = vmatprep.subr.mxu0 0.0
    %509 = vmatpush2.msra.mxu0 0.0
    %510 = vmatprep.subr.mxu0 0.0
    %511 = vmatpush2.msra.mxu0 0.0
    %512 = vmatprep.subr.mxu0 0.0
    %513 = vmatpush2.msra.mxu0 0.0
    %514 = vmatprep.subr.mxu0 0.0
    %515 = vmatpush2.msra.mxu0 0.0
    %516 = vmatprep.mubr.f32.mxu0 0.0
    %517 = vmatmul.mubr.f32.gmra.mxu0 %v365
    %v518 = vpop.f32.mrf.mxu0
    %v519 = vadd.f32 %v435, %v518
    %v520 = vpop.f32.mrf.mxu0
    %v521 = vadd.f32 %v439, %v520
    %522 = vdwg.mxu0
    %523 = vmatprep.subr.mxu0 %v429
    %524 = vmatpush1.msra.mxu0 %v428
    %525 = vmatprep.subr.mxu0 %v425
    %526 = vmatpush1.msra.mxu0 %v424
    %527 = vmatprep.subr.mxu0 %v421
    %528 = vmatpush1.msra.mxu0 %v420
    %529 = vmatprep.subr.mxu0 %v417
    %530 = vmatpush1.msra.mxu0 %v416
    %531 = vmatprep.subr.mxu0 %v413
    %532 = vmatpush1.msra.mxu0 %v412
    %533 = vmatprep.subr.mxu0 %v409
    %534 = vmatpush1.msra.mxu0 %v408
    %535 = vmatprep.subr.mxu0 %v405
    %536 = vmatpush1.msra.mxu0 %v404
    %537 = vmatprep.subr.mxu0 %v401
    %538 = vmatpush1.msra.mxu0 %v400
    %539 = vmatprep.subr.mxu0 %v397
    %540 = vmatpush1.msra.mxu0 %v396
    %541 = vmatprep.subr.mxu0 %v393
    %542 = vmatpush1.msra.mxu0 %v392
    %543 = vmatprep.subr.mxu0 %v389
    %544 = vmatpush1.msra.mxu0 %v388
    %545 = vmatprep.subr.mxu0 %v385
    %546 = vmatpush1.msra.mxu0 %v384
    %547 = vmatprep.subr.mxu0 %v381
    %548 = vmatpush1.msra.mxu0 %v380
    %549 = vmatprep.subr.mxu0 %v377
    %550 = vmatpush1.msra.mxu0 %v376
    %551 = vmatprep.subr.mxu0 %v373
    %552 = vmatpush1.msra.mxu0 %v372
    %553 = vmatprep.subr.mxu0 %v369
    %554 = vmatpush1.msra.mxu0 %v368
    %555 = vmatprep.subr.mxu0 0.0
    %556 = vmatpush2.msra.mxu0 0.0
    %557 = vmatprep.subr.mxu0 0.0
    %558 = vmatpush2.msra.mxu0 0.0
    %559 = vmatprep.subr.mxu0 0.0
    %560 = vmatpush2.msra.mxu0 0.0
    %561 = vmatprep.subr.mxu0 0.0
    %562 = vmatpush2.msra.mxu0 0.0
    %563 = vmatprep.subr.mxu0 0.0
    %564 = vmatpush2.msra.mxu0 0.0
    %565 = vmatprep.subr.mxu0 0.0
    %566 = vmatpush2.msra.mxu0 0.0
    %567 = vmatprep.subr.mxu0 0.0
    %568 = vmatpush2.msra.mxu0 0.0
    %569 = vmatprep.subr.mxu0 0.0
    %570 = vmatpush2.msra.mxu0 0.0
    %571 = vmatprep.subr.mxu0 0.0
    %572 = vmatpush2.msra.mxu0 0.0
    %573 = vmatprep.subr.mxu0 0.0
    %574 = vmatpush2.msra.mxu0 0.0
    %575 = vmatprep.subr.mxu0 0.0
    %576 = vmatpush2.msra.mxu0 0.0
    %577 = vmatprep.subr.mxu0 0.0
    %578 = vmatpush2.msra.mxu0 0.0
    %579 = vmatprep.subr.mxu0 0.0
    %580 = vmatpush2.msra.mxu0 0.0
    %581 = vmatprep.subr.mxu0 0.0
    %582 = vmatpush2.msra.mxu0 0.0
    %583 = vmatprep.subr.mxu0 0.0
    %584 = vmatpush2.msra.mxu0 0.0
    %585 = vmatprep.subr.mxu0 0.0
    %586 = vmatpush2.msra.mxu0 0.0
    %587 = vmatprep.mubr.f32.mxu0 0.0
    %588 = vmatmul.mubr.f32.gmra.mxu0 %v365
    %v589 = vpop.f32.mrf.mxu0
    %v590 = vadd.f32 %v443, %v589
    %v591 = vpop.f32.mrf.mxu0
    %v592 = vadd.f32 %v447, %v591
    %593 = vdwg.mxu0
    %v594 = vxor.u32 %v519, 2147483648
    %v595 = vxor.u32 %v521, 2147483648
    %v596 = vxor.u32 %v590, 2147483648
    %v597 = vmul.f32 %v594, 1.442695
    %v598 = vpow.pop %v597
    %v599 = vmul.f32 %v595, 1.442695
    %v600 = vpow.pop %v599
    %v601 = vmul.f32 %v596, 1.442695
    %v602 = vpow.pop %v601
    %v603 = vadd.f32 %v598, 1.0
    %v604 = vadd.f32 %v600, 1.0
    %v605 = vadd.f32 %v602, 1.0
    %v606 = vrcp.pop %v603
    %v607 = vmul.f32 1.0, %v606
    %v608 = vrcp.pop %v604
    %v609 = vmul.f32 1.0, %v608
    %v610 = vrcp.pop %v605
    %v611 = vmul.f32 1.0, %v610
    %v612 = vtanh.pop %v592
    %v613 = vmul.f32 %v609, 0.0
    %v614 = vmul.f32 %v607, %v612
    %v615 = vadd.f32 %v613, %v614
    %v616 = vtanh.pop %v615
    %v617 = vmul.f32 %v611, %v616
    %s618 = scalar_lea.vmem %s0, 2
    %v619 = vld [vmem:[%s618] sm:$0x3]
    %621 = vset.pattern.permute.xlu0 0
    %622 = vperm.xlu0 %621, %v619
    %v623 = vpop.permute.xlu0 %622
    %v625 = vmul.f32 %v623, %v82
    %v626 = vmul.f32 %v623, %v86
    %v627 = vmul.f32 %v623, %v90
    %v628 = vmul.f32 %v623, %v94
    %v629 = vadd.f32 %v625, %v108
    %v630 = vadd.f32 %v626, %v112
    %v631 = vadd.f32 %v627, %v116
    %v632 = vadd.f32 %v628, %v120
    %633 = vmatprep.subr.mxu0 %v190
    %634 = vmatpush1.msra.mxu0 %v189
    %635 = vmatprep.subr.mxu0 %v186
    %636 = vmatpush1.msra.mxu0 %v185
    %637 = vmatprep.subr.mxu0 %v182
    %638 = vmatpush1.msra.mxu0 %v181
    %639 = vmatprep.subr.mxu0 %v178
    %640 = vmatpush1.msra.mxu0 %v177
    %641 = vmatprep.subr.mxu0 %v174
    %642 = vmatpush1.msra.mxu0 %v173
    %643 = vmatprep.subr.mxu0 %v170
    %644 = vmatpush1.msra.mxu0 %v169
    %645 = vmatprep.subr.mxu0 %v166
    %646 = vmatpush1.msra.mxu0 %v165
    %647 = vmatprep.subr.mxu0 %v162
    %648 = vmatpush1.msra.mxu0 %v161
    %649 = vmatprep.subr.mxu0 %v158
    %650 = vmatpush1.msra.mxu0 %v157
    %651 = vmatprep.subr.mxu0 %v154
    %652 = vmatpush1.msra.mxu0 %v153
    %653 = vmatprep.subr.mxu0 %v150
    %654 = vmatpush1.msra.mxu0 %v149
    %655 = vmatprep.subr.mxu0 %v146
    %656 = vmatpush1.msra.mxu0 %v145
    %657 = vmatprep.subr.mxu0 %v142
    %658 = vmatpush1.msra.mxu0 %v141
    %659 = vmatprep.subr.mxu0 %v138
    %660 = vmatpush1.msra.mxu0 %v137
    %661 = vmatprep.subr.mxu0 %v134
    %662 = vmatpush1.msra.mxu0 %v133
    %663 = vmatprep.subr.mxu0 %v130
    %664 = vmatpush1.msra.mxu0 %v129
    %665 = vmatprep.subr.mxu0 0.0
    %666 = vmatpush2.msra.mxu0 0.0
    %667 = vmatprep.subr.mxu0 0.0
    %668 = vmatpush2.msra.mxu0 0.0
    %669 = vmatprep.subr.mxu0 0.0
    %670 = vmatpush2.msra.mxu0 0.0
    %671 = vmatprep.subr.mxu0 0.0
    %672 = vmatpush2.msra.mxu0 0.0
    %673 = vmatprep.subr.mxu0 0.0
    %674 = vmatpush2.msra.mxu0 0.0
    %675 = vmatprep.subr.mxu0 0.0
    %676 = vmatpush2.msra.mxu0 0.0
    %677 = vmatprep.subr.mxu0 0.0
    %678 = vmatpush2.msra.mxu0 0.0
    %679 = vmatprep.subr.mxu0 0.0
    %680 = vmatpush2.msra.mxu0 0.0
    %681 = vmatprep.subr.mxu0 0.0
    %682 = vmatpush2.msra.mxu0 0.0
    %683 = vmatprep.subr.mxu0 0.0
    %684 = vmatpush2.msra.mxu0 0.0
    %685 = vmatprep.subr.mxu0 0.0
    %686 = vmatpush2.msra.mxu0 0.0
    %687 = vmatprep.subr.mxu0 0.0
    %688 = vmatpush2.msra.mxu0 0.0
    %689 = vmatprep.subr.mxu0 0.0
    %690 = vmatpush2.msra.mxu0 0.0
    %691 = vmatprep.subr.mxu0 0.0
    %692 = vmatpush2.msra.mxu0 0.0
    %693 = vmatprep.subr.mxu0 0.0
    %694 = vmatpush2.msra.mxu0 0.0
    %695 = vmatprep.subr.mxu0 0.0
    %696 = vmatpush2.msra.mxu0 0.0
    %697 = vmatprep.mubr.f32.mxu0 0.0
    %698 = vmatmul.mubr.f32.gmra.mxu0 %v362
    %v699 = vpop.f32.mrf.mxu0
    %v700 = vadd.f32 0.0, %v699
    %v701 = vpop.f32.mrf.mxu0
    %v702 = vadd.f32 0.0, %v701
    %703 = vdwg.mxu0
    %704 = vmatprep.subr.mxu0 %v192
    %705 = vmatpush1.msra.mxu0 %v191
    %706 = vmatprep.subr.mxu0 %v188
    %707 = vmatpush1.msra.mxu0 %v187
    %708 = vmatprep.subr.mxu0 %v184
    %709 = vmatpush1.msra.mxu0 %v183
    %710 = vmatprep.subr.mxu0 %v180
    %711 = vmatpush1.msra.mxu0 %v179
    %712 = vmatprep.subr.mxu0 %v176
    %713 = vmatpush1.msra.mxu0 %v175
    %714 = vmatprep.subr.mxu0 %v172
    %715 = vmatpush1.msra.mxu0 %v171
    %716 = vmatprep.subr.mxu0 %v168
    %717 = vmatpush1.msra.mxu0 %v167
    %718 = vmatprep.subr.mxu0 %v164
    %719 = vmatpush1.msra.mxu0 %v163
    %720 = vmatprep.subr.mxu0 %v160
    %721 = vmatpush1.msra.mxu0 %v159
    %722 = vmatprep.subr.mxu0 %v156
    %723 = vmatpush1.msra.mxu0 %v155
    %724 = vmatprep.subr.mxu0 %v152
    %725 = vmatpush1.msra.mxu0 %v151
    %726 = vmatprep.subr.mxu0 %v148
    %727 = vmatpush1.msra.mxu0 %v147
    %728 = vmatprep.subr.mxu0 %v144
    %729 = vmatpush1.msra.mxu0 %v143
    %730 = vmatprep.subr.mxu0 %v140
    %731 = vmatpush1.msra.mxu0 %v139
    %732 = vmatprep.subr.mxu0 %v136
    %733 = vmatpush1.msra.mxu0 %v135
    %734 = vmatprep.subr.mxu0 %v132
    %735 = vmatpush1.msra.mxu0 %v131
    %736 = vmatprep.subr.mxu0 0.0
    %737 = vmatpush2.msra.mxu0 0.0
    %738 = vmatprep.subr.mxu0 0.0
    %739 = vmatpush2.msra.mxu0 0.0
    %740 = vmatprep.subr.mxu0 0.0
    %741 = vmatpush2.msra.mxu0 0.0
    %742 = vmatprep.subr.mxu0 0.0
    %743 = vmatpush2.msra.mxu0 0.0
    %744 = vmatprep.subr.mxu0 0.0
    %745 = vmatpush2.msra.mxu0 0.0
    %746 = vmatprep.subr.mxu0 0.0
    %747 = vmatpush2.msra.mxu0 0.0
    %748 = vmatprep.subr.mxu0 0.0
    %749 = vmatpush2.msra.mxu0 0.0
    %750 = vmatprep.subr.mxu0 0.0
    %751 = vmatpush2.msra.mxu0 0.0
    %752 = vmatprep.subr.mxu0 0.0
    %753 = vmatpush2.msra.mxu0 0.0
    %754 = vmatprep.subr.mxu0 0.0
    %755 = vmatpush2.msra.mxu0 0.0
    %756 = vmatprep.subr.mxu0 0.0
    %757 = vmatpush2.msra.mxu0 0.0
    %758 = vmatprep.subr.mxu0 0.0
    %759 = vmatpush2.msra.mxu0 0.0
    %760 = vmatprep.subr.mxu0 0.0
    %761 = vmatpush2.msra.mxu0 0.0
    %762 = vmatprep.subr.mxu0 0.0
    %763 = vmatpush2.msra.mxu0 0.0
    %764 = vmatprep.subr.mxu0 0.0
    %765 = vmatpush2.msra.mxu0 0.0
    %766 = vmatprep.subr.mxu0 0.0
    %767 = vmatpush2.msra.mxu0 0.0
    %768 = vmatprep.mubr.f32.mxu0 0.0
    %769 = vmatmul.mubr.f32.gmra.mxu0 %v362
    %v770 = vpop.f32.mrf.mxu0
    %v771 = vadd.f32 0.0, %v770
    %v772 = vpop.f32.mrf.mxu0
    %v773 = vadd.f32 0.0, %v772
    %774 = vdwg.mxu0
    %v775 = vadd.f32 %v629, %v700
    %v776 = vadd.f32 %v630, %v702
    %v777 = vadd.f32 %v631, %v771
    %v778 = vadd.f32 %v632, %v773
    %v779 = vxor.u32 %v775, 2147483648
    %v780 = vxor.u32 %v776, 2147483648
    %v781 = vxor.u32 %v777, 2147483648
    %v782 = vmul.f32 %v779, 1.442695
    %v783 = vpow.pop %v782
    %v784 = vmul.f32 %v780, 1.442695
    %v785 = vpow.pop %v784
    %v786 = vmul.f32 %v781, 1.442695
    %v787 = vpow.pop %v786
    %v788 = vadd.f32 %v783, 1.0
    %v789 = vadd.f32 %v785, 1.0
    %v790 = vadd.f32 %v787, 1.0
    %v791 = vrcp.pop %v788
    %v792 = vmul.f32 1.0, %v791
    %v793 = vrcp.pop %v789
    %v794 = vmul.f32 1.0, %v793
    %v795 = vrcp.pop %v790
    %v796 = vmul.f32 1.0, %v795
    %v797 = vtanh.pop %v778
    %v798 = vmul.f32 %v794, %v360
    %v799 = vmul.f32 %v792, %v797
    %v800 = vadd.f32 %v798, %v799
    %v801 = vtanh.pop %v800
    %v802 = vmul.f32 %v796, %v801
    %803 = vrot.lane.b32.xlu0 %v617, 64
    %v804 = vpop.permute.xlu0 %803
    %v805 = vadd.f32 %v802, %v804
    %806 = vmatprep.subr.mxu0 %v427
    %807 = vmatpush1.msra.mxu0 %v426
    %808 = vmatprep.subr.mxu0 %v423
    %809 = vmatpush1.msra.mxu0 %v422
    %810 = vmatprep.subr.mxu0 %v419
    %811 = vmatpush1.msra.mxu0 %v418
    %812 = vmatprep.subr.mxu0 %v415
    %813 = vmatpush1.msra.mxu0 %v414
    %814 = vmatprep.subr.mxu0 %v411
    %815 = vmatpush1.msra.mxu0 %v410
    %816 = vmatprep.subr.mxu0 %v407
    %817 = vmatpush1.msra.mxu0 %v406
    %818 = vmatprep.subr.mxu0 %v403
    %819 = vmatpush1.msra.mxu0 %v402
    %820 = vmatprep.subr.mxu0 %v399
    %821 = vmatpush1.msra.mxu0 %v398
    %822 = vmatprep.subr.mxu0 %v395
    %823 = vmatpush1.msra.mxu0 %v394
    %824 = vmatprep.subr.mxu0 %v391
    %825 = vmatpush1.msra.mxu0 %v390
    %826 = vmatprep.subr.mxu0 %v387
    %827 = vmatpush1.msra.mxu0 %v386
    %828 = vmatprep.subr.mxu0 %v383
    %829 = vmatpush1.msra.mxu0 %v382
    %830 = vmatprep.subr.mxu0 %v379
    %831 = vmatpush1.msra.mxu0 %v378
    %832 = vmatprep.subr.mxu0 %v375
    %833 = vmatpush1.msra.mxu0 %v374
    %834 = vmatprep.subr.mxu0 %v371
    %835 = vmatpush1.msra.mxu0 %v370
    %836 = vmatprep.subr.mxu0 %v367
    %837 = vmatpush1.msra.mxu0 %v366
    %838 = vmatprep.subr.mxu0 0.0
    %839 = vmatpush2.msra.mxu0 0.0
    %840 = vmatprep.subr.mxu0 0.0
    %841 = vmatpush2.msra.mxu0 0.0
    %842 = vmatprep.subr.mxu0 0.0
    %843 = vmatpush2.msra.mxu0 0.0
    %844 = vmatprep.subr.mxu0 0.0
    %845 = vmatpush2.msra.mxu0 0.0
    %846 = vmatprep.subr.mxu0 0.0
    %847 = vmatpush2.msra.mxu0 0.0
    %848 = vmatprep.subr.mxu0 0.0
    %849 = vmatpush2.msra.mxu0 0.0
    %850 = vmatprep.subr.mxu0 0.0
    %851 = vmatpush2.msra.mxu0 0.0
    %852 = vmatprep.subr.mxu0 0.0
    %853 = vmatpush2.msra.mxu0 0.0
    %854 = vmatprep.subr.mxu0 0.0
    %855 = vmatpush2.msra.mxu0 0.0
    %856 = vmatprep.subr.mxu0 0.0
    %857 = vmatpush2.msra.mxu0 0.0
    %858 = vmatprep.subr.mxu0 0.0
    %859 = vmatpush2.msra.mxu0 0.0
    %860 = vmatprep.subr.mxu0 0.0
    %861 = vmatpush2.msra.mxu0 0.0
    %862 = vmatprep.subr.mxu0 0.0
    %863 = vmatpush2.msra.mxu0 0.0
    %864 = vmatprep.subr.mxu0 0.0
    %865 = vmatpush2.msra.mxu0 0.0
    %866 = vmatprep.subr.mxu0 0.0
    %867 = vmatpush2.msra.mxu0 0.0
    %868 = vmatprep.subr.mxu0 0.0
    %869 = vmatpush2.msra.mxu0 0.0
    %870 = vmatprep.mubr.f32.mxu0 0.0
    %871 = vmatmul.mubr.f32.gmra.mxu0 %v805
    %v872 = vpop.f32.mrf.mxu0
    %v873 = vadd.f32 %v435, %v872
    %v874 = vpop.f32.mrf.mxu0
    %v875 = vadd.f32 %v439, %v874
    %876 = vdwg.mxu0
    %877 = vmatprep.subr.mxu0 %v429
    %878 = vmatpush1.msra.mxu0 %v428
    %879 = vmatprep.subr.mxu0 %v425
    %880 = vmatpush1.msra.mxu0 %v424
    %881 = vmatprep.subr.mxu0 %v421
    %882 = vmatpush1.msra.mxu0 %v420
    %883 = vmatprep.subr.mxu0 %v417
    %884 = vmatpush1.msra.mxu0 %v416
    %885 = vmatprep.subr.mxu0 %v413
    %886 = vmatpush1.msra.mxu0 %v412
    %887 = vmatprep.subr.mxu0 %v409
    %888 = vmatpush1.msra.mxu0 %v408
    %889 = vmatprep.subr.mxu0 %v405
    %890 = vmatpush1.msra.mxu0 %v404
    %891 = vmatprep.subr.mxu0 %v401
    %892 = vmatpush1.msra.mxu0 %v400
    %893 = vmatprep.subr.mxu0 %v397
    %894 = vmatpush1.msra.mxu0 %v396
    %895 = vmatprep.subr.mxu0 %v393
    %896 = vmatpush1.msra.mxu0 %v392
    %897 = vmatprep.subr.mxu0 %v389
    %898 = vmatpush1.msra.mxu0 %v388
    %899 = vmatprep.subr.mxu0 %v385
    %900 = vmatpush1.msra.mxu0 %v384
    %901 = vmatprep.subr.mxu0 %v381
    %902 = vmatpush1.msra.mxu0 %v380
    %903 = vmatprep.subr.mxu0 %v377
    %904 = vmatpush1.msra.mxu0 %v376
    %905 = vmatprep.subr.mxu0 %v373
    %906 = vmatpush1.msra.mxu0 %v372
    %907 = vmatprep.subr.mxu0 %v369
    %908 = vmatpush1.msra.mxu0 %v368
    %909 = vmatprep.subr.mxu0 0.0
    %910 = vmatpush2.msra.mxu0 0.0
    %911 = vmatprep.subr.mxu0 0.0
    %912 = vmatpush2.msra.mxu0 0.0
    %913 = vmatprep.subr.mxu0 0.0
    %914 = vmatpush2.msra.mxu0 0.0
    %915 = vmatprep.subr.mxu0 0.0
    %916 = vmatpush2.msra.mxu0 0.0
    %917 = vmatprep.subr.mxu0 0.0
    %918 = vmatpush2.msra.mxu0 0.0
    %919 = vmatprep.subr.mxu0 0.0
    %920 = vmatpush2.msra.mxu0 0.0
    %921 = vmatprep.subr.mxu0 0.0
    %922 = vmatpush2.msra.mxu0 0.0
    %923 = vmatprep.subr.mxu0 0.0
    %924 = vmatpush2.msra.mxu0 0.0
    %925 = vmatprep.subr.mxu0 0.0
    %926 = vmatpush2.msra.mxu0 0.0
    %927 = vmatprep.subr.mxu0 0.0
    %928 = vmatpush2.msra.mxu0 0.0
    %929 = vmatprep.subr.mxu0 0.0
    %930 = vmatpush2.msra.mxu0 0.0
    %931 = vmatprep.subr.mxu0 0.0
    %932 = vmatpush2.msra.mxu0 0.0
    %933 = vmatprep.subr.mxu0 0.0
    %934 = vmatpush2.msra.mxu0 0.0
    %935 = vmatprep.subr.mxu0 0.0
    %936 = vmatpush2.msra.mxu0 0.0
    %937 = vmatprep.subr.mxu0 0.0
    %938 = vmatpush2.msra.mxu0 0.0
    %939 = vmatprep.subr.mxu0 0.0
    %940 = vmatpush2.msra.mxu0 0.0
    %941 = vmatprep.mubr.f32.mxu0 0.0
    %942 = vmatmul.mubr.f32.gmra.mxu0 %v805
    %v943 = vpop.f32.mrf.mxu0
    %v944 = vadd.f32 %v443, %v943
    %v945 = vpop.f32.mrf.mxu0
    %v946 = vadd.f32 %v447, %v945
    %947 = vdwg.mxu0
    %v948 = vxor.u32 %v873, 2147483648
    %v949 = vxor.u32 %v875, 2147483648
    %v950 = vxor.u32 %v944, 2147483648
    %v951 = vmul.f32 %v948, 1.442695
    %v952 = vpow.pop %v951
    %v953 = vmul.f32 %v949, 1.442695
    %v954 = vpow.pop %v953
    %v955 = vmul.f32 %v950, 1.442695
    %v956 = vpow.pop %v955
    %v957 = vadd.f32 %v952, 1.0
    %v958 = vadd.f32 %v954, 1.0
    %v959 = vadd.f32 %v956, 1.0
    %v960 = vrcp.pop %v957
    %v961 = vmul.f32 1.0, %v960
    %v962 = vrcp.pop %v958
    %v963 = vmul.f32 1.0, %v962
    %v964 = vrcp.pop %v959
    %v965 = vmul.f32 1.0, %v964
    %v966 = vtanh.pop %v946
    %v967 = vmul.f32 %v963, %v615
    %v968 = vmul.f32 %v961, %v966
    %v969 = vadd.f32 %v967, %v968
    %v970 = vtanh.pop %v969
    %v971 = vmul.f32 %v965, %v970
    %s972 = scalar_lea.vmem %s0, 4
    %v973 = vld [vmem:[%s972] sm:$0x3]
    %975 = vset.pattern.permute.xlu0 0
    %976 = vperm.xlu0 %975, %v973
    %v977 = vpop.permute.xlu0 %976
    %v979 = vmul.f32 %v977, %v82
    %v980 = vmul.f32 %v977, %v86
    %v981 = vmul.f32 %v977, %v90
    %v982 = vmul.f32 %v977, %v94
    %v983 = vadd.f32 %v979, %v108
    %v984 = vadd.f32 %v980, %v112
    %v985 = vadd.f32 %v981, %v116
    %v986 = vadd.f32 %v982, %v120
    %987 = vmatprep.subr.mxu0 %v190
    %988 = vmatpush1.msra.mxu0 %v189
    %989 = vmatprep.subr.mxu0 %v186
    %990 = vmatpush1.msra.mxu0 %v185
    %991 = vmatprep.subr.mxu0 %v182
    %992 = vmatpush1.msra.mxu0 %v181
    %993 = vmatprep.subr.mxu0 %v178
    %994 = vmatpush1.msra.mxu0 %v177
    %995 = vmatprep.subr.mxu0 %v174
    %996 = vmatpush1.msra.mxu0 %v173
    %997 = vmatprep.subr.mxu0 %v170
    %998 = vmatpush1.msra.mxu0 %v169
    %999 = vmatprep.subr.mxu0 %v166
    %1000 = vmatpush1.msra.mxu0 %v165
    %1001 = vmatprep.subr.mxu0 %v162
    %1002 = vmatpush1.msra.mxu0 %v161
    %1003 = vmatprep.subr.mxu0 %v158
    %1004 = vmatpush1.msra.mxu0 %v157
    %1005 = vmatprep.subr.mxu0 %v154
    %1006 = vmatpush1.msra.mxu0 %v153
    %1007 = vmatprep.subr.mxu0 %v150
    %1008 = vmatpush1.msra.mxu0 %v149
    %1009 = vmatprep.subr.mxu0 %v146
    %1010 = vmatpush1.msra.mxu0 %v145
    %1011 = vmatprep.subr.mxu0 %v142
    %1012 = vmatpush1.msra.mxu0 %v141
    %1013 = vmatprep.subr.mxu0 %v138
    %1014 = vmatpush1.msra.mxu0 %v137
    %1015 = vmatprep.subr.mxu0 %v134
    %1016 = vmatpush1.msra.mxu0 %v133
    %1017 = vmatprep.subr.mxu0 %v130
    %1018 = vmatpush1.msra.mxu0 %v129
    %1019 = vmatprep.subr.mxu0 0.0
    %1020 = vmatpush2.msra.mxu0 0.0
    %1021 = vmatprep.subr.mxu0 0.0
    %1022 = vmatpush2.msra.mxu0 0.0
    %1023 = vmatprep.subr.mxu0 0.0
    %1024 = vmatpush2.msra.mxu0 0.0
    %1025 = vmatprep.subr.mxu0 0.0
    %1026 = vmatpush2.msra.mxu0 0.0
    %1027 = vmatprep.subr.mxu0 0.0
    %1028 = vmatpush2.msra.mxu0 0.0
    %1029 = vmatprep.subr.mxu0 0.0
    %1030 = vmatpush2.msra.mxu0 0.0
    %1031 = vmatprep.subr.mxu0 0.0
    %1032 = vmatpush2.msra.mxu0 0.0
    %1033 = vmatprep.subr.mxu0 0.0
    %1034 = vmatpush2.msra.mxu0 0.0
    %1035 = vmatprep.subr.mxu0 0.0
    %1036 = vmatpush2.msra.mxu0 0.0
    %1037 = vmatprep.subr.mxu0 0.0
    %1038 = vmatpush2.msra.mxu0 0.0
    %1039 = vmatprep.subr.mxu0 0.0
    %1040 = vmatpush2.msra.mxu0 0.0
    %1041 = vmatprep.subr.mxu0 0.0
    %1042 = vmatpush2.msra.mxu0 0.0
    %1043 = vmatprep.subr.mxu0 0.0
    %1044 = vmatpush2.msra.mxu0 0.0
    %1045 = vmatprep.subr.mxu0 0.0
    %1046 = vmatpush2.msra.mxu0 0.0
    %1047 = vmatprep.subr.mxu0 0.0
    %1048 = vmatpush2.msra.mxu0 0.0
    %1049 = vmatprep.subr.mxu0 0.0
    %1050 = vmatpush2.msra.mxu0 0.0
    %1051 = vmatprep.mubr.f32.mxu0 0.0
    %1052 = vmatmul.mubr.f32.gmra.mxu0 %v802
    %v1053 = vpop.f32.mrf.mxu0
    %v1054 = vadd.f32 0.0, %v1053
    %v1055 = vpop.f32.mrf.mxu0
    %v1056 = vadd.f32 0.0, %v1055
    %1057 = vdwg.mxu0
    %1058 = vmatprep.subr.mxu0 %v192
    %1059 = vmatpush1.msra.mxu0 %v191
    %1060 = vmatprep.subr.mxu0 %v188
    %1061 = vmatpush1.msra.mxu0 %v187
    %1062 = vmatprep.subr.mxu0 %v184
    %1063 = vmatpush1.msra.mxu0 %v183
    %1064 = vmatprep.subr.mxu0 %v180
    %1065 = vmatpush1.msra.mxu0 %v179
    %1066 = vmatprep.subr.mxu0 %v176
    %1067 = vmatpush1.msra.mxu0 %v175
    %1068 = vmatprep.subr.mxu0 %v172
    %1069 = vmatpush1.msra.mxu0 %v171
    %1070 = vmatprep.subr.mxu0 %v168
    %1071 = vmatpush1.msra.mxu0 %v167
    %1072 = vmatprep.subr.mxu0 %v164
    %1073 = vmatpush1.msra.mxu0 %v163
    %1074 = vmatprep.subr.mxu0 %v160
    %1075 = vmatpush1.msra.mxu0 %v159
    %1076 = vmatprep.subr.mxu0 %v156
    %1077 = vmatpush1.msra.mxu0 %v155
    %1078 = vmatprep.subr.mxu0 %v152
    %1079 = vmatpush1.msra.mxu0 %v151
    %1080 = vmatprep.subr.mxu0 %v148
    %1081 = vmatpush1.msra.mxu0 %v147
    %1082 = vmatprep.subr.mxu0 %v144
    %1083 = vmatpush1.msra.mxu0 %v143
    %1084 = vmatprep.subr.mxu0 %v140
    %1085 = vmatpush1.msra.mxu0 %v139
    %1086 = vmatprep.subr.mxu0 %v136
    %1087 = vmatpush1.msra.mxu0 %v135
    %1088 = vmatprep.subr.mxu0 %v132
    %1089 = vmatpush1.msra.mxu0 %v131
    %1090 = vmatprep.subr.mxu0 0.0
    %1091 = vmatpush2.msra.mxu0 0.0
    %1092 = vmatprep.subr.mxu0 0.0
    %1093 = vmatpush2.msra.mxu0 0.0
    %1094 = vmatprep.subr.mxu0 0.0
    %1095 = vmatpush2.msra.mxu0 0.0
    %1096 = vmatprep.subr.mxu0 0.0
    %1097 = vmatpush2.msra.mxu0 0.0
    %1098 = vmatprep.subr.mxu0 0.0
    %1099 = vmatpush2.msra.mxu0 0.0
    %1100 = vmatprep.subr.mxu0 0.0
    %1101 = vmatpush2.msra.mxu0 0.0
    %1102 = vmatprep.subr.mxu0 0.0
    %1103 = vmatpush2.msra.mxu0 0.0
    %1104 = vmatprep.subr.mxu0 0.0
    %1105 = vmatpush2.msra.mxu0 0.0
    %1106 = vmatprep.subr.mxu0 0.0
    %1107 = vmatpush2.msra.mxu0 0.0
    %1108 = vmatprep.subr.mxu0 0.0
    %1109 = vmatpush2.msra.mxu0 0.0
    %1110 = vmatprep.subr.mxu0 0.0
    %1111 = vmatpush2.msra.mxu0 0.0
    %1112 = vmatprep.subr.mxu0 0.0
    %1113 = vmatpush2.msra.mxu0 0.0
    %1114 = vmatprep.subr.mxu0 0.0
    %1115 = vmatpush2.msra.mxu0 0.0
    %1116 = vmatprep.subr.mxu0 0.0
    %1117 = vmatpush2.msra.mxu0 0.0
    %1118 = vmatprep.subr.mxu0 0.0
    %1119 = vmatpush2.msra.mxu0 0.0
    %1120 = vmatprep.subr.mxu0 0.0
    %1121 = vmatpush2.msra.mxu0 0.0
    %1122 = vmatprep.mubr.f32.mxu0 0.0
    %1123 = vmatmul.mubr.f32.gmra.mxu0 %v802
    %v1124 = vpop.f32.mrf.mxu0
    %v1125 = vadd.f32 0.0, %v1124
    %v1126 = vpop.f32.mrf.mxu0
    %v1127 = vadd.f32 0.0, %v1126
    %1128 = vdwg.mxu0
    %v1129 = vadd.f32 %v983, %v1054
    %v1130 = vadd.f32 %v984, %v1056
    %v1131 = vadd.f32 %v985, %v1125
    %v1132 = vadd.f32 %v986, %v1127
    %v1133 = vxor.u32 %v1129, 2147483648
    %v1134 = vxor.u32 %v1130, 2147483648
    %v1135 = vxor.u32 %v1131, 2147483648
    %v1136 = vmul.f32 %v1133, 1.442695
    %v1137 = vpow.pop %v1136
    %v1138 = vmul.f32 %v1134, 1.442695
    %v1139 = vpow.pop %v1138
    %v1140 = vmul.f32 %v1135, 1.442695
    %v1141 = vpow.pop %v1140
    %v1142 = vadd.f32 %v1137, 1.0
    %v1143 = vadd.f32 %v1139, 1.0
    %v1144 = vadd.f32 %v1141, 1.0
    %v1145 = vrcp.pop %v1142
    %v1146 = vmul.f32 1.0, %v1145
    %v1147 = vrcp.pop %v1143
    %v1148 = vmul.f32 1.0, %v1147
    %v1149 = vrcp.pop %v1144
    %v1150 = vmul.f32 1.0, %v1149
    %v1151 = vtanh.pop %v1132
    %v1152 = vmul.f32 %v1148, %v800
    %v1153 = vmul.f32 %v1146, %v1151
    %v1154 = vadd.f32 %v1152, %v1153
    %v1155 = vtanh.pop %v1154
    %v1156 = vmul.f32 %v1150, %v1155
    %1157 = vrot.lane.b32.xlu0 %v971, 64
    %v1158 = vpop.permute.xlu0 %1157
    %v1159 = vadd.f32 %v1156, %v1158
    %1160 = vmatprep.subr.mxu0 %v427
    %1161 = vmatpush1.msra.mxu0 %v426
    %1162 = vmatprep.subr.mxu0 %v423
    %1163 = vmatpush1.msra.mxu0 %v422
    %1164 = vmatprep.subr.mxu0 %v419
    %1165 = vmatpush1.msra.mxu0 %v418
    %1166 = vmatprep.subr.mxu0 %v415
    %1167 = vmatpush1.msra.mxu0 %v414
    %1168 = vmatprep.subr.mxu0 %v411
    %1169 = vmatpush1.msra.mxu0 %v410
    %1170 = vmatprep.subr.mxu0 %v407
    %1171 = vmatpush1.msra.mxu0 %v406
    %1172 = vmatprep.subr.mxu0 %v403
    %1173 = vmatpush1.msra.mxu0 %v402
    %1174 = vmatprep.subr.mxu0 %v399
    %1175 = vmatpush1.msra.mxu0 %v398
    %1176 = vmatprep.subr.mxu0 %v395
    %1177 = vmatpush1.msra.mxu0 %v394
    %1178 = vmatprep.subr.mxu0 %v391
    %1179 = vmatpush1.msra.mxu0 %v390
    %1180 = vmatprep.subr.mxu0 %v387
    %1181 = vmatpush1.msra.mxu0 %v386
    %1182 = vmatprep.subr.mxu0 %v383
    %1183 = vmatpush1.msra.mxu0 %v382
    %1184 = vmatprep.subr.mxu0 %v379
    %1185 = vmatpush1.msra.mxu0 %v378
    %1186 = vmatprep.subr.mxu0 %v375
    %1187 = vmatpush1.msra.mxu0 %v374
    %1188 = vmatprep.subr.mxu0 %v371
    %1189 = vmatpush1.msra.mxu0 %v370
    %1190 = vmatprep.subr.mxu0 %v367
    %1191 = vmatpush1.msra.mxu0 %v366
    %1192 = vmatprep.subr.mxu0 0.0
    %1193 = vmatpush2.msra.mxu0 0.0
    %1194 = vmatprep.subr.mxu0 0.0
    %1195 = vmatpush2.msra.mxu0 0.0
    %1196 = vmatprep.subr.mxu0 0.0
    %1197 = vmatpush2.msra.mxu0 0.0
    %1198 = vmatprep.subr.mxu0 0.0
    %1199 = vmatpush2.msra.mxu0 0.0
    %1200 = vmatprep.subr.mxu0 0.0
    %1201 = vmatpush2.msra.mxu0 0.0
    %1202 = vmatprep.subr.mxu0 0.0
    %1203 = vmatpush2.msra.mxu0 0.0
    %1204 = vmatprep.subr.mxu0 0.0
    %1205 = vmatpush2.msra.mxu0 0.0
    %1206 = vmatprep.subr.mxu0 0.0
    %1207 = vmatpush2.msra.mxu0 0.0
    %1208 = vmatprep.subr.mxu0 0.0
    %1209 = vmatpush2.msra.mxu0 0.0
    %1210 = vmatprep.subr.mxu0 0.0
    %1211 = vmatpush2.msra.mxu0 0.0
    %1212 = vmatprep.subr.mxu0 0.0
    %1213 = vmatpush2.msra.mxu0 0.0
    %1214 = vmatprep.subr.mxu0 0.0
    %1215 = vmatpush2.msra.mxu0 0.0
    %1216 = vmatprep.subr.mxu0 0.0
    %1217 = vmatpush2.msra.mxu0 0.0
    %1218 = vmatprep.subr.mxu0 0.0
    %1219 = vmatpush2.msra.mxu0 0.0
    %1220 = vmatprep.subr.mxu0 0.0
    %1221 = vmatpush2.msra.mxu0 0.0
    %1222 = vmatprep.subr.mxu0 0.0
    %1223 = vmatpush2.msra.mxu0 0.0
    %1224 = vmatprep.mubr.f32.mxu0 0.0
    %1225 = vmatmul.mubr.f32.gmra.mxu0 %v1159
    %v1226 = vpop.f32.mrf.mxu0
    %v1227 = vadd.f32 %v435, %v1226
    %v1228 = vpop.f32.mrf.mxu0
    %v1229 = vadd.f32 %v439, %v1228
    %1230 = vdwg.mxu0
    %1231 = vmatprep.subr.mxu0 %v429
    %1232 = vmatpush1.msra.mxu0 %v428
    %1233 = vmatprep.subr.mxu0 %v425
    %1234 = vmatpush1.msra.mxu0 %v424
    %1235 = vmatprep.subr.mxu0 %v421
    %1236 = vmatpush1.msra.mxu0 %v420
    %1237 = vmatprep.subr.mxu0 %v417
    %1238 = vmatpush1.msra.mxu0 %v416
    %1239 = vmatprep.subr.mxu0 %v413
    %1240 = vmatpush1.msra.mxu0 %v412
    %1241 = vmatprep.subr.mxu0 %v409
    %1242 = vmatpush1.msra.mxu0 %v408
    %1243 = vmatprep.subr.mxu0 %v405
    %1244 = vmatpush1.msra.mxu0 %v404
    %1245 = vmatprep.subr.mxu0 %v401
    %1246 = vmatpush1.msra.mxu0 %v400
    %1247 = vmatprep.subr.mxu0 %v397
    %1248 = vmatpush1.msra.mxu0 %v396
    %1249 = vmatprep.subr.mxu0 %v393
    %1250 = vmatpush1.msra.mxu0 %v392
    %1251 = vmatprep.subr.mxu0 %v389
    %1252 = vmatpush1.msra.mxu0 %v388
    %1253 = vmatprep.subr.mxu0 %v385
    %1254 = vmatpush1.msra.mxu0 %v384
    %1255 = vmatprep.subr.mxu0 %v381
    %1256 = vmatpush1.msra.mxu0 %v380
    %1257 = vmatprep.subr.mxu0 %v377
    %1258 = vmatpush1.msra.mxu0 %v376
    %1259 = vmatprep.subr.mxu0 %v373
    %1260 = vmatpush1.msra.mxu0 %v372
    %1261 = vmatprep.subr.mxu0 %v369
    %1262 = vmatpush1.msra.mxu0 %v368
    %1263 = vmatprep.subr.mxu0 0.0
    %1264 = vmatpush2.msra.mxu0 0.0
    %1265 = vmatprep.subr.mxu0 0.0
    %1266 = vmatpush2.msra.mxu0 0.0
    %1267 = vmatprep.subr.mxu0 0.0
    %1268 = vmatpush2.msra.mxu0 0.0
    %1269 = vmatprep.subr.mxu0 0.0
    %1270 = vmatpush2.msra.mxu0 0.0
    %1271 = vmatprep.subr.mxu0 0.0
    %1272 = vmatpush2.msra.mxu0 0.0
    %1273 = vmatprep.subr.mxu0 0.0
    %1274 = vmatpush2.msra.mxu0 0.0
    %1275 = vmatprep.subr.mxu0 0.0
    %1276 = vmatpush2.msra.mxu0 0.0
    %1277 = vmatprep.subr.mxu0 0.0
    %1278 = vmatpush2.msra.mxu0 0.0
    %1279 = vmatprep.subr.mxu0 0.0
    %1280 = vmatpush2.msra.mxu0 0.0
    %1281 = vmatprep.subr.mxu0 0.0
    %1282 = vmatpush2.msra.mxu0 0.0
    %1283 = vmatprep.subr.mxu0 0.0
    %1284 = vmatpush2.msra.mxu0 0.0
    %1285 = vmatprep.subr.mxu0 0.0
    %1286 = vmatpush2.msra.mxu0 0.0
    %1287 = vmatprep.subr.mxu0 0.0
    %1288 = vmatpush2.msra.mxu0 0.0
    %1289 = vmatprep.subr.mxu0 0.0
    %1290 = vmatpush2.msra.mxu0 0.0
    %1291 = vmatprep.subr.mxu0 0.0
    %1292 = vmatpush2.msra.mxu0 0.0
    %1293 = vmatprep.subr.mxu0 0.0
    %1294 = vmatpush2.msra.mxu0 0.0
    %1295 = vmatprep.mubr.f32.mxu0 0.0
    %1296 = vmatmul.mubr.f32.gmra.mxu0 %v1159
    %v1297 = vpop.f32.mrf.mxu0
    %v1298 = vadd.f32 %v443, %v1297
    %v1299 = vpop.f32.mrf.mxu0
    %v1300 = vadd.f32 %v447, %v1299
    %1301 = vdwg.mxu0
    %v1302 = vxor.u32 %v1227, 2147483648
    %v1303 = vxor.u32 %v1229, 2147483648
    %v1304 = vxor.u32 %v1298, 2147483648
    %v1305 = vmul.f32 %v1302, 1.442695
    %v1306 = vpow.pop %v1305
    %v1307 = vmul.f32 %v1303, 1.442695
    %v1308 = vpow.pop %v1307
    %v1309 = vmul.f32 %v1304, 1.442695
    %v1310 = vpow.pop %v1309
    %v1311 = vadd.f32 %v1306, 1.0
    %v1312 = vadd.f32 %v1308, 1.0
    %v1313 = vadd.f32 %v1310, 1.0
    %v1314 = vrcp.pop %v1311
    %v1315 = vmul.f32 1.0, %v1314
    %v1316 = vrcp.pop %v1312
    %v1317 = vmul.f32 1.0, %v1316
    %v1318 = vrcp.pop %v1313
    %v1319 = vmul.f32 1.0, %v1318
    %v1320 = vtanh.pop %v1300
    %v1321 = vmul.f32 %v1317, %v969
    %v1322 = vmul.f32 %v1315, %v1320
    %v1323 = vadd.f32 %v1321, %v1322
    %v1324 = vtanh.pop %v1323
    %v1325 = vmul.f32 %v1319, %v1324
    %s1326 = scalar_lea.vmem %s0, 6
    %v1327 = vld [vmem:[%s1326] sm:$0x3]
    %1329 = vset.pattern.permute.xlu0 0
    %1330 = vperm.xlu0 %1329, %v1327
    %v1331 = vpop.permute.xlu0 %1330
    %v1333 = vmul.f32 %v1331, %v82
    %v1334 = vmul.f32 %v1331, %v86
    %v1335 = vmul.f32 %v1331, %v90
    %v1336 = vmul.f32 %v1331, %v94
    %v1337 = vadd.f32 %v1333, %v108
    %v1338 = vadd.f32 %v1334, %v112
    %v1339 = vadd.f32 %v1335, %v116
    %v1340 = vadd.f32 %v1336, %v120
    %1341 = vmatprep.subr.mxu0 %v190
    %1342 = vmatpush1.msra.mxu0 %v189
    %1343 = vmatprep.subr.mxu0 %v186
    %1344 = vmatpush1.msra.mxu0 %v185
    %1345 = vmatprep.subr.mxu0 %v182
    %1346 = vmatpush1.msra.mxu0 %v181
    %1347 = vmatprep.subr.mxu0 %v178
    %1348 = vmatpush1.msra.mxu0 %v177
    %1349 = vmatprep.subr.mxu0 %v174
    %1350 = vmatpush1.msra.mxu0 %v173
    %1351 = vmatprep.subr.mxu0 %v170
    %1352 = vmatpush1.msra.mxu0 %v169
    %1353 = vmatprep.subr.mxu0 %v166
    %1354 = vmatpush1.msra.mxu0 %v165
    %1355 = vmatprep.subr.mxu0 %v162
    %1356 = vmatpush1.msra.mxu0 %v161
    %1357 = vmatprep.subr.mxu0 %v158
    %1358 = vmatpush1.msra.mxu0 %v157
    %1359 = vmatprep.subr.mxu0 %v154
    %1360 = vmatpush1.msra.mxu0 %v153
    %1361 = vmatprep.subr.mxu0 %v150
    %1362 = vmatpush1.msra.mxu0 %v149
    %1363 = vmatprep.subr.mxu0 %v146
    %1364 = vmatpush1.msra.mxu0 %v145
    %1365 = vmatprep.subr.mxu0 %v142
    %1366 = vmatpush1.msra.mxu0 %v141
    %1367 = vmatprep.subr.mxu0 %v138
    %1368 = vmatpush1.msra.mxu0 %v137
    %1369 = vmatprep.subr.mxu0 %v134
    %1370 = vmatpush1.msra.mxu0 %v133
    %1371 = vmatprep.subr.mxu0 %v130
    %1372 = vmatpush1.msra.mxu0 %v129
    %1373 = vmatprep.subr.mxu0 0.0
    %1374 = vmatpush2.msra.mxu0 0.0
    %1375 = vmatprep.subr.mxu0 0.0
    %1376 = vmatpush2.msra.mxu0 0.0
    %1377 = vmatprep.subr.mxu0 0.0
    %1378 = vmatpush2.msra.mxu0 0.0
    %1379 = vmatprep.subr.mxu0 0.0
    %1380 = vmatpush2.msra.mxu0 0.0
    %1381 = vmatprep.subr.mxu0 0.0
    %1382 = vmatpush2.msra.mxu0 0.0
    %1383 = vmatprep.subr.mxu0 0.0
    %1384 = vmatpush2.msra.mxu0 0.0
    %1385 = vmatprep.subr.mxu0 0.0
    %1386 = vmatpush2.msra.mxu0 0.0
    %1387 = vmatprep.subr.mxu0 0.0
    %1388 = vmatpush2.msra.mxu0 0.0
    %1389 = vmatprep.subr.mxu0 0.0
    %1390 = vmatpush2.msra.mxu0 0.0
    %1391 = vmatprep.subr.mxu0 0.0
    %1392 = vmatpush2.msra.mxu0 0.0
    %1393 = vmatprep.subr.mxu0 0.0
    %1394 = vmatpush2.msra.mxu0 0.0
    %1395 = vmatprep.subr.mxu0 0.0
    %1396 = vmatpush2.msra.mxu0 0.0
    %1397 = vmatprep.subr.mxu0 0.0
    %1398 = vmatpush2.msra.mxu0 0.0
    %1399 = vmatprep.subr.mxu0 0.0
    %1400 = vmatpush2.msra.mxu0 0.0
    %1401 = vmatprep.subr.mxu0 0.0
    %1402 = vmatpush2.msra.mxu0 0.0
    %1403 = vmatprep.subr.mxu0 0.0
    %1404 = vmatpush2.msra.mxu0 0.0
    %1405 = vmatprep.mubr.f32.mxu0 0.0
    %1406 = vmatmul.mubr.f32.gmra.mxu0 %v1156
    %v1407 = vpop.f32.mrf.mxu0
    %v1408 = vadd.f32 0.0, %v1407
    %v1409 = vpop.f32.mrf.mxu0
    %v1410 = vadd.f32 0.0, %v1409
    %1411 = vdwg.mxu0
    %1412 = vmatprep.subr.mxu0 %v192
    %1413 = vmatpush1.msra.mxu0 %v191
    %1414 = vmatprep.subr.mxu0 %v188
    %1415 = vmatpush1.msra.mxu0 %v187
    %1416 = vmatprep.subr.mxu0 %v184
    %1417 = vmatpush1.msra.mxu0 %v183
    %1418 = vmatprep.subr.mxu0 %v180
    %1419 = vmatpush1.msra.mxu0 %v179
    %1420 = vmatprep.subr.mxu0 %v176
    %1421 = vmatpush1.msra.mxu0 %v175
    %1422 = vmatprep.subr.mxu0 %v172
    %1423 = vmatpush1.msra.mxu0 %v171
    %1424 = vmatprep.subr.mxu0 %v168
    %1425 = vmatpush1.msra.mxu0 %v167
    %1426 = vmatprep.subr.mxu0 %v164
    %1427 = vmatpush1.msra.mxu0 %v163
    %1428 = vmatprep.subr.mxu0 %v160
    %1429 = vmatpush1.msra.mxu0 %v159
    %1430 = vmatprep.subr.mxu0 %v156
    %1431 = vmatpush1.msra.mxu0 %v155
    %1432 = vmatprep.subr.mxu0 %v152
    %1433 = vmatpush1.msra.mxu0 %v151
    %1434 = vmatprep.subr.mxu0 %v148
    %1435 = vmatpush1.msra.mxu0 %v147
    %1436 = vmatprep.subr.mxu0 %v144
    %1437 = vmatpush1.msra.mxu0 %v143
    %1438 = vmatprep.subr.mxu0 %v140
    %1439 = vmatpush1.msra.mxu0 %v139
    %1440 = vmatprep.subr.mxu0 %v136
    %1441 = vmatpush1.msra.mxu0 %v135
    %1442 = vmatprep.subr.mxu0 %v132
    %1443 = vmatpush1.msra.mxu0 %v131
    %1444 = vmatprep.subr.mxu0 0.0
    %1445 = vmatpush2.msra.mxu0 0.0
    %1446 = vmatprep.subr.mxu0 0.0
    %1447 = vmatpush2.msra.mxu0 0.0
    %1448 = vmatprep.subr.mxu0 0.0
    %1449 = vmatpush2.msra.mxu0 0.0
    %1450 = vmatprep.subr.mxu0 0.0
    %1451 = vmatpush2.msra.mxu0 0.0
    %1452 = vmatprep.subr.mxu0 0.0
    %1453 = vmatpush2.msra.mxu0 0.0
    %1454 = vmatprep.subr.mxu0 0.0
    %1455 = vmatpush2.msra.mxu0 0.0
    %1456 = vmatprep.subr.mxu0 0.0
    %1457 = vmatpush2.msra.mxu0 0.0
    %1458 = vmatprep.subr.mxu0 0.0
    %1459 = vmatpush2.msra.mxu0 0.0
    %1460 = vmatprep.subr.mxu0 0.0
    %1461 = vmatpush2.msra.mxu0 0.0
    %1462 = vmatprep.subr.mxu0 0.0
    %1463 = vmatpush2.msra.mxu0 0.0
    %1464 = vmatprep.subr.mxu0 0.0
    %1465 = vmatpush2.msra.mxu0 0.0
    %1466 = vmatprep.subr.mxu0 0.0
    %1467 = vmatpush2.msra.mxu0 0.0
    %1468 = vmatprep.subr.mxu0 0.0
    %1469 = vmatpush2.msra.mxu0 0.0
    %1470 = vmatprep.subr.mxu0 0.0
    %1471 = vmatpush2.msra.mxu0 0.0
    %1472 = vmatprep.subr.mxu0 0.0
    %1473 = vmatpush2.msra.mxu0 0.0
    %1474 = vmatprep.subr.mxu0 0.0
    %1475 = vmatpush2.msra.mxu0 0.0
    %1476 = vmatprep.mubr.f32.mxu0 0.0
    %1477 = vmatmul.mubr.f32.gmra.mxu0 %v1156
    %v1478 = vpop.f32.mrf.mxu0
    %v1479 = vadd.f32 0.0, %v1478
    %v1480 = vpop.f32.mrf.mxu0
    %v1481 = vadd.f32 0.0, %v1480
    %1482 = vdwg.mxu0
    %v1483 = vadd.f32 %v1337, %v1408
    %v1484 = vadd.f32 %v1338, %v1410
    %v1485 = vadd.f32 %v1339, %v1479
    %v1486 = vadd.f32 %v1340, %v1481
    %v1487 = vxor.u32 %v1483, 2147483648
    %v1488 = vxor.u32 %v1484, 2147483648
    %v1489 = vxor.u32 %v1485, 2147483648
    %v1490 = vmul.f32 %v1487, 1.442695
    %v1491 = vpow.pop %v1490
    %v1492 = vmul.f32 %v1488, 1.442695
    %v1493 = vpow.pop %v1492
    %v1494 = vmul.f32 %v1489, 1.442695
    %v1495 = vpow.pop %v1494
    %v1496 = vadd.f32 %v1491, 1.0
    %v1497 = vadd.f32 %v1493, 1.0
    %v1498 = vadd.f32 %v1495, 1.0
    %v1499 = vrcp.pop %v1496
    %v1500 = vmul.f32 1.0, %v1499
    %v1501 = vrcp.pop %v1497
    %v1502 = vmul.f32 1.0, %v1501
    %v1503 = vrcp.pop %v1498
    %v1504 = vmul.f32 1.0, %v1503
    %v1505 = vtanh.pop %v1486
    %v1506 = vmul.f32 %v1502, %v1154
    %v1507 = vmul.f32 %v1500, %v1505
    %v1508 = vadd.f32 %v1506, %v1507
    %v1509 = vtanh.pop %v1508
    %v1510 = vmul.f32 %v1504, %v1509
    %1511 = vrot.lane.b32.xlu0 %v1325, 64
    %v1512 = vpop.permute.xlu0 %1511
    %v1513 = vadd.f32 %v1510, %v1512
    %1514 = vmatprep.subr.mxu0 %v427
    %1515 = vmatpush1.msra.mxu0 %v426
    %1516 = vmatprep.subr.mxu0 %v423
    %1517 = vmatpush1.msra.mxu0 %v422
    %1518 = vmatprep.subr.mxu0 %v419
    %1519 = vmatpush1.msra.mxu0 %v418
    %1520 = vmatprep.subr.mxu0 %v415
    %1521 = vmatpush1.msra.mxu0 %v414
    %1522 = vmatprep.subr.mxu0 %v411
    %1523 = vmatpush1.msra.mxu0 %v410
    %1524 = vmatprep.subr.mxu0 %v407
    %1525 = vmatpush1.msra.mxu0 %v406
    %1526 = vmatprep.subr.mxu0 %v403
    %1527 = vmatpush1.msra.mxu0 %v402
    %1528 = vmatprep.subr.mxu0 %v399
    %1529 = vmatpush1.msra.mxu0 %v398
    %1530 = vmatprep.subr.mxu0 %v395
    %1531 = vmatpush1.msra.mxu0 %v394
    %1532 = vmatprep.subr.mxu0 %v391
    %1533 = vmatpush1.msra.mxu0 %v390
    %1534 = vmatprep.subr.mxu0 %v387
    %1535 = vmatpush1.msra.mxu0 %v386
    %1536 = vmatprep.subr.mxu0 %v383
    %1537 = vmatpush1.msra.mxu0 %v382
    %1538 = vmatprep.subr.mxu0 %v379
    %1539 = vmatpush1.msra.mxu0 %v378
    %1540 = vmatprep.subr.mxu0 %v375
    %1541 = vmatpush1.msra.mxu0 %v374
    %1542 = vmatprep.subr.mxu0 %v371
    %1543 = vmatpush1.msra.mxu0 %v370
    %1544 = vmatprep.subr.mxu0 %v367
    %1545 = vmatpush1.msra.mxu0 %v366
    %1546 = vmatprep.subr.mxu0 0.0
    %1547 = vmatpush2.msra.mxu0 0.0
    %1548 = vmatprep.subr.mxu0 0.0
    %1549 = vmatpush2.msra.mxu0 0.0
    %1550 = vmatprep.subr.mxu0 0.0
    %1551 = vmatpush2.msra.mxu0 0.0
    %1552 = vmatprep.subr.mxu0 0.0
    %1553 = vmatpush2.msra.mxu0 0.0
    %1554 = vmatprep.subr.mxu0 0.0
    %1555 = vmatpush2.msra.mxu0 0.0
    %1556 = vmatprep.subr.mxu0 0.0
    %1557 = vmatpush2.msra.mxu0 0.0
    %1558 = vmatprep.subr.mxu0 0.0
    %1559 = vmatpush2.msra.mxu0 0.0
    %1560 = vmatprep.subr.mxu0 0.0
    %1561 = vmatpush2.msra.mxu0 0.0
    %1562 = vmatprep.subr.mxu0 0.0
    %1563 = vmatpush2.msra.mxu0 0.0
    %1564 = vmatprep.subr.mxu0 0.0
    %1565 = vmatpush2.msra.mxu0 0.0
    %1566 = vmatprep.subr.mxu0 0.0
    %1567 = vmatpush2.msra.mxu0 0.0
    %1568 = vmatprep.subr.mxu0 0.0
    %1569 = vmatpush2.msra.mxu0 0.0
    %1570 = vmatprep.subr.mxu0 0.0
    %1571 = vmatpush2.msra.mxu0 0.0
    %1572 = vmatprep.subr.mxu0 0.0
    %1573 = vmatpush2.msra.mxu0 0.0
    %1574 = vmatprep.subr.mxu0 0.0
    %1575 = vmatpush2.msra.mxu0 0.0
    %1576 = vmatprep.subr.mxu0 0.0
    %1577 = vmatpush2.msra.mxu0 0.0
    %1578 = vmatprep.mubr.f32.mxu0 0.0
    %1579 = vmatmul.mubr.f32.gmra.mxu0 %v1513
    %v1580 = vpop.f32.mrf.mxu0
    %v1581 = vadd.f32 %v435, %v1580
    %v1582 = vpop.f32.mrf.mxu0
    %v1583 = vadd.f32 %v439, %v1582
    %1584 = vdwg.mxu0
    %1585 = vmatprep.subr.mxu0 %v429
    %1586 = vmatpush1.msra.mxu0 %v428
    %1587 = vmatprep.subr.mxu0 %v425
    %1588 = vmatpush1.msra.mxu0 %v424
    %1589 = vmatprep.subr.mxu0 %v421
    %1590 = vmatpush1.msra.mxu0 %v420
    %1591 = vmatprep.subr.mxu0 %v417
    %1592 = vmatpush1.msra.mxu0 %v416
    %1593 = vmatprep.subr.mxu0 %v413
    %1594 = vmatpush1.msra.mxu0 %v412
    %1595 = vmatprep.subr.mxu0 %v409
    %1596 = vmatpush1.msra.mxu0 %v408
    %1597 = vmatprep.subr.mxu0 %v405
    %1598 = vmatpush1.msra.mxu0 %v404
    %1599 = vmatprep.subr.mxu0 %v401
    %1600 = vmatpush1.msra.mxu0 %v400
    %1601 = vmatprep.subr.mxu0 %v397
    %1602 = vmatpush1.msra.mxu0 %v396
    %1603 = vmatprep.subr.mxu0 %v393
    %1604 = vmatpush1.msra.mxu0 %v392
    %1605 = vmatprep.subr.mxu0 %v389
    %1606 = vmatpush1.msra.mxu0 %v388
    %1607 = vmatprep.subr.mxu0 %v385
    %1608 = vmatpush1.msra.mxu0 %v384
    %1609 = vmatprep.subr.mxu0 %v381
    %1610 = vmatpush1.msra.mxu0 %v380
    %1611 = vmatprep.subr.mxu0 %v377
    %1612 = vmatpush1.msra.mxu0 %v376
    %1613 = vmatprep.subr.mxu0 %v373
    %1614 = vmatpush1.msra.mxu0 %v372
    %1615 = vmatprep.subr.mxu0 %v369
    %1616 = vmatpush1.msra.mxu0 %v368
    %1617 = vmatprep.subr.mxu0 0.0
    %1618 = vmatpush2.msra.mxu0 0.0
    %1619 = vmatprep.subr.mxu0 0.0
    %1620 = vmatpush2.msra.mxu0 0.0
    %1621 = vmatprep.subr.mxu0 0.0
    %1622 = vmatpush2.msra.mxu0 0.0
    %1623 = vmatprep.subr.mxu0 0.0
    %1624 = vmatpush2.msra.mxu0 0.0
    %1625 = vmatprep.subr.mxu0 0.0
    %1626 = vmatpush2.msra.mxu0 0.0
    %1627 = vmatprep.subr.mxu0 0.0
    %1628 = vmatpush2.msra.mxu0 0.0
    %1629 = vmatprep.subr.mxu0 0.0
    %1630 = vmatpush2.msra.mxu0 0.0
    %1631 = vmatprep.subr.mxu0 0.0
    %1632 = vmatpush2.msra.mxu0 0.0
    %1633 = vmatprep.subr.mxu0 0.0
    %1634 = vmatpush2.msra.mxu0 0.0
    %1635 = vmatprep.subr.mxu0 0.0
    %1636 = vmatpush2.msra.mxu0 0.0
    %1637 = vmatprep.subr.mxu0 0.0
    %1638 = vmatpush2.msra.mxu0 0.0
    %1639 = vmatprep.subr.mxu0 0.0
    %1640 = vmatpush2.msra.mxu0 0.0
    %1641 = vmatprep.subr.mxu0 0.0
    %1642 = vmatpush2.msra.mxu0 0.0
    %1643 = vmatprep.subr.mxu0 0.0
    %1644 = vmatpush2.msra.mxu0 0.0
    %1645 = vmatprep.subr.mxu0 0.0
    %1646 = vmatpush2.msra.mxu0 0.0
    %1647 = vmatprep.subr.mxu0 0.0
    %1648 = vmatpush2.msra.mxu0 0.0
    %1649 = vmatprep.mubr.f32.mxu0 0.0
    %1650 = vmatmul.mubr.f32.gmra.mxu0 %v1513
    %v1651 = vpop.f32.mrf.mxu0
    %v1652 = vadd.f32 %v443, %v1651
    %v1653 = vpop.f32.mrf.mxu0
    %v1654 = vadd.f32 %v447, %v1653
    %1655 = vdwg.mxu0
    %v1656 = vxor.u32 %v1581, 2147483648
    %v1657 = vxor.u32 %v1583, 2147483648
    %v1658 = vxor.u32 %v1652, 2147483648
    %v1659 = vmul.f32 %v1656, 1.442695
    %v1660 = vpow.pop %v1659
    %v1661 = vmul.f32 %v1657, 1.442695
    %v1662 = vpow.pop %v1661
    %v1663 = vmul.f32 %v1658, 1.442695
    %v1664 = vpow.pop %v1663
    %v1665 = vadd.f32 %v1660, 1.0
    %v1666 = vadd.f32 %v1662, 1.0
    %v1667 = vadd.f32 %v1664, 1.0
    %v1668 = vrcp.pop %v1665
    %v1669 = vmul.f32 1.0, %v1668
    %v1670 = vrcp.pop %v1666
    %v1671 = vmul.f32 1.0, %v1670
    %v1672 = vrcp.pop %v1667
    %v1673 = vmul.f32 1.0, %v1672
    %v1674 = vtanh.pop %v1654
    %v1675 = vmul.f32 %v1671, %v1323
    %v1676 = vmul.f32 %v1669, %v1674
    %v1677 = vadd.f32 %v1675, %v1676
    %v1678 = vtanh.pop %v1677
    %v1679 = vmul.f32 %v1673, %v1678
    %s1680 = scalar_lea.vmem %s0, 8
    %v1681 = vld [vmem:[%s1680] sm:$0x3]
    %1683 = vset.pattern.permute.xlu0 0
    %1684 = vperm.xlu0 %1683, %v1681
    %v1685 = vpop.permute.xlu0 %1684
    %v1687 = vmul.f32 %v1685, %v82
    %v1688 = vmul.f32 %v1685, %v86
    %v1689 = vmul.f32 %v1685, %v90
    %v1690 = vmul.f32 %v1685, %v94
    %v1691 = vadd.f32 %v1687, %v108
    %v1692 = vadd.f32 %v1688, %v112
    %v1693 = vadd.f32 %v1689, %v116
    %v1694 = vadd.f32 %v1690, %v120
    %1695 = vmatprep.subr.mxu0 %v190
    %1696 = vmatpush1.msra.mxu0 %v189
    %1697 = vmatprep.subr.mxu0 %v186
    %1698 = vmatpush1.msra.mxu0 %v185
    %1699 = vmatprep.subr.mxu0 %v182
    %1700 = vmatpush1.msra.mxu0 %v181
    %1701 = vmatprep.subr.mxu0 %v178
    %1702 = vmatpush1.msra.mxu0 %v177
    %1703 = vmatprep.subr.mxu0 %v174
    %1704 = vmatpush1.msra.mxu0 %v173
    %1705 = vmatprep.subr.mxu0 %v170
    %1706 = vmatpush1.msra.mxu0 %v169
    %1707 = vmatprep.subr.mxu0 %v166
    %1708 = vmatpush1.msra.mxu0 %v165
    %1709 = vmatprep.subr.mxu0 %v162
    %1710 = vmatpush1.msra.mxu0 %v161
    %1711 = vmatprep.subr.mxu0 %v158
    %1712 = vmatpush1.msra.mxu0 %v157
    %1713 = vmatprep.subr.mxu0 %v154
    %1714 = vmatpush1.msra.mxu0 %v153
    %1715 = vmatprep.subr.mxu0 %v150
    %1716 = vmatpush1.msra.mxu0 %v149
    %1717 = vmatprep.subr.mxu0 %v146
    %1718 = vmatpush1.msra.mxu0 %v145
    %1719 = vmatprep.subr.mxu0 %v142
    %1720 = vmatpush1.msra.mxu0 %v141
    %1721 = vmatprep.subr.mxu0 %v138
    %1722 = vmatpush1.msra.mxu0 %v137
    %1723 = vmatprep.subr.mxu0 %v134
    %1724 = vmatpush1.msra.mxu0 %v133
    %1725 = vmatprep.subr.mxu0 %v130
    %1726 = vmatpush1.msra.mxu0 %v129
    %1727 = vmatprep.subr.mxu0 0.0
    %1728 = vmatpush2.msra.mxu0 0.0
    %1729 = vmatprep.subr.mxu0 0.0
    %1730 = vmatpush2.msra.mxu0 0.0
    %1731 = vmatprep.subr.mxu0 0.0
    %1732 = vmatpush2.msra.mxu0 0.0
    %1733 = vmatprep.subr.mxu0 0.0
    %1734 = vmatpush2.msra.mxu0 0.0
    %1735 = vmatprep.subr.mxu0 0.0
    %1736 = vmatpush2.msra.mxu0 0.0
    %1737 = vmatprep.subr.mxu0 0.0
    %1738 = vmatpush2.msra.mxu0 0.0
    %1739 = vmatprep.subr.mxu0 0.0
    %1740 = vmatpush2.msra.mxu0 0.0
    %1741 = vmatprep.subr.mxu0 0.0
    %1742 = vmatpush2.msra.mxu0 0.0
    %1743 = vmatprep.subr.mxu0 0.0
    %1744 = vmatpush2.msra.mxu0 0.0
    %1745 = vmatprep.subr.mxu0 0.0
    %1746 = vmatpush2.msra.mxu0 0.0
    %1747 = vmatprep.subr.mxu0 0.0
    %1748 = vmatpush2.msra.mxu0 0.0
    %1749 = vmatprep.subr.mxu0 0.0
    %1750 = vmatpush2.msra.mxu0 0.0
    %1751 = vmatprep.subr.mxu0 0.0
    %1752 = vmatpush2.msra.mxu0 0.0
    %1753 = vmatprep.subr.mxu0 0.0
    %1754 = vmatpush2.msra.mxu0 0.0
    %1755 = vmatprep.subr.mxu0 0.0
    %1756 = vmatpush2.msra.mxu0 0.0
    %1757 = vmatprep.subr.mxu0 0.0
    %1758 = vmatpush2.msra.mxu0 0.0
    %1759 = vmatprep.mubr.f32.mxu0 0.0
    %1760 = vmatmul.mubr.f32.gmra.mxu0 %v1510
    %v1761 = vpop.f32.mrf.mxu0
    %v1762 = vadd.f32 0.0, %v1761
    %v1763 = vpop.f32.mrf.mxu0
    %v1764 = vadd.f32 0.0, %v1763
    %1765 = vdwg.mxu0
    %1766 = vmatprep.subr.mxu0 %v192
    %1767 = vmatpush1.msra.mxu0 %v191
    %1768 = vmatprep.subr.mxu0 %v188
    %1769 = vmatpush1.msra.mxu0 %v187
    %1770 = vmatprep.subr.mxu0 %v184
    %1771 = vmatpush1.msra.mxu0 %v183
    %1772 = vmatprep.subr.mxu0 %v180
    %1773 = vmatpush1.msra.mxu0 %v179
    %1774 = vmatprep.subr.mxu0 %v176
    %1775 = vmatpush1.msra.mxu0 %v175
    %1776 = vmatprep.subr.mxu0 %v172
    %1777 = vmatpush1.msra.mxu0 %v171
    %1778 = vmatprep.subr.mxu0 %v168
    %1779 = vmatpush1.msra.mxu0 %v167
    %1780 = vmatprep.subr.mxu0 %v164
    %1781 = vmatpush1.msra.mxu0 %v163
    %1782 = vmatprep.subr.mxu0 %v160
    %1783 = vmatpush1.msra.mxu0 %v159
    %1784 = vmatprep.subr.mxu0 %v156
    %1785 = vmatpush1.msra.mxu0 %v155
    %1786 = vmatprep.subr.mxu0 %v152
    %1787 = vmatpush1.msra.mxu0 %v151
    %1788 = vmatprep.subr.mxu0 %v148
    %1789 = vmatpush1.msra.mxu0 %v147
    %1790 = vmatprep.subr.mxu0 %v144
    %1791 = vmatpush1.msra.mxu0 %v143
    %1792 = vmatprep.subr.mxu0 %v140
    %1793 = vmatpush1.msra.mxu0 %v139
    %1794 = vmatprep.subr.mxu0 %v136
    %1795 = vmatpush1.msra.mxu0 %v135
    %1796 = vmatprep.subr.mxu0 %v132
    %1797 = vmatpush1.msra.mxu0 %v131
    %1798 = vmatprep.subr.mxu0 0.0
    %1799 = vmatpush2.msra.mxu0 0.0
    %1800 = vmatprep.subr.mxu0 0.0
    %1801 = vmatpush2.msra.mxu0 0.0
    %1802 = vmatprep.subr.mxu0 0.0
    %1803 = vmatpush2.msra.mxu0 0.0
    %1804 = vmatprep.subr.mxu0 0.0
    %1805 = vmatpush2.msra.mxu0 0.0
    %1806 = vmatprep.subr.mxu0 0.0
    %1807 = vmatpush2.msra.mxu0 0.0
    %1808 = vmatprep.subr.mxu0 0.0
    %1809 = vmatpush2.msra.mxu0 0.0
    %1810 = vmatprep.subr.mxu0 0.0
    %1811 = vmatpush2.msra.mxu0 0.0
    %1812 = vmatprep.subr.mxu0 0.0
    %1813 = vmatpush2.msra.mxu0 0.0
    %1814 = vmatprep.subr.mxu0 0.0
    %1815 = vmatpush2.msra.mxu0 0.0
    %1816 = vmatprep.subr.mxu0 0.0
    %1817 = vmatpush2.msra.mxu0 0.0
    %1818 = vmatprep.subr.mxu0 0.0
    %1819 = vmatpush2.msra.mxu0 0.0
    %1820 = vmatprep.subr.mxu0 0.0
    %1821 = vmatpush2.msra.mxu0 0.0
    %1822 = vmatprep.subr.mxu0 0.0
    %1823 = vmatpush2.msra.mxu0 0.0
    %1824 = vmatprep.subr.mxu0 0.0
    %1825 = vmatpush2.msra.mxu0 0.0
    %1826 = vmatprep.subr.mxu0 0.0
    %1827 = vmatpush2.msra.mxu0 0.0
    %1828 = vmatprep.subr.mxu0 0.0
    %1829 = vmatpush2.msra.mxu0 0.0
    %1830 = vmatprep.mubr.f32.mxu0 0.0
    %1831 = vmatmul.mubr.f32.gmra.mxu0 %v1510
    %v1832 = vpop.f32.mrf.mxu0
    %v1833 = vadd.f32 0.0, %v1832
    %v1834 = vpop.f32.mrf.mxu0
    %v1835 = vadd.f32 0.0, %v1834
    %1836 = vdwg.mxu0
    %v1837 = vadd.f32 %v1691, %v1762
    %v1838 = vadd.f32 %v1692, %v1764
    %v1839 = vadd.f32 %v1693, %v1833
    %v1840 = vadd.f32 %v1694, %v1835
    %v1841 = vxor.u32 %v1837, 2147483648
    %v1842 = vxor.u32 %v1838, 2147483648
    %v1843 = vxor.u32 %v1839, 2147483648
    %v1844 = vmul.f32 %v1841, 1.442695
    %v1845 = vpow.pop %v1844
    %v1846 = vmul.f32 %v1842, 1.442695
    %v1847 = vpow.pop %v1846
    %v1848 = vmul.f32 %v1843, 1.442695
    %v1849 = vpow.pop %v1848
    %v1850 = vadd.f32 %v1845, 1.0
    %v1851 = vadd.f32 %v1847, 1.0
    %v1852 = vadd.f32 %v1849, 1.0
    %v1853 = vrcp.pop %v1850
    %v1854 = vmul.f32 1.0, %v1853
    %v1855 = vrcp.pop %v1851
    %v1856 = vmul.f32 1.0, %v1855
    %v1857 = vrcp.pop %v1852
    %v1858 = vmul.f32 1.0, %v1857
    %v1859 = vtanh.pop %v1840
    %v1860 = vmul.f32 %v1856, %v1508
    %v1861 = vmul.f32 %v1854, %v1859
    %v1862 = vadd.f32 %v1860, %v1861
    %v1863 = vtanh.pop %v1862
    %v1864 = vmul.f32 %v1858, %v1863
    %1865 = vrot.lane.b32.xlu0 %v1679, 64
    %v1866 = vpop.permute.xlu0 %1865
    %v1867 = vadd.f32 %v1864, %v1866
    %1868 = vmatprep.subr.mxu0 %v427
    %1869 = vmatpush1.msra.mxu0 %v426
    %1870 = vmatprep.subr.mxu0 %v423
    %1871 = vmatpush1.msra.mxu0 %v422
    %1872 = vmatprep.subr.mxu0 %v419
    %1873 = vmatpush1.msra.mxu0 %v418
    %1874 = vmatprep.subr.mxu0 %v415
    %1875 = vmatpush1.msra.mxu0 %v414
    %1876 = vmatprep.subr.mxu0 %v411
    %1877 = vmatpush1.msra.mxu0 %v410
    %1878 = vmatprep.subr.mxu0 %v407
    %1879 = vmatpush1.msra.mxu0 %v406
    %1880 = vmatprep.subr.mxu0 %v403
    %1881 = vmatpush1.msra.mxu0 %v402
    %1882 = vmatprep.subr.mxu0 %v399
    %1883 = vmatpush1.msra.mxu0 %v398
    %1884 = vmatprep.subr.mxu0 %v395
    %1885 = vmatpush1.msra.mxu0 %v394
    %1886 = vmatprep.subr.mxu0 %v391
    %1887 = vmatpush1.msra.mxu0 %v390
    %1888 = vmatprep.subr.mxu0 %v387
    %1889 = vmatpush1.msra.mxu0 %v386
    %1890 = vmatprep.subr.mxu0 %v383
    %1891 = vmatpush1.msra.mxu0 %v382
    %1892 = vmatprep.subr.mxu0 %v379
    %1893 = vmatpush1.msra.mxu0 %v378
    %1894 = vmatprep.subr.mxu0 %v375
    %1895 = vmatpush1.msra.mxu0 %v374
    %1896 = vmatprep.subr.mxu0 %v371
    %1897 = vmatpush1.msra.mxu0 %v370
    %1898 = vmatprep.subr.mxu0 %v367
    %1899 = vmatpush1.msra.mxu0 %v366
    %1900 = vmatprep.subr.mxu0 0.0
    %1901 = vmatpush2.msra.mxu0 0.0
    %1902 = vmatprep.subr.mxu0 0.0
    %1903 = vmatpush2.msra.mxu0 0.0
    %1904 = vmatprep.subr.mxu0 0.0
    %1905 = vmatpush2.msra.mxu0 0.0
    %1906 = vmatprep.subr.mxu0 0.0
    %1907 = vmatpush2.msra.mxu0 0.0
    %1908 = vmatprep.subr.mxu0 0.0
    %1909 = vmatpush2.msra.mxu0 0.0
    %1910 = vmatprep.subr.mxu0 0.0
    %1911 = vmatpush2.msra.mxu0 0.0
    %1912 = vmatprep.subr.mxu0 0.0
    %1913 = vmatpush2.msra.mxu0 0.0
    %1914 = vmatprep.subr.mxu0 0.0
    %1915 = vmatpush2.msra.mxu0 0.0
    %1916 = vmatprep.subr.mxu0 0.0
    %1917 = vmatpush2.msra.mxu0 0.0
    %1918 = vmatprep.subr.mxu0 0.0
    %1919 = vmatpush2.msra.mxu0 0.0
    %1920 = vmatprep.subr.mxu0 0.0
    %1921 = vmatpush2.msra.mxu0 0.0
    %1922 = vmatprep.subr.mxu0 0.0
    %1923 = vmatpush2.msra.mxu0 0.0
    %1924 = vmatprep.subr.mxu0 0.0
    %1925 = vmatpush2.msra.mxu0 0.0
    %1926 = vmatprep.subr.mxu0 0.0
    %1927 = vmatpush2.msra.mxu0 0.0
    %1928 = vmatprep.subr.mxu0 0.0
    %1929 = vmatpush2.msra.mxu0 0.0
    %1930 = vmatprep.subr.mxu0 0.0
    %1931 = vmatpush2.msra.mxu0 0.0
    %1932 = vmatprep.mubr.f32.mxu0 0.0
    %1933 = vmatmul.mubr.f32.gmra.mxu0 %v1867
    %v1934 = vpop.f32.mrf.mxu0
    %v1935 = vadd.f32 %v435, %v1934
    %v1936 = vpop.f32.mrf.mxu0
    %v1937 = vadd.f32 %v439, %v1936
    %1938 = vdwg.mxu0
    %1939 = vmatprep.subr.mxu0 %v429
    %1940 = vmatpush1.msra.mxu0 %v428
    %1941 = vmatprep.subr.mxu0 %v425
    %1942 = vmatpush1.msra.mxu0 %v424
    %1943 = vmatprep.subr.mxu0 %v421
    %1944 = vmatpush1.msra.mxu0 %v420
    %1945 = vmatprep.subr.mxu0 %v417
    %1946 = vmatpush1.msra.mxu0 %v416
    %1947 = vmatprep.subr.mxu0 %v413
    %1948 = vmatpush1.msra.mxu0 %v412
    %1949 = vmatprep.subr.mxu0 %v409
    %1950 = vmatpush1.msra.mxu0 %v408
    %1951 = vmatprep.subr.mxu0 %v405
    %1952 = vmatpush1.msra.mxu0 %v404
    %1953 = vmatprep.subr.mxu0 %v401
    %1954 = vmatpush1.msra.mxu0 %v400
    %1955 = vmatprep.subr.mxu0 %v397
    %1956 = vmatpush1.msra.mxu0 %v396
    %1957 = vmatprep.subr.mxu0 %v393
    %1958 = vmatpush1.msra.mxu0 %v392
    %1959 = vmatprep.subr.mxu0 %v389
    %1960 = vmatpush1.msra.mxu0 %v388
    %1961 = vmatprep.subr.mxu0 %v385
    %1962 = vmatpush1.msra.mxu0 %v384
    %1963 = vmatprep.subr.mxu0 %v381
    %1964 = vmatpush1.msra.mxu0 %v380
    %1965 = vmatprep.subr.mxu0 %v377
    %1966 = vmatpush1.msra.mxu0 %v376
    %1967 = vmatprep.subr.mxu0 %v373
    %1968 = vmatpush1.msra.mxu0 %v372
    %1969 = vmatprep.subr.mxu0 %v369
    %1970 = vmatpush1.msra.mxu0 %v368
    %1971 = vmatprep.subr.mxu0 0.0
    %1972 = vmatpush2.msra.mxu0 0.0
    %1973 = vmatprep.subr.mxu0 0.0
    %1974 = vmatpush2.msra.mxu0 0.0
    %1975 = vmatprep.subr.mxu0 0.0
    %1976 = vmatpush2.msra.mxu0 0.0
    %1977 = vmatprep.subr.mxu0 0.0
    %1978 = vmatpush2.msra.mxu0 0.0
    %1979 = vmatprep.subr.mxu0 0.0
    %1980 = vmatpush2.msra.mxu0 0.0
    %1981 = vmatprep.subr.mxu0 0.0
    %1982 = vmatpush2.msra.mxu0 0.0
    %1983 = vmatprep.subr.mxu0 0.0
    %1984 = vmatpush2.msra.mxu0 0.0
    %1985 = vmatprep.subr.mxu0 0.0
    %1986 = vmatpush2.msra.mxu0 0.0
    %1987 = vmatprep.subr.mxu0 0.0
    %1988 = vmatpush2.msra.mxu0 0.0
    %1989 = vmatprep.subr.mxu0 0.0
    %1990 = vmatpush2.msra.mxu0 0.0
    %1991 = vmatprep.subr.mxu0 0.0
    %1992 = vmatpush2.msra.mxu0 0.0
    %1993 = vmatprep.subr.mxu0 0.0
    %1994 = vmatpush2.msra.mxu0 0.0
    %1995 = vmatprep.subr.mxu0 0.0
    %1996 = vmatpush2.msra.mxu0 0.0
    %1997 = vmatprep.subr.mxu0 0.0
    %1998 = vmatpush2.msra.mxu0 0.0
    %1999 = vmatprep.subr.mxu0 0.0
    %2000 = vmatpush2.msra.mxu0 0.0
    %2001 = vmatprep.subr.mxu0 0.0
    %2002 = vmatpush2.msra.mxu0 0.0
    %2003 = vmatprep.mubr.f32.mxu0 0.0
    %2004 = vmatmul.mubr.f32.gmra.mxu0 %v1867
    %v2005 = vpop.f32.mrf.mxu0
    %v2006 = vadd.f32 %v443, %v2005
    %v2007 = vpop.f32.mrf.mxu0
    %v2008 = vadd.f32 %v447, %v2007
    %2009 = vdwg.mxu0
    %v2010 = vxor.u32 %v1935, 2147483648
    %v2011 = vxor.u32 %v1937, 2147483648
    %v2012 = vxor.u32 %v2006, 2147483648
    %v2013 = vmul.f32 %v2010, 1.442695
    %v2014 = vpow.pop %v2013
    %v2015 = vmul.f32 %v2011, 1.442695
    %v2016 = vpow.pop %v2015
    %v2017 = vmul.f32 %v2012, 1.442695
    %v2018 = vpow.pop %v2017
    %v2019 = vadd.f32 %v2014, 1.0
    %v2020 = vadd.f32 %v2016, 1.0
    %v2021 = vadd.f32 %v2018, 1.0
    %v2022 = vrcp.pop %v2019
    %v2023 = vmul.f32 1.0, %v2022
    %v2024 = vrcp.pop %v2020
    %v2025 = vmul.f32 1.0, %v2024
    %v2026 = vrcp.pop %v2021
    %v2027 = vmul.f32 1.0, %v2026
    %v2028 = vtanh.pop %v2008
    %v2029 = vmul.f32 %v2025, %v1677
    %v2030 = vmul.f32 %v2023, %v2028
    %v2031 = vadd.f32 %v2029, %v2030
    %v2032 = vtanh.pop %v2031
    %v2033 = vmul.f32 %v2027, %v2032
    %s2034 = scalar_lea.vmem %s0, 10
    %v2035 = vld [vmem:[%s2034] sm:$0x3]
    %2037 = vset.pattern.permute.xlu0 0
    %2038 = vperm.xlu0 %2037, %v2035
    %v2039 = vpop.permute.xlu0 %2038
    %v2041 = vmul.f32 %v2039, %v82
    %v2042 = vmul.f32 %v2039, %v86
    %v2043 = vmul.f32 %v2039, %v90
    %v2044 = vmul.f32 %v2039, %v94
    %v2045 = vadd.f32 %v2041, %v108
    %v2046 = vadd.f32 %v2042, %v112
    %v2047 = vadd.f32 %v2043, %v116
    %v2048 = vadd.f32 %v2044, %v120
    %2049 = vmatprep.subr.mxu0 %v190
    %2050 = vmatpush1.msra.mxu0 %v189
    %2051 = vmatprep.subr.mxu0 %v186
    %2052 = vmatpush1.msra.mxu0 %v185
    %2053 = vmatprep.subr.mxu0 %v182
    %2054 = vmatpush1.msra.mxu0 %v181
    %2055 = vmatprep.subr.mxu0 %v178
    %2056 = vmatpush1.msra.mxu0 %v177
    %2057 = vmatprep.subr.mxu0 %v174
    %2058 = vmatpush1.msra.mxu0 %v173
    %2059 = vmatprep.subr.mxu0 %v170
    %2060 = vmatpush1.msra.mxu0 %v169
    %2061 = vmatprep.subr.mxu0 %v166
    %2062 = vmatpush1.msra.mxu0 %v165
    %2063 = vmatprep.subr.mxu0 %v162
    %2064 = vmatpush1.msra.mxu0 %v161
    %2065 = vmatprep.subr.mxu0 %v158
    %2066 = vmatpush1.msra.mxu0 %v157
    %2067 = vmatprep.subr.mxu0 %v154
    %2068 = vmatpush1.msra.mxu0 %v153
    %2069 = vmatprep.subr.mxu0 %v150
    %2070 = vmatpush1.msra.mxu0 %v149
    %2071 = vmatprep.subr.mxu0 %v146
    %2072 = vmatpush1.msra.mxu0 %v145
    %2073 = vmatprep.subr.mxu0 %v142
    %2074 = vmatpush1.msra.mxu0 %v141
    %2075 = vmatprep.subr.mxu0 %v138
    %2076 = vmatpush1.msra.mxu0 %v137
    %2077 = vmatprep.subr.mxu0 %v134
    %2078 = vmatpush1.msra.mxu0 %v133
    %2079 = vmatprep.subr.mxu0 %v130
    %2080 = vmatpush1.msra.mxu0 %v129
    %2081 = vmatprep.subr.mxu0 0.0
    %2082 = vmatpush2.msra.mxu0 0.0
    %2083 = vmatprep.subr.mxu0 0.0
    %2084 = vmatpush2.msra.mxu0 0.0
    %2085 = vmatprep.subr.mxu0 0.0
    %2086 = vmatpush2.msra.mxu0 0.0
    %2087 = vmatprep.subr.mxu0 0.0
    %2088 = vmatpush2.msra.mxu0 0.0
    %2089 = vmatprep.subr.mxu0 0.0
    %2090 = vmatpush2.msra.mxu0 0.0
    %2091 = vmatprep.subr.mxu0 0.0
    %2092 = vmatpush2.msra.mxu0 0.0
    %2093 = vmatprep.subr.mxu0 0.0
    %2094 = vmatpush2.msra.mxu0 0.0
    %2095 = vmatprep.subr.mxu0 0.0
    %2096 = vmatpush2.msra.mxu0 0.0
    %2097 = vmatprep.subr.mxu0 0.0
    %2098 = vmatpush2.msra.mxu0 0.0
    %2099 = vmatprep.subr.mxu0 0.0
    %2100 = vmatpush2.msra.mxu0 0.0
    %2101 = vmatprep.subr.mxu0 0.0
    %2102 = vmatpush2.msra.mxu0 0.0
    %2103 = vmatprep.subr.mxu0 0.0
    %2104 = vmatpush2.msra.mxu0 0.0
    %2105 = vmatprep.subr.mxu0 0.0
    %2106 = vmatpush2.msra.mxu0 0.0
    %2107 = vmatprep.subr.mxu0 0.0
    %2108 = vmatpush2.msra.mxu0 0.0
    %2109 = vmatprep.subr.mxu0 0.0
    %2110 = vmatpush2.msra.mxu0 0.0
    %2111 = vmatprep.subr.mxu0 0.0
    %2112 = vmatpush2.msra.mxu0 0.0
    %2113 = vmatprep.mubr.f32.mxu0 0.0
    %2114 = vmatmul.mubr.f32.gmra.mxu0 %v1864
    %v2115 = vpop.f32.mrf.mxu0
    %v2116 = vadd.f32 0.0, %v2115
    %v2117 = vpop.f32.mrf.mxu0
    %v2118 = vadd.f32 0.0, %v2117
    %2119 = vdwg.mxu0
    %2120 = vmatprep.subr.mxu0 %v192
    %2121 = vmatpush1.msra.mxu0 %v191
    %2122 = vmatprep.subr.mxu0 %v188
    %2123 = vmatpush1.msra.mxu0 %v187
    %2124 = vmatprep.subr.mxu0 %v184
    %2125 = vmatpush1.msra.mxu0 %v183
    %2126 = vmatprep.subr.mxu0 %v180
    %2127 = vmatpush1.msra.mxu0 %v179
    %2128 = vmatprep.subr.mxu0 %v176
    %2129 = vmatpush1.msra.mxu0 %v175
    %2130 = vmatprep.subr.mxu0 %v172
    %2131 = vmatpush1.msra.mxu0 %v171
    %2132 = vmatprep.subr.mxu0 %v168
    %2133 = vmatpush1.msra.mxu0 %v167
    %2134 = vmatprep.subr.mxu0 %v164
    %2135 = vmatpush1.msra.mxu0 %v163
    %2136 = vmatprep.subr.mxu0 %v160
    %2137 = vmatpush1.msra.mxu0 %v159
    %2138 = vmatprep.subr.mxu0 %v156
    %2139 = vmatpush1.msra.mxu0 %v155
    %2140 = vmatprep.subr.mxu0 %v152
    %2141 = vmatpush1.msra.mxu0 %v151
    %2142 = vmatprep.subr.mxu0 %v148
    %2143 = vmatpush1.msra.mxu0 %v147
    %2144 = vmatprep.subr.mxu0 %v144
    %2145 = vmatpush1.msra.mxu0 %v143
    %2146 = vmatprep.subr.mxu0 %v140
    %2147 = vmatpush1.msra.mxu0 %v139
    %2148 = vmatprep.subr.mxu0 %v136
    %2149 = vmatpush1.msra.mxu0 %v135
    %2150 = vmatprep.subr.mxu0 %v132
    %2151 = vmatpush1.msra.mxu0 %v131
    %2152 = vmatprep.subr.mxu0 0.0
    %2153 = vmatpush2.msra.mxu0 0.0
    %2154 = vmatprep.subr.mxu0 0.0
    %2155 = vmatpush2.msra.mxu0 0.0
    %2156 = vmatprep.subr.mxu0 0.0
    %2157 = vmatpush2.msra.mxu0 0.0
    %2158 = vmatprep.subr.mxu0 0.0
    %2159 = vmatpush2.msra.mxu0 0.0
    %2160 = vmatprep.subr.mxu0 0.0
    %2161 = vmatpush2.msra.mxu0 0.0
    %2162 = vmatprep.subr.mxu0 0.0
    %2163 = vmatpush2.msra.mxu0 0.0
    %2164 = vmatprep.subr.mxu0 0.0
    %2165 = vmatpush2.msra.mxu0 0.0
    %2166 = vmatprep.subr.mxu0 0.0
    %2167 = vmatpush2.msra.mxu0 0.0
    %2168 = vmatprep.subr.mxu0 0.0
    %2169 = vmatpush2.msra.mxu0 0.0
    %2170 = vmatprep.subr.mxu0 0.0
    %2171 = vmatpush2.msra.mxu0 0.0
    %2172 = vmatprep.subr.mxu0 0.0
    %2173 = vmatpush2.msra.mxu0 0.0
    %2174 = vmatprep.subr.mxu0 0.0
    %2175 = vmatpush2.msra.mxu0 0.0
    %2176 = vmatprep.subr.mxu0 0.0
    %2177 = vmatpush2.msra.mxu0 0.0
    %2178 = vmatprep.subr.mxu0 0.0
    %2179 = vmatpush2.msra.mxu0 0.0
    %2180 = vmatprep.subr.mxu0 0.0
    %2181 = vmatpush2.msra.mxu0 0.0
    %2182 = vmatprep.subr.mxu0 0.0
    %2183 = vmatpush2.msra.mxu0 0.0
    %2184 = vmatprep.mubr.f32.mxu0 0.0
    %2185 = vmatmul.mubr.f32.gmra.mxu0 %v1864
    %v2186 = vpop.f32.mrf.mxu0
    %v2187 = vadd.f32 0.0, %v2186
    %v2188 = vpop.f32.mrf.mxu0
    %v2189 = vadd.f32 0.0, %v2188
    %2190 = vdwg.mxu0
    %v2191 = vadd.f32 %v2045, %v2116
    %v2192 = vadd.f32 %v2046, %v2118
    %v2193 = vadd.f32 %v2047, %v2187
    %v2194 = vadd.f32 %v2048, %v2189
    %v2195 = vxor.u32 %v2191, 2147483648
    %v2196 = vxor.u32 %v2192, 2147483648
    %v2197 = vxor.u32 %v2193, 2147483648
    %v2198 = vmul.f32 %v2195, 1.442695
    %v2199 = vpow.pop %v2198
    %v2200 = vmul.f32 %v2196, 1.442695
    %v2201 = vpow.pop %v2200
    %v2202 = vmul.f32 %v2197, 1.442695
    %v2203 = vpow.pop %v2202
    %v2204 = vadd.f32 %v2199, 1.0
    %v2205 = vadd.f32 %v2201, 1.0
    %v2206 = vadd.f32 %v2203, 1.0
    %v2207 = vrcp.pop %v2204
    %v2208 = vmul.f32 1.0, %v2207
    %v2209 = vrcp.pop %v2205
    %v2210 = vmul.f32 1.0, %v2209
    %v2211 = vrcp.pop %v2206
    %v2212 = vmul.f32 1.0, %v2211
    %v2213 = vtanh.pop %v2194
    %v2214 = vmul.f32 %v2210, %v1862
    %v2215 = vmul.f32 %v2208, %v2213
    %v2216 = vadd.f32 %v2214, %v2215
    %v2217 = vtanh.pop %v2216
    %v2218 = vmul.f32 %v2212, %v2217
    %2219 = vrot.lane.b32.xlu0 %v2033, 64
    %v2220 = vpop.permute.xlu0 %2219
    %v2221 = vadd.f32 %v2218, %v2220
    %2222 = vmatprep.subr.mxu0 %v427
    %2223 = vmatpush1.msra.mxu0 %v426
    %2224 = vmatprep.subr.mxu0 %v423
    %2225 = vmatpush1.msra.mxu0 %v422
    %2226 = vmatprep.subr.mxu0 %v419
    %2227 = vmatpush1.msra.mxu0 %v418
    %2228 = vmatprep.subr.mxu0 %v415
    %2229 = vmatpush1.msra.mxu0 %v414
    %2230 = vmatprep.subr.mxu0 %v411
    %2231 = vmatpush1.msra.mxu0 %v410
    %2232 = vmatprep.subr.mxu0 %v407
    %2233 = vmatpush1.msra.mxu0 %v406
    %2234 = vmatprep.subr.mxu0 %v403
    %2235 = vmatpush1.msra.mxu0 %v402
    %2236 = vmatprep.subr.mxu0 %v399
    %2237 = vmatpush1.msra.mxu0 %v398
    %2238 = vmatprep.subr.mxu0 %v395
    %2239 = vmatpush1.msra.mxu0 %v394
    %2240 = vmatprep.subr.mxu0 %v391
    %2241 = vmatpush1.msra.mxu0 %v390
    %2242 = vmatprep.subr.mxu0 %v387
    %2243 = vmatpush1.msra.mxu0 %v386
    %2244 = vmatprep.subr.mxu0 %v383
    %2245 = vmatpush1.msra.mxu0 %v382
    %2246 = vmatprep.subr.mxu0 %v379
    %2247 = vmatpush1.msra.mxu0 %v378
    %2248 = vmatprep.subr.mxu0 %v375
    %2249 = vmatpush1.msra.mxu0 %v374
    %2250 = vmatprep.subr.mxu0 %v371
    %2251 = vmatpush1.msra.mxu0 %v370
    %2252 = vmatprep.subr.mxu0 %v367
    %2253 = vmatpush1.msra.mxu0 %v366
    %2254 = vmatprep.subr.mxu0 0.0
    %2255 = vmatpush2.msra.mxu0 0.0
    %2256 = vmatprep.subr.mxu0 0.0
    %2257 = vmatpush2.msra.mxu0 0.0
    %2258 = vmatprep.subr.mxu0 0.0
    %2259 = vmatpush2.msra.mxu0 0.0
    %2260 = vmatprep.subr.mxu0 0.0
    %2261 = vmatpush2.msra.mxu0 0.0
    %2262 = vmatprep.subr.mxu0 0.0
    %2263 = vmatpush2.msra.mxu0 0.0
    %2264 = vmatprep.subr.mxu0 0.0
    %2265 = vmatpush2.msra.mxu0 0.0
    %2266 = vmatprep.subr.mxu0 0.0
    %2267 = vmatpush2.msra.mxu0 0.0
    %2268 = vmatprep.subr.mxu0 0.0
    %2269 = vmatpush2.msra.mxu0 0.0
    %2270 = vmatprep.subr.mxu0 0.0
    %2271 = vmatpush2.msra.mxu0 0.0
    %2272 = vmatprep.subr.mxu0 0.0
    %2273 = vmatpush2.msra.mxu0 0.0
    %2274 = vmatprep.subr.mxu0 0.0
    %2275 = vmatpush2.msra.mxu0 0.0
    %2276 = vmatprep.subr.mxu0 0.0
    %2277 = vmatpush2.msra.mxu0 0.0
    %2278 = vmatprep.subr.mxu0 0.0
    %2279 = vmatpush2.msra.mxu0 0.0
    %2280 = vmatprep.subr.mxu0 0.0
    %2281 = vmatpush2.msra.mxu0 0.0
    %2282 = vmatprep.subr.mxu0 0.0
    %2283 = vmatpush2.msra.mxu0 0.0
    %2284 = vmatprep.subr.mxu0 0.0
    %2285 = vmatpush2.msra.mxu0 0.0
    %2286 = vmatprep.mubr.f32.mxu0 0.0
    %2287 = vmatmul.mubr.f32.gmra.mxu0 %v2221
    %v2288 = vpop.f32.mrf.mxu0
    %v2289 = vadd.f32 %v435, %v2288
    %v2290 = vpop.f32.mrf.mxu0
    %v2291 = vadd.f32 %v439, %v2290
    %2292 = vdwg.mxu0
    %2293 = vmatprep.subr.mxu0 %v429
    %2294 = vmatpush1.msra.mxu0 %v428
    %2295 = vmatprep.subr.mxu0 %v425
    %2296 = vmatpush1.msra.mxu0 %v424
    %2297 = vmatprep.subr.mxu0 %v421
    %2298 = vmatpush1.msra.mxu0 %v420
    %2299 = vmatprep.subr.mxu0 %v417
    %2300 = vmatpush1.msra.mxu0 %v416
    %2301 = vmatprep.subr.mxu0 %v413
    %2302 = vmatpush1.msra.mxu0 %v412
    %2303 = vmatprep.subr.mxu0 %v409
    %2304 = vmatpush1.msra.mxu0 %v408
    %2305 = vmatprep.subr.mxu0 %v405
    %2306 = vmatpush1.msra.mxu0 %v404
    %2307 = vmatprep.subr.mxu0 %v401
    %2308 = vmatpush1.msra.mxu0 %v400
    %2309 = vmatprep.subr.mxu0 %v397
    %2310 = vmatpush1.msra.mxu0 %v396
    %2311 = vmatprep.subr.mxu0 %v393
    %2312 = vmatpush1.msra.mxu0 %v392
    %2313 = vmatprep.subr.mxu0 %v389
    %2314 = vmatpush1.msra.mxu0 %v388
    %2315 = vmatprep.subr.mxu0 %v385
    %2316 = vmatpush1.msra.mxu0 %v384
    %2317 = vmatprep.subr.mxu0 %v381
    %2318 = vmatpush1.msra.mxu0 %v380
    %2319 = vmatprep.subr.mxu0 %v377
    %2320 = vmatpush1.msra.mxu0 %v376
    %2321 = vmatprep.subr.mxu0 %v373
    %2322 = vmatpush1.msra.mxu0 %v372
    %2323 = vmatprep.subr.mxu0 %v369
    %2324 = vmatpush1.msra.mxu0 %v368
    %2325 = vmatprep.subr.mxu0 0.0
    %2326 = vmatpush2.msra.mxu0 0.0
    %2327 = vmatprep.subr.mxu0 0.0
    %2328 = vmatpush2.msra.mxu0 0.0
    %2329 = vmatprep.subr.mxu0 0.0
    %2330 = vmatpush2.msra.mxu0 0.0
    %2331 = vmatprep.subr.mxu0 0.0
    %2332 = vmatpush2.msra.mxu0 0.0
    %2333 = vmatprep.subr.mxu0 0.0
    %2334 = vmatpush2.msra.mxu0 0.0
    %2335 = vmatprep.subr.mxu0 0.0
    %2336 = vmatpush2.msra.mxu0 0.0
    %2337 = vmatprep.subr.mxu0 0.0
    %2338 = vmatpush2.msra.mxu0 0.0
    %2339 = vmatprep.subr.mxu0 0.0
    %2340 = vmatpush2.msra.mxu0 0.0
    %2341 = vmatprep.subr.mxu0 0.0
    %2342 = vmatpush2.msra.mxu0 0.0
    %2343 = vmatprep.subr.mxu0 0.0
    %2344 = vmatpush2.msra.mxu0 0.0
    %2345 = vmatprep.subr.mxu0 0.0
    %2346 = vmatpush2.msra.mxu0 0.0
    %2347 = vmatprep.subr.mxu0 0.0
    %2348 = vmatpush2.msra.mxu0 0.0
    %2349 = vmatprep.subr.mxu0 0.0
    %2350 = vmatpush2.msra.mxu0 0.0
    %2351 = vmatprep.subr.mxu0 0.0
    %2352 = vmatpush2.msra.mxu0 0.0
    %2353 = vmatprep.subr.mxu0 0.0
    %2354 = vmatpush2.msra.mxu0 0.0
    %2355 = vmatprep.subr.mxu0 0.0
    %2356 = vmatpush2.msra.mxu0 0.0
    %2357 = vmatprep.mubr.f32.mxu0 0.0
    %2358 = vmatmul.mubr.f32.gmra.mxu0 %v2221
    %v2359 = vpop.f32.mrf.mxu0
    %v2360 = vadd.f32 %v443, %v2359
    %v2361 = vpop.f32.mrf.mxu0
    %v2362 = vadd.f32 %v447, %v2361
    %2363 = vdwg.mxu0
    %v2364 = vxor.u32 %v2289, 2147483648
    %v2365 = vxor.u32 %v2291, 2147483648
    %v2366 = vxor.u32 %v2360, 2147483648
    %v2367 = vmul.f32 %v2364, 1.442695
    %v2368 = vpow.pop %v2367
    %v2369 = vmul.f32 %v2365, 1.442695
    %v2370 = vpow.pop %v2369
    %v2371 = vmul.f32 %v2366, 1.442695
    %v2372 = vpow.pop %v2371
    %v2373 = vadd.f32 %v2368, 1.0
    %v2374 = vadd.f32 %v2370, 1.0
    %v2375 = vadd.f32 %v2372, 1.0
    %v2376 = vrcp.pop %v2373
    %v2377 = vmul.f32 1.0, %v2376
    %v2378 = vrcp.pop %v2374
    %v2379 = vmul.f32 1.0, %v2378
    %v2380 = vrcp.pop %v2375
    %v2381 = vmul.f32 1.0, %v2380
    %v2382 = vtanh.pop %v2362
    %v2383 = vmul.f32 %v2379, %v2031
    %v2384 = vmul.f32 %v2377, %v2382
    %v2385 = vadd.f32 %v2383, %v2384
    %v2386 = vtanh.pop %v2385
    %v2387 = vmul.f32 %v2381, %v2386
    %s2388 = scalar_lea.vmem %s0, 12
    %v2389 = vld [vmem:[%s2388] sm:$0x3]
    %2391 = vset.pattern.permute.xlu0 0
    %2392 = vperm.xlu0 %2391, %v2389
    %v2393 = vpop.permute.xlu0 %2392
    %v2395 = vmul.f32 %v2393, %v82
    %v2396 = vmul.f32 %v2393, %v86
    %v2397 = vmul.f32 %v2393, %v90
    %v2398 = vmul.f32 %v2393, %v94
    %v2399 = vadd.f32 %v2395, %v108
    %v2400 = vadd.f32 %v2396, %v112
    %v2401 = vadd.f32 %v2397, %v116
    %v2402 = vadd.f32 %v2398, %v120
    %2403 = vmatprep.subr.mxu0 %v190
    %2404 = vmatpush1.msra.mxu0 %v189
    %2405 = vmatprep.subr.mxu0 %v186
    %2406 = vmatpush1.msra.mxu0 %v185
    %2407 = vmatprep.subr.mxu0 %v182
    %2408 = vmatpush1.msra.mxu0 %v181
    %2409 = vmatprep.subr.mxu0 %v178
    %2410 = vmatpush1.msra.mxu0 %v177
    %2411 = vmatprep.subr.mxu0 %v174
    %2412 = vmatpush1.msra.mxu0 %v173
    %2413 = vmatprep.subr.mxu0 %v170
    %2414 = vmatpush1.msra.mxu0 %v169
    %2415 = vmatprep.subr.mxu0 %v166
    %2416 = vmatpush1.msra.mxu0 %v165
    %2417 = vmatprep.subr.mxu0 %v162
    %2418 = vmatpush1.msra.mxu0 %v161
    %2419 = vmatprep.subr.mxu0 %v158
    %2420 = vmatpush1.msra.mxu0 %v157
    %2421 = vmatprep.subr.mxu0 %v154
    %2422 = vmatpush1.msra.mxu0 %v153
    %2423 = vmatprep.subr.mxu0 %v150
    %2424 = vmatpush1.msra.mxu0 %v149
    %2425 = vmatprep.subr.mxu0 %v146
    %2426 = vmatpush1.msra.mxu0 %v145
    %2427 = vmatprep.subr.mxu0 %v142
    %2428 = vmatpush1.msra.mxu0 %v141
    %2429 = vmatprep.subr.mxu0 %v138
    %2430 = vmatpush1.msra.mxu0 %v137
    %2431 = vmatprep.subr.mxu0 %v134
    %2432 = vmatpush1.msra.mxu0 %v133
    %2433 = vmatprep.subr.mxu0 %v130
    %2434 = vmatpush1.msra.mxu0 %v129
    %2435 = vmatprep.subr.mxu0 0.0
    %2436 = vmatpush2.msra.mxu0 0.0
    %2437 = vmatprep.subr.mxu0 0.0
    %2438 = vmatpush2.msra.mxu0 0.0
    %2439 = vmatprep.subr.mxu0 0.0
    %2440 = vmatpush2.msra.mxu0 0.0
    %2441 = vmatprep.subr.mxu0 0.0
    %2442 = vmatpush2.msra.mxu0 0.0
    %2443 = vmatprep.subr.mxu0 0.0
    %2444 = vmatpush2.msra.mxu0 0.0
    %2445 = vmatprep.subr.mxu0 0.0
    %2446 = vmatpush2.msra.mxu0 0.0
    %2447 = vmatprep.subr.mxu0 0.0
    %2448 = vmatpush2.msra.mxu0 0.0
    %2449 = vmatprep.subr.mxu0 0.0
    %2450 = vmatpush2.msra.mxu0 0.0
    %2451 = vmatprep.subr.mxu0 0.0
    %2452 = vmatpush2.msra.mxu0 0.0
    %2453 = vmatprep.subr.mxu0 0.0
    %2454 = vmatpush2.msra.mxu0 0.0
    %2455 = vmatprep.subr.mxu0 0.0
    %2456 = vmatpush2.msra.mxu0 0.0
    %2457 = vmatprep.subr.mxu0 0.0
    %2458 = vmatpush2.msra.mxu0 0.0
    %2459 = vmatprep.subr.mxu0 0.0
    %2460 = vmatpush2.msra.mxu0 0.0
    %2461 = vmatprep.subr.mxu0 0.0
    %2462 = vmatpush2.msra.mxu0 0.0
    %2463 = vmatprep.subr.mxu0 0.0
    %2464 = vmatpush2.msra.mxu0 0.0
    %2465 = vmatprep.subr.mxu0 0.0
    %2466 = vmatpush2.msra.mxu0 0.0
    %2467 = vmatprep.mubr.f32.mxu0 0.0
    %2468 = vmatmul.mubr.f32.gmra.mxu0 %v2218
    %v2469 = vpop.f32.mrf.mxu0
    %v2470 = vadd.f32 0.0, %v2469
    %v2471 = vpop.f32.mrf.mxu0
    %v2472 = vadd.f32 0.0, %v2471
    %2473 = vdwg.mxu0
    %2474 = vmatprep.subr.mxu0 %v192
    %2475 = vmatpush1.msra.mxu0 %v191
    %2476 = vmatprep.subr.mxu0 %v188
    %2477 = vmatpush1.msra.mxu0 %v187
    %2478 = vmatprep.subr.mxu0 %v184
    %2479 = vmatpush1.msra.mxu0 %v183
    %2480 = vmatprep.subr.mxu0 %v180
    %2481 = vmatpush1.msra.mxu0 %v179
    %2482 = vmatprep.subr.mxu0 %v176
    %2483 = vmatpush1.msra.mxu0 %v175
    %2484 = vmatprep.subr.mxu0 %v172
    %2485 = vmatpush1.msra.mxu0 %v171
    %2486 = vmatprep.subr.mxu0 %v168
    %2487 = vmatpush1.msra.mxu0 %v167
    %2488 = vmatprep.subr.mxu0 %v164
    %2489 = vmatpush1.msra.mxu0 %v163
    %2490 = vmatprep.subr.mxu0 %v160
    %2491 = vmatpush1.msra.mxu0 %v159
    %2492 = vmatprep.subr.mxu0 %v156
    %2493 = vmatpush1.msra.mxu0 %v155
    %2494 = vmatprep.subr.mxu0 %v152
    %2495 = vmatpush1.msra.mxu0 %v151
    %2496 = vmatprep.subr.mxu0 %v148
    %2497 = vmatpush1.msra.mxu0 %v147
    %2498 = vmatprep.subr.mxu0 %v144
    %2499 = vmatpush1.msra.mxu0 %v143
    %2500 = vmatprep.subr.mxu0 %v140
    %2501 = vmatpush1.msra.mxu0 %v139
    %2502 = vmatprep.subr.mxu0 %v136
    %2503 = vmatpush1.msra.mxu0 %v135
    %2504 = vmatprep.subr.mxu0 %v132
    %2505 = vmatpush1.msra.mxu0 %v131
    %2506 = vmatprep.subr.mxu0 0.0
    %2507 = vmatpush2.msra.mxu0 0.0
    %2508 = vmatprep.subr.mxu0 0.0
    %2509 = vmatpush2.msra.mxu0 0.0
    %2510 = vmatprep.subr.mxu0 0.0
    %2511 = vmatpush2.msra.mxu0 0.0
    %2512 = vmatprep.subr.mxu0 0.0
    %2513 = vmatpush2.msra.mxu0 0.0
    %2514 = vmatprep.subr.mxu0 0.0
    %2515 = vmatpush2.msra.mxu0 0.0
    %2516 = vmatprep.subr.mxu0 0.0
    %2517 = vmatpush2.msra.mxu0 0.0
    %2518 = vmatprep.subr.mxu0 0.0
    %2519 = vmatpush2.msra.mxu0 0.0
    %2520 = vmatprep.subr.mxu0 0.0
    %2521 = vmatpush2.msra.mxu0 0.0
    %2522 = vmatprep.subr.mxu0 0.0
    %2523 = vmatpush2.msra.mxu0 0.0
    %2524 = vmatprep.subr.mxu0 0.0
    %2525 = vmatpush2.msra.mxu0 0.0
    %2526 = vmatprep.subr.mxu0 0.0
    %2527 = vmatpush2.msra.mxu0 0.0
    %2528 = vmatprep.subr.mxu0 0.0
    %2529 = vmatpush2.msra.mxu0 0.0
    %2530 = vmatprep.subr.mxu0 0.0
    %2531 = vmatpush2.msra.mxu0 0.0
    %2532 = vmatprep.subr.mxu0 0.0
    %2533 = vmatpush2.msra.mxu0 0.0
    %2534 = vmatprep.subr.mxu0 0.0
    %2535 = vmatpush2.msra.mxu0 0.0
    %2536 = vmatprep.subr.mxu0 0.0
    %2537 = vmatpush2.msra.mxu0 0.0
    %2538 = vmatprep.mubr.f32.mxu0 0.0
    %2539 = vmatmul.mubr.f32.gmra.mxu0 %v2218
    %v2540 = vpop.f32.mrf.mxu0
    %v2541 = vadd.f32 0.0, %v2540
    %v2542 = vpop.f32.mrf.mxu0
    %v2543 = vadd.f32 0.0, %v2542
    %2544 = vdwg.mxu0
    %v2545 = vadd.f32 %v2399, %v2470
    %v2546 = vadd.f32 %v2400, %v2472
    %v2547 = vadd.f32 %v2401, %v2541
    %v2548 = vadd.f32 %v2402, %v2543
    %v2549 = vxor.u32 %v2545, 2147483648
    %v2550 = vxor.u32 %v2546, 2147483648
    %v2551 = vxor.u32 %v2547, 2147483648
    %v2552 = vmul.f32 %v2549, 1.442695
    %v2553 = vpow.pop %v2552
    %v2554 = vmul.f32 %v2550, 1.442695
    %v2555 = vpow.pop %v2554
    %v2556 = vmul.f32 %v2551, 1.442695
    %v2557 = vpow.pop %v2556
    %v2558 = vadd.f32 %v2553, 1.0
    %v2559 = vadd.f32 %v2555, 1.0
    %v2560 = vadd.f32 %v2557, 1.0
    %v2561 = vrcp.pop %v2558
    %v2562 = vmul.f32 1.0, %v2561
    %v2563 = vrcp.pop %v2559
    %v2564 = vmul.f32 1.0, %v2563
    %v2565 = vrcp.pop %v2560
    %v2566 = vmul.f32 1.0, %v2565
    %v2567 = vtanh.pop %v2548
    %v2568 = vmul.f32 %v2564, %v2216
    %v2569 = vmul.f32 %v2562, %v2567
    %v2570 = vadd.f32 %v2568, %v2569
    %v2571 = vtanh.pop %v2570
    %v2572 = vmul.f32 %v2566, %v2571
    %2573 = vrot.lane.b32.xlu0 %v2387, 64
    %v2574 = vpop.permute.xlu0 %2573
    %v2575 = vadd.f32 %v2572, %v2574
    %2576 = vmatprep.subr.mxu0 %v427
    %2577 = vmatpush1.msra.mxu0 %v426
    %2578 = vmatprep.subr.mxu0 %v423
    %2579 = vmatpush1.msra.mxu0 %v422
    %2580 = vmatprep.subr.mxu0 %v419
    %2581 = vmatpush1.msra.mxu0 %v418
    %2582 = vmatprep.subr.mxu0 %v415
    %2583 = vmatpush1.msra.mxu0 %v414
    %2584 = vmatprep.subr.mxu0 %v411
    %2585 = vmatpush1.msra.mxu0 %v410
    %2586 = vmatprep.subr.mxu0 %v407
    %2587 = vmatpush1.msra.mxu0 %v406
    %2588 = vmatprep.subr.mxu0 %v403
    %2589 = vmatpush1.msra.mxu0 %v402
    %2590 = vmatprep.subr.mxu0 %v399
    %2591 = vmatpush1.msra.mxu0 %v398
    %2592 = vmatprep.subr.mxu0 %v395
    %2593 = vmatpush1.msra.mxu0 %v394
    %2594 = vmatprep.subr.mxu0 %v391
    %2595 = vmatpush1.msra.mxu0 %v390
    %2596 = vmatprep.subr.mxu0 %v387
    %2597 = vmatpush1.msra.mxu0 %v386
    %2598 = vmatprep.subr.mxu0 %v383
    %2599 = vmatpush1.msra.mxu0 %v382
    %2600 = vmatprep.subr.mxu0 %v379
    %2601 = vmatpush1.msra.mxu0 %v378
    %2602 = vmatprep.subr.mxu0 %v375
    %2603 = vmatpush1.msra.mxu0 %v374
    %2604 = vmatprep.subr.mxu0 %v371
    %2605 = vmatpush1.msra.mxu0 %v370
    %2606 = vmatprep.subr.mxu0 %v367
    %2607 = vmatpush1.msra.mxu0 %v366
    %2608 = vmatprep.subr.mxu0 0.0
    %2609 = vmatpush2.msra.mxu0 0.0
    %2610 = vmatprep.subr.mxu0 0.0
    %2611 = vmatpush2.msra.mxu0 0.0
    %2612 = vmatprep.subr.mxu0 0.0
    %2613 = vmatpush2.msra.mxu0 0.0
    %2614 = vmatprep.subr.mxu0 0.0
    %2615 = vmatpush2.msra.mxu0 0.0
    %2616 = vmatprep.subr.mxu0 0.0
    %2617 = vmatpush2.msra.mxu0 0.0
    %2618 = vmatprep.subr.mxu0 0.0
    %2619 = vmatpush2.msra.mxu0 0.0
    %2620 = vmatprep.subr.mxu0 0.0
    %2621 = vmatpush2.msra.mxu0 0.0
    %2622 = vmatprep.subr.mxu0 0.0
    %2623 = vmatpush2.msra.mxu0 0.0
    %2624 = vmatprep.subr.mxu0 0.0
    %2625 = vmatpush2.msra.mxu0 0.0
    %2626 = vmatprep.subr.mxu0 0.0
    %2627 = vmatpush2.msra.mxu0 0.0
    %2628 = vmatprep.subr.mxu0 0.0
    %2629 = vmatpush2.msra.mxu0 0.0
    %2630 = vmatprep.subr.mxu0 0.0
    %2631 = vmatpush2.msra.mxu0 0.0
    %2632 = vmatprep.subr.mxu0 0.0
    %2633 = vmatpush2.msra.mxu0 0.0
    %2634 = vmatprep.subr.mxu0 0.0
    %2635 = vmatpush2.msra.mxu0 0.0
    %2636 = vmatprep.subr.mxu0 0.0
    %2637 = vmatpush2.msra.mxu0 0.0
    %2638 = vmatprep.subr.mxu0 0.0
    %2639 = vmatpush2.msra.mxu0 0.0
    %2640 = vmatprep.mubr.f32.mxu0 0.0
    %2641 = vmatmul.mubr.f32.gmra.mxu0 %v2575
    %v2642 = vpop.f32.mrf.mxu0
    %v2643 = vadd.f32 %v435, %v2642
    %v2644 = vpop.f32.mrf.mxu0
    %v2645 = vadd.f32 %v439, %v2644
    %2646 = vdwg.mxu0
    %2647 = vmatprep.subr.mxu0 %v429
    %2648 = vmatpush1.msra.mxu0 %v428
    %2649 = vmatprep.subr.mxu0 %v425
    %2650 = vmatpush1.msra.mxu0 %v424
    %2651 = vmatprep.subr.mxu0 %v421
    %2652 = vmatpush1.msra.mxu0 %v420
    %2653 = vmatprep.subr.mxu0 %v417
    %2654 = vmatpush1.msra.mxu0 %v416
    %2655 = vmatprep.subr.mxu0 %v413
    %2656 = vmatpush1.msra.mxu0 %v412
    %2657 = vmatprep.subr.mxu0 %v409
    %2658 = vmatpush1.msra.mxu0 %v408
    %2659 = vmatprep.subr.mxu0 %v405
    %2660 = vmatpush1.msra.mxu0 %v404
    %2661 = vmatprep.subr.mxu0 %v401
    %2662 = vmatpush1.msra.mxu0 %v400
    %2663 = vmatprep.subr.mxu0 %v397
    %2664 = vmatpush1.msra.mxu0 %v396
    %2665 = vmatprep.subr.mxu0 %v393
    %2666 = vmatpush1.msra.mxu0 %v392
    %2667 = vmatprep.subr.mxu0 %v389
    %2668 = vmatpush1.msra.mxu0 %v388
    %2669 = vmatprep.subr.mxu0 %v385
    %2670 = vmatpush1.msra.mxu0 %v384
    %2671 = vmatprep.subr.mxu0 %v381
    %2672 = vmatpush1.msra.mxu0 %v380
    %2673 = vmatprep.subr.mxu0 %v377
    %2674 = vmatpush1.msra.mxu0 %v376
    %2675 = vmatprep.subr.mxu0 %v373
    %2676 = vmatpush1.msra.mxu0 %v372
    %2677 = vmatprep.subr.mxu0 %v369
    %2678 = vmatpush1.msra.mxu0 %v368
    %2679 = vmatprep.subr.mxu0 0.0
    %2680 = vmatpush2.msra.mxu0 0.0
    %2681 = vmatprep.subr.mxu0 0.0
    %2682 = vmatpush2.msra.mxu0 0.0
    %2683 = vmatprep.subr.mxu0 0.0
    %2684 = vmatpush2.msra.mxu0 0.0
    %2685 = vmatprep.subr.mxu0 0.0
    %2686 = vmatpush2.msra.mxu0 0.0
    %2687 = vmatprep.subr.mxu0 0.0
    %2688 = vmatpush2.msra.mxu0 0.0
    %2689 = vmatprep.subr.mxu0 0.0
    %2690 = vmatpush2.msra.mxu0 0.0
    %2691 = vmatprep.subr.mxu0 0.0
    %2692 = vmatpush2.msra.mxu0 0.0
    %2693 = vmatprep.subr.mxu0 0.0
    %2694 = vmatpush2.msra.mxu0 0.0
    %2695 = vmatprep.subr.mxu0 0.0
    %2696 = vmatpush2.msra.mxu0 0.0
    %2697 = vmatprep.subr.mxu0 0.0
    %2698 = vmatpush2.msra.mxu0 0.0
    %2699 = vmatprep.subr.mxu0 0.0
    %2700 = vmatpush2.msra.mxu0 0.0
    %2701 = vmatprep.subr.mxu0 0.0
    %2702 = vmatpush2.msra.mxu0 0.0
    %2703 = vmatprep.subr.mxu0 0.0
    %2704 = vmatpush2.msra.mxu0 0.0
    %2705 = vmatprep.subr.mxu0 0.0
    %2706 = vmatpush2.msra.mxu0 0.0
    %2707 = vmatprep.subr.mxu0 0.0
    %2708 = vmatpush2.msra.mxu0 0.0
    %2709 = vmatprep.subr.mxu0 0.0
    %2710 = vmatpush2.msra.mxu0 0.0
    %2711 = vmatprep.mubr.f32.mxu0 0.0
    %2712 = vmatmul.mubr.f32.gmra.mxu0 %v2575
    %v2713 = vpop.f32.mrf.mxu0
    %v2714 = vadd.f32 %v443, %v2713
    %v2715 = vpop.f32.mrf.mxu0
    %v2716 = vadd.f32 %v447, %v2715
    %2717 = vdwg.mxu0
    %v2718 = vxor.u32 %v2643, 2147483648
    %v2719 = vxor.u32 %v2645, 2147483648
    %v2720 = vxor.u32 %v2714, 2147483648
    %v2721 = vmul.f32 %v2718, 1.442695
    %v2722 = vpow.pop %v2721
    %v2723 = vmul.f32 %v2719, 1.442695
    %v2724 = vpow.pop %v2723
    %v2725 = vmul.f32 %v2720, 1.442695
    %v2726 = vpow.pop %v2725
    %v2727 = vadd.f32 %v2722, 1.0
    %v2728 = vadd.f32 %v2724, 1.0
    %v2729 = vadd.f32 %v2726, 1.0
    %v2730 = vrcp.pop %v2727
    %v2731 = vmul.f32 1.0, %v2730
    %v2732 = vrcp.pop %v2728
    %v2733 = vmul.f32 1.0, %v2732
    %v2734 = vrcp.pop %v2729
    %v2735 = vmul.f32 1.0, %v2734
    %v2736 = vtanh.pop %v2716
    %v2737 = vmul.f32 %v2733, %v2385
    %v2738 = vmul.f32 %v2731, %v2736
    %v2739 = vadd.f32 %v2737, %v2738
    %v2740 = vtanh.pop %v2739
    %v2741 = vmul.f32 %v2735, %v2740
    %s2742 = scalar_lea.vmem %s0, 14
    %v2743 = vld [vmem:[%s2742] sm:$0x3]
    %2745 = vset.pattern.permute.xlu0 0
    %2746 = vperm.xlu0 %2745, %v2743
    %v2747 = vpop.permute.xlu0 %2746
    %v2749 = vmul.f32 %v2747, %v82
    %v2750 = vmul.f32 %v2747, %v86
    %v2751 = vmul.f32 %v2747, %v90
    %v2752 = vmul.f32 %v2747, %v94
    %v2753 = vadd.f32 %v2749, %v108
    %v2754 = vadd.f32 %v2750, %v112
    %v2755 = vadd.f32 %v2751, %v116
    %v2756 = vadd.f32 %v2752, %v120
    %2757 = vmatprep.subr.mxu0 %v190
    %2758 = vmatpush1.msra.mxu0 %v189
    %2759 = vmatprep.subr.mxu0 %v186
    %2760 = vmatpush1.msra.mxu0 %v185
    %2761 = vmatprep.subr.mxu0 %v182
    %2762 = vmatpush1.msra.mxu0 %v181
    %2763 = vmatprep.subr.mxu0 %v178
    %2764 = vmatpush1.msra.mxu0 %v177
    %2765 = vmatprep.subr.mxu0 %v174
    %2766 = vmatpush1.msra.mxu0 %v173
    %2767 = vmatprep.subr.mxu0 %v170
    %2768 = vmatpush1.msra.mxu0 %v169
    %2769 = vmatprep.subr.mxu0 %v166
    %2770 = vmatpush1.msra.mxu0 %v165
    %2771 = vmatprep.subr.mxu0 %v162
    %2772 = vmatpush1.msra.mxu0 %v161
    %2773 = vmatprep.subr.mxu0 %v158
    %2774 = vmatpush1.msra.mxu0 %v157
    %2775 = vmatprep.subr.mxu0 %v154
    %2776 = vmatpush1.msra.mxu0 %v153
    %2777 = vmatprep.subr.mxu0 %v150
    %2778 = vmatpush1.msra.mxu0 %v149
    %2779 = vmatprep.subr.mxu0 %v146
    %2780 = vmatpush1.msra.mxu0 %v145
    %2781 = vmatprep.subr.mxu0 %v142
    %2782 = vmatpush1.msra.mxu0 %v141
    %2783 = vmatprep.subr.mxu0 %v138
    %2784 = vmatpush1.msra.mxu0 %v137
    %2785 = vmatprep.subr.mxu0 %v134
    %2786 = vmatpush1.msra.mxu0 %v133
    %2787 = vmatprep.subr.mxu0 %v130
    %2788 = vmatpush1.msra.mxu0 %v129
    %2789 = vmatprep.subr.mxu0 0.0
    %2790 = vmatpush2.msra.mxu0 0.0
    %2791 = vmatprep.subr.mxu0 0.0
    %2792 = vmatpush2.msra.mxu0 0.0
    %2793 = vmatprep.subr.mxu0 0.0
    %2794 = vmatpush2.msra.mxu0 0.0
    %2795 = vmatprep.subr.mxu0 0.0
    %2796 = vmatpush2.msra.mxu0 0.0
    %2797 = vmatprep.subr.mxu0 0.0
    %2798 = vmatpush2.msra.mxu0 0.0
    %2799 = vmatprep.subr.mxu0 0.0
    %2800 = vmatpush2.msra.mxu0 0.0
    %2801 = vmatprep.subr.mxu0 0.0
    %2802 = vmatpush2.msra.mxu0 0.0
    %2803 = vmatprep.subr.mxu0 0.0
    %2804 = vmatpush2.msra.mxu0 0.0
    %2805 = vmatprep.subr.mxu0 0.0
    %2806 = vmatpush2.msra.mxu0 0.0
    %2807 = vmatprep.subr.mxu0 0.0
    %2808 = vmatpush2.msra.mxu0 0.0
    %2809 = vmatprep.subr.mxu0 0.0
    %2810 = vmatpush2.msra.mxu0 0.0
    %2811 = vmatprep.subr.mxu0 0.0
    %2812 = vmatpush2.msra.mxu0 0.0
    %2813 = vmatprep.subr.mxu0 0.0
    %2814 = vmatpush2.msra.mxu0 0.0
    %2815 = vmatprep.subr.mxu0 0.0
    %2816 = vmatpush2.msra.mxu0 0.0
    %2817 = vmatprep.subr.mxu0 0.0
    %2818 = vmatpush2.msra.mxu0 0.0
    %2819 = vmatprep.subr.mxu0 0.0
    %2820 = vmatpush2.msra.mxu0 0.0
    %2821 = vmatprep.mubr.f32.mxu0 0.0
    %2822 = vmatmul.mubr.f32.gmra.mxu0 %v2572
    %v2823 = vpop.f32.mrf.mxu0
    %v2824 = vadd.f32 0.0, %v2823
    %v2825 = vpop.f32.mrf.mxu0
    %v2826 = vadd.f32 0.0, %v2825
    %2827 = vdwg.mxu0
    %2828 = vmatprep.subr.mxu0 %v192
    %2829 = vmatpush1.msra.mxu0 %v191
    %2830 = vmatprep.subr.mxu0 %v188
    %2831 = vmatpush1.msra.mxu0 %v187
    %2832 = vmatprep.subr.mxu0 %v184
    %2833 = vmatpush1.msra.mxu0 %v183
    %2834 = vmatprep.subr.mxu0 %v180
    %2835 = vmatpush1.msra.mxu0 %v179
    %2836 = vmatprep.subr.mxu0 %v176
    %2837 = vmatpush1.msra.mxu0 %v175
    %2838 = vmatprep.subr.mxu0 %v172
    %2839 = vmatpush1.msra.mxu0 %v171
    %2840 = vmatprep.subr.mxu0 %v168
    %2841 = vmatpush1.msra.mxu0 %v167
    %2842 = vmatprep.subr.mxu0 %v164
    %2843 = vmatpush1.msra.mxu0 %v163
    %2844 = vmatprep.subr.mxu0 %v160
    %2845 = vmatpush1.msra.mxu0 %v159
    %2846 = vmatprep.subr.mxu0 %v156
    %2847 = vmatpush1.msra.mxu0 %v155
    %2848 = vmatprep.subr.mxu0 %v152
    %2849 = vmatpush1.msra.mxu0 %v151
    %2850 = vmatprep.subr.mxu0 %v148
    %2851 = vmatpush1.msra.mxu0 %v147
    %2852 = vmatprep.subr.mxu0 %v144
    %2853 = vmatpush1.msra.mxu0 %v143
    %2854 = vmatprep.subr.mxu0 %v140
    %2855 = vmatpush1.msra.mxu0 %v139
    %2856 = vmatprep.subr.mxu0 %v136
    %2857 = vmatpush1.msra.mxu0 %v135
    %2858 = vmatprep.subr.mxu0 %v132
    %2859 = vmatpush1.msra.mxu0 %v131
    %2860 = vmatprep.subr.mxu0 0.0
    %2861 = vmatpush2.msra.mxu0 0.0
    %2862 = vmatprep.subr.mxu0 0.0
    %2863 = vmatpush2.msra.mxu0 0.0
    %2864 = vmatprep.subr.mxu0 0.0
    %2865 = vmatpush2.msra.mxu0 0.0
    %2866 = vmatprep.subr.mxu0 0.0
    %2867 = vmatpush2.msra.mxu0 0.0
    %2868 = vmatprep.subr.mxu0 0.0
    %2869 = vmatpush2.msra.mxu0 0.0
    %2870 = vmatprep.subr.mxu0 0.0
    %2871 = vmatpush2.msra.mxu0 0.0
    %2872 = vmatprep.subr.mxu0 0.0
    %2873 = vmatpush2.msra.mxu0 0.0
    %2874 = vmatprep.subr.mxu0 0.0
    %2875 = vmatpush2.msra.mxu0 0.0
    %2876 = vmatprep.subr.mxu0 0.0
    %2877 = vmatpush2.msra.mxu0 0.0
    %2878 = vmatprep.subr.mxu0 0.0
    %2879 = vmatpush2.msra.mxu0 0.0
    %2880 = vmatprep.subr.mxu0 0.0
    %2881 = vmatpush2.msra.mxu0 0.0
    %2882 = vmatprep.subr.mxu0 0.0
    %2883 = vmatpush2.msra.mxu0 0.0
    %2884 = vmatprep.subr.mxu0 0.0
    %2885 = vmatpush2.msra.mxu0 0.0
    %2886 = vmatprep.subr.mxu0 0.0
    %2887 = vmatpush2.msra.mxu0 0.0
    %2888 = vmatprep.subr.mxu0 0.0
    %2889 = vmatpush2.msra.mxu0 0.0
    %2890 = vmatprep.subr.mxu0 0.0
    %2891 = vmatpush2.msra.mxu0 0.0
    %2892 = vmatprep.mubr.f32.mxu0 0.0
    %2893 = vmatmul.mubr.f32.gmra.mxu0 %v2572
    %v2894 = vpop.f32.mrf.mxu0
    %v2895 = vadd.f32 0.0, %v2894
    %v2896 = vpop.f32.mrf.mxu0
    %v2897 = vadd.f32 0.0, %v2896
    %2898 = vdwg.mxu0
    %v2899 = vadd.f32 %v2753, %v2824
    %v2900 = vadd.f32 %v2754, %v2826
    %v2901 = vadd.f32 %v2755, %v2895
    %v2902 = vadd.f32 %v2756, %v2897
    %v2903 = vxor.u32 %v2899, 2147483648
    %v2904 = vxor.u32 %v2900, 2147483648
    %v2905 = vxor.u32 %v2901, 2147483648
    %v2906 = vmul.f32 %v2903, 1.442695
    %v2907 = vpow.pop %v2906
    %v2908 = vmul.f32 %v2904, 1.442695
    %v2909 = vpow.pop %v2908
    %v2910 = vmul.f32 %v2905, 1.442695
    %v2911 = vpow.pop %v2910
    %v2912 = vadd.f32 %v2907, 1.0
    %v2913 = vadd.f32 %v2909, 1.0
    %v2914 = vadd.f32 %v2911, 1.0
    %v2915 = vrcp.pop %v2912
    %v2916 = vmul.f32 1.0, %v2915
    %v2917 = vrcp.pop %v2913
    %v2918 = vmul.f32 1.0, %v2917
    %v2919 = vrcp.pop %v2914
    %v2920 = vmul.f32 1.0, %v2919
    %v2921 = vtanh.pop %v2902
    %v2922 = vmul.f32 %v2918, %v2570
    %v2923 = vmul.f32 %v2916, %v2921
    %v2924 = vadd.f32 %v2922, %v2923
    %v2925 = vtanh.pop %v2924
    %v2926 = vmul.f32 %v2920, %v2925
    %2927 = vrot.lane.b32.xlu0 %v2741, 64
    %v2928 = vpop.permute.xlu0 %2927
    %v2929 = vadd.f32 %v2926, %v2928
    %2930 = vmatprep.subr.mxu0 %v427
    %2931 = vmatpush1.msra.mxu0 %v426
    %2932 = vmatprep.subr.mxu0 %v423
    %2933 = vmatpush1.msra.mxu0 %v422
    %2934 = vmatprep.subr.mxu0 %v419
    %2935 = vmatpush1.msra.mxu0 %v418
    %2936 = vmatprep.subr.mxu0 %v415
    %2937 = vmatpush1.msra.mxu0 %v414
    %2938 = vmatprep.subr.mxu0 %v411
    %2939 = vmatpush1.msra.mxu0 %v410
    %2940 = vmatprep.subr.mxu0 %v407
    %2941 = vmatpush1.msra.mxu0 %v406
    %2942 = vmatprep.subr.mxu0 %v403
    %2943 = vmatpush1.msra.mxu0 %v402
    %2944 = vmatprep.subr.mxu0 %v399
    %2945 = vmatpush1.msra.mxu0 %v398
    %2946 = vmatprep.subr.mxu0 %v395
    %2947 = vmatpush1.msra.mxu0 %v394
    %2948 = vmatprep.subr.mxu0 %v391
    %2949 = vmatpush1.msra.mxu0 %v390
    %2950 = vmatprep.subr.mxu0 %v387
    %2951 = vmatpush1.msra.mxu0 %v386
    %2952 = vmatprep.subr.mxu0 %v383
    %2953 = vmatpush1.msra.mxu0 %v382
    %2954 = vmatprep.subr.mxu0 %v379
    %2955 = vmatpush1.msra.mxu0 %v378
    %2956 = vmatprep.subr.mxu0 %v375
    %2957 = vmatpush1.msra.mxu0 %v374
    %2958 = vmatprep.subr.mxu0 %v371
    %2959 = vmatpush1.msra.mxu0 %v370
    %2960 = vmatprep.subr.mxu0 %v367
    %2961 = vmatpush1.msra.mxu0 %v366
    %2962 = vmatprep.subr.mxu0 0.0
    %2963 = vmatpush2.msra.mxu0 0.0
    %2964 = vmatprep.subr.mxu0 0.0
    %2965 = vmatpush2.msra.mxu0 0.0
    %2966 = vmatprep.subr.mxu0 0.0
    %2967 = vmatpush2.msra.mxu0 0.0
    %2968 = vmatprep.subr.mxu0 0.0
    %2969 = vmatpush2.msra.mxu0 0.0
    %2970 = vmatprep.subr.mxu0 0.0
    %2971 = vmatpush2.msra.mxu0 0.0
    %2972 = vmatprep.subr.mxu0 0.0
    %2973 = vmatpush2.msra.mxu0 0.0
    %2974 = vmatprep.subr.mxu0 0.0
    %2975 = vmatpush2.msra.mxu0 0.0
    %2976 = vmatprep.subr.mxu0 0.0
    %2977 = vmatpush2.msra.mxu0 0.0
    %2978 = vmatprep.subr.mxu0 0.0
    %2979 = vmatpush2.msra.mxu0 0.0
    %2980 = vmatprep.subr.mxu0 0.0
    %2981 = vmatpush2.msra.mxu0 0.0
    %2982 = vmatprep.subr.mxu0 0.0
    %2983 = vmatpush2.msra.mxu0 0.0
    %2984 = vmatprep.subr.mxu0 0.0
    %2985 = vmatpush2.msra.mxu0 0.0
    %2986 = vmatprep.subr.mxu0 0.0
    %2987 = vmatpush2.msra.mxu0 0.0
    %2988 = vmatprep.subr.mxu0 0.0
    %2989 = vmatpush2.msra.mxu0 0.0
    %2990 = vmatprep.subr.mxu0 0.0
    %2991 = vmatpush2.msra.mxu0 0.0
    %2992 = vmatprep.subr.mxu0 0.0
    %2993 = vmatpush2.msra.mxu0 0.0
    %2994 = vmatprep.mubr.f32.mxu0 0.0
    %2995 = vmatmul.mubr.f32.gmra.mxu0 %v2929
    %v2996 = vpop.f32.mrf.mxu0
    %v2997 = vadd.f32 %v435, %v2996
    %v2998 = vpop.f32.mrf.mxu0
    %v2999 = vadd.f32 %v439, %v2998
    %3000 = vdwg.mxu0
    %3001 = vmatprep.subr.mxu0 %v429
    %3002 = vmatpush1.msra.mxu0 %v428
    %3003 = vmatprep.subr.mxu0 %v425
    %3004 = vmatpush1.msra.mxu0 %v424
    %3005 = vmatprep.subr.mxu0 %v421
    %3006 = vmatpush1.msra.mxu0 %v420
    %3007 = vmatprep.subr.mxu0 %v417
    %3008 = vmatpush1.msra.mxu0 %v416
    %3009 = vmatprep.subr.mxu0 %v413
    %3010 = vmatpush1.msra.mxu0 %v412
    %3011 = vmatprep.subr.mxu0 %v409
    %3012 = vmatpush1.msra.mxu0 %v408
    %3013 = vmatprep.subr.mxu0 %v405
    %3014 = vmatpush1.msra.mxu0 %v404
    %3015 = vmatprep.subr.mxu0 %v401
    %3016 = vmatpush1.msra.mxu0 %v400
    %3017 = vmatprep.subr.mxu0 %v397
    %3018 = vmatpush1.msra.mxu0 %v396
    %3019 = vmatprep.subr.mxu0 %v393
    %3020 = vmatpush1.msra.mxu0 %v392
    %3021 = vmatprep.subr.mxu0 %v389
    %3022 = vmatpush1.msra.mxu0 %v388
    %3023 = vmatprep.subr.mxu0 %v385
    %3024 = vmatpush1.msra.mxu0 %v384
    %3025 = vmatprep.subr.mxu0 %v381
    %3026 = vmatpush1.msra.mxu0 %v380
    %3027 = vmatprep.subr.mxu0 %v377
    %3028 = vmatpush1.msra.mxu0 %v376
    %3029 = vmatprep.subr.mxu0 %v373
    %3030 = vmatpush1.msra.mxu0 %v372
    %3031 = vmatprep.subr.mxu0 %v369
    %3032 = vmatpush1.msra.mxu0 %v368
    %3033 = vmatprep.subr.mxu0 0.0
    %3034 = vmatpush2.msra.mxu0 0.0
    %3035 = vmatprep.subr.mxu0 0.0
    %3036 = vmatpush2.msra.mxu0 0.0
    %3037 = vmatprep.subr.mxu0 0.0
    %3038 = vmatpush2.msra.mxu0 0.0
    %3039 = vmatprep.subr.mxu0 0.0
    %3040 = vmatpush2.msra.mxu0 0.0
    %3041 = vmatprep.subr.mxu0 0.0
    %3042 = vmatpush2.msra.mxu0 0.0
    %3043 = vmatprep.subr.mxu0 0.0
    %3044 = vmatpush2.msra.mxu0 0.0
    %3045 = vmatprep.subr.mxu0 0.0
    %3046 = vmatpush2.msra.mxu0 0.0
    %3047 = vmatprep.subr.mxu0 0.0
    %3048 = vmatpush2.msra.mxu0 0.0
    %3049 = vmatprep.subr.mxu0 0.0
    %3050 = vmatpush2.msra.mxu0 0.0
    %3051 = vmatprep.subr.mxu0 0.0
    %3052 = vmatpush2.msra.mxu0 0.0
    %3053 = vmatprep.subr.mxu0 0.0
    %3054 = vmatpush2.msra.mxu0 0.0
    %3055 = vmatprep.subr.mxu0 0.0
    %3056 = vmatpush2.msra.mxu0 0.0
    %3057 = vmatprep.subr.mxu0 0.0
    %3058 = vmatpush2.msra.mxu0 0.0
    %3059 = vmatprep.subr.mxu0 0.0
    %3060 = vmatpush2.msra.mxu0 0.0
    %3061 = vmatprep.subr.mxu0 0.0
    %3062 = vmatpush2.msra.mxu0 0.0
    %3063 = vmatprep.subr.mxu0 0.0
    %3064 = vmatpush2.msra.mxu0 0.0
    %3065 = vmatprep.mubr.f32.mxu0 0.0
    %3066 = vmatmul.mubr.f32.gmra.mxu0 %v2929
    %v3067 = vpop.f32.mrf.mxu0
    %v3068 = vadd.f32 %v443, %v3067
    %v3069 = vpop.f32.mrf.mxu0
    %v3070 = vadd.f32 %v447, %v3069
    %3071 = vdwg.mxu0
    %v3072 = vxor.u32 %v2997, 2147483648
    %v3073 = vxor.u32 %v2999, 2147483648
    %v3074 = vxor.u32 %v3068, 2147483648
    %v3075 = vmul.f32 %v3072, 1.442695
    %v3076 = vpow.pop %v3075
    %v3077 = vmul.f32 %v3073, 1.442695
    %v3078 = vpow.pop %v3077
    %v3079 = vmul.f32 %v3074, 1.442695
    %v3080 = vpow.pop %v3079
    %v3081 = vadd.f32 %v3076, 1.0
    %v3082 = vadd.f32 %v3078, 1.0
    %v3083 = vadd.f32 %v3080, 1.0
    %v3084 = vrcp.pop %v3081
    %v3085 = vmul.f32 1.0, %v3084
    %v3086 = vrcp.pop %v3082
    %v3087 = vmul.f32 1.0, %v3086
    %v3088 = vrcp.pop %v3083
    %v3089 = vmul.f32 1.0, %v3088
    %v3090 = vtanh.pop %v3070
    %v3091 = vmul.f32 %v3087, %v2739
    %v3092 = vmul.f32 %v3085, %v3090
    %v3093 = vadd.f32 %v3091, %v3092
    %v3094 = vtanh.pop %v3093
    %v3095 = vmul.f32 %v3089, %v3094
    %v3096 = vld [vmem:[#allocation7] sm:$0xff]
    %v3097 = vld [vmem:[#allocation7 + $0x8] sm:$0xff]
    %v3098 = vld [vmem:[#allocation7 + $0x10] sm:$0xff]
    %v3099 = vld [vmem:[#allocation7 + $0x18] sm:$0xff]
    %v3100 = vld [vmem:[#allocation7 + $0x20] sm:$0xff]
    %v3101 = vld [vmem:[#allocation7 + $0x28] sm:$0xff]
    %v3102 = vld [vmem:[#allocation7 + $0x30] sm:$0xff]
    %v3103 = vld [vmem:[#allocation7 + $0x38] sm:$0xff]
    %v3104 = vld [vmem:[#allocation7 + $0x40] sm:$0xff]
    %v3105 = vld [vmem:[#allocation7 + $0x48] sm:$0xff]
    %v3106 = vld [vmem:[#allocation7 + $0x50] sm:$0xff]
    %v3107 = vld [vmem:[#allocation7 + $0x58] sm:$0xff]
    %v3108 = vld [vmem:[#allocation7 + $0x60] sm:$0xff]
    %v3109 = vld [vmem:[#allocation7 + $0x68] sm:$0xff]
    %v3110 = vld [vmem:[#allocation7 + $0x70] sm:$0xff]
    %v3111 = vld [vmem:[#allocation7 + $0x78] sm:$0xff]
    %v3112 = vld [vmem:[%s7] sm:$0x1]
    %v3114 = vlaneseq
    %v3115 = vshrl.u32 %v3114, 7
    %v3116 = vsub.s32 0, %v3115
    %v3117 = vrot.slane %v3112, %v3116
    %3119 = vmatprep.subr.mxu0 0.0
    %3120 = vmatpush1.msra.mxu0 %v3111
    %3121 = vmatprep.subr.mxu0 0.0
    %3122 = vmatpush1.msra.mxu0 %v3110
    %3123 = vmatprep.subr.mxu0 0.0
    %3124 = vmatpush1.msra.mxu0 %v3109
    %3125 = vmatprep.subr.mxu0 0.0
    %3126 = vmatpush1.msra.mxu0 %v3108
    %3127 = vmatprep.subr.mxu0 0.0
    %3128 = vmatpush1.msra.mxu0 %v3107
    %3129 = vmatprep.subr.mxu0 0.0
    %3130 = vmatpush1.msra.mxu0 %v3106
    %3131 = vmatprep.subr.mxu0 0.0
    %3132 = vmatpush1.msra.mxu0 %v3105
    %3133 = vmatprep.subr.mxu0 0.0
    %3134 = vmatpush1.msra.mxu0 %v3104
    %3135 = vmatprep.subr.mxu0 0.0
    %3136 = vmatpush1.msra.mxu0 %v3103
    %3137 = vmatprep.subr.mxu0 0.0
    %3138 = vmatpush1.msra.mxu0 %v3102
    %3139 = vmatprep.subr.mxu0 0.0
    %3140 = vmatpush1.msra.mxu0 %v3101
    %3141 = vmatprep.subr.mxu0 0.0
    %3142 = vmatpush1.msra.mxu0 %v3100
    %3143 = vmatprep.subr.mxu0 0.0
    %3144 = vmatpush1.msra.mxu0 %v3099
    %3145 = vmatprep.subr.mxu0 0.0
    %3146 = vmatpush1.msra.mxu0 %v3098
    %3147 = vmatprep.subr.mxu0 0.0
    %3148 = vmatpush1.msra.mxu0 %v3097
    %3149 = vmatprep.subr.mxu0 0.0
    %3150 = vmatpush1.msra.mxu0 %v3096
    %3151 = vmatprep.subr.mxu0 0.0
    %3152 = vmatpush2.msra.mxu0 0.0
    %3153 = vmatprep.subr.mxu0 0.0
    %3154 = vmatpush2.msra.mxu0 0.0
    %3155 = vmatprep.subr.mxu0 0.0
    %3156 = vmatpush2.msra.mxu0 0.0
    %3157 = vmatprep.subr.mxu0 0.0
    %3158 = vmatpush2.msra.mxu0 0.0
    %3159 = vmatprep.subr.mxu0 0.0
    %3160 = vmatpush2.msra.mxu0 0.0
    %3161 = vmatprep.subr.mxu0 0.0
    %3162 = vmatpush2.msra.mxu0 0.0
    %3163 = vmatprep.subr.mxu0 0.0
    %3164 = vmatpush2.msra.mxu0 0.0
    %3165 = vmatprep.subr.mxu0 0.0
    %3166 = vmatpush2.msra.mxu0 0.0
    %3167 = vmatprep.subr.mxu0 0.0
    %3168 = vmatpush2.msra.mxu0 0.0
    %3169 = vmatprep.subr.mxu0 0.0
    %3170 = vmatpush2.msra.mxu0 0.0
    %3171 = vmatprep.subr.mxu0 0.0
    %3172 = vmatpush2.msra.mxu0 0.0
    %3173 = vmatprep.subr.mxu0 0.0
    %3174 = vmatpush2.msra.mxu0 0.0
    %3175 = vmatprep.subr.mxu0 0.0
    %3176 = vmatpush2.msra.mxu0 0.0
    %3177 = vmatprep.subr.mxu0 0.0
    %3178 = vmatpush2.msra.mxu0 0.0
    %3179 = vmatprep.subr.mxu0 0.0
    %3180 = vmatpush2.msra.mxu0 0.0
    %3181 = vmatprep.subr.mxu0 0.0
    %3182 = vmatpush2.msra.mxu0 0.0
    %3183 = vmatprep.mubr.f32.mxu0 0.0
    %3184 = vmatmul.mubr.f32.gmra.mxu0 %v3095
    %v3185 = vpop.f32.mrf.mxu0
    %v3186 = vadd.f32 %v3117, %v3185
    %v3187 = vpop.f32.mrf.mxu0
    %3188 = vdwg.mxu0
    %3189 = vst [vmem:[#allocation8] sm:$0x3] %v3186
    // Predicated region
    $region46: #{seq_lstm_forward.1} parent=1 // pred_check
      _
    $region47: #{seq_lstm_forward.1} parent=1 // pred_check_branch
      %3191 = sbr.rel (0) target = $region49
    $region48: #{seq_lstm_forward.1} parent=1 // pred_region
      %s3193 = ssub.s32 32, 32
      %3194 = vsyncadd [#allocation4], %s3193
      %s3196 = sshll.u32 [#allocation8], 4
      %s3197 = int_to_ptr.vmem [resolvable:$true] %s3196
      %3199 = dma.vmem_to_hbm [thread:$0]  %s3197, 32, %s8, [#allocation4]
    $region49: #{seq_lstm_forward.1} parent=1 // pred_fallthru
      _
    // Predicated region
    $region50: #{seq_lstm_forward.1} parent=1 // pred_check
      _
    $region51: #{seq_lstm_forward.1} parent=1 // pred_check_branch
      %3201 = sbr.rel (0) target = $region53
    $region52: #{seq_lstm_forward.1} parent=1 // pred_region
      %3202 = dma.done [#allocation4], 32
    $region53: #{seq_lstm_forward.1} parent=1 // pred_fallthru
      _
    %3203 = vsyncpa [#allocation3], 1
    %3204 = vsyncpa [#allocation6], 1
    %3205 = vsyncpa [#allocation4], 1

</llo_original>
